<compile_context>
chip_gen: v7x
topology: tpu7x:2x2x1
jax: 0.10.0
libtpu: 0.0.40
codegen_flags: <defaults>
</compile_context>

<pallas_src>
import math

import jax
import jax.numpy as jnp
from jax.experimental import pallas as pl
from jax.experimental.pallas import tpu as pltpu

# ----- module hyper-parameters (from __init__ defaults) ---------------------
METHOD_DIM = 768
MR_HID = METHOD_DIM // 2                       # 384
REDUCED_DIM = 32
DURATION_DIM = 64
D_MODEL = REDUCED_DIM + DURATION_DIM           # 96
NUM_HEADS = 4
HEAD_DIM = D_MODEL // NUM_HEADS                # 24
FF_DIM = 2048                                  # nn.TransformerEncoderLayer default
FF_CHUNK = 512                                 # FF tiling (bounds the f32 ReLU temp)
MAX_SEQ_LEN = 32
LN_EPS = 1e-5
FC_HID = D_MODEL // 2                          # 48
OUT_LANES = 128                                # lane-dense logit slab (col 0 = logit)
ROWS_TARGET = 256                              # target MXU M rows per grid step


# ---------------------------------------------------------------------------
# Single fused kernel: reducer + embed/pos + encoder layer + classifier head.
# One grid step processes a block of `bt` batch elements.
# ---------------------------------------------------------------------------
def _fused_kernel(method_ref, dur_ref, mask_ref, posh_ref,
                  mrw1_ref, mrb1_ref, mrw2_ref, mrb2_ref,
                  wqkv_ref, bqkv_ref, wo_ref, bo_ref,
                  ln1w_ref, ln1b_ref,
                  ffw1_ref, ffb1_ref, ffw2_ref, ffb2_ref,
                  ln2w_ref, ln2b_ref,
                  fc1w_ref, fc1b_ref, fc2w_ref, fc2b_ref,
                  logit_ref, attn_ref):
    bt, S, _ = method_ref.shape                   # S tokens per batch element
    Lp = posh_ref.shape[0]                        # padded seq length (header + tokens)
    rows_tok = bt * S                             # reducer matmul M
    rows_p = bt * Lp                              # encoder matmul M
    bf16 = jnp.bfloat16
    f32 = jnp.float32

    # ---- method_reducer MLP (method input already bf16, no header-row waste)
    m = method_ref[...].reshape(rows_tok, METHOD_DIM)
    h = jnp.dot(m, mrw1_ref[...], preferred_element_type=f32) + mrb1_ref[...]
    h = jnp.maximum(h, 0.0)
    red = jnp.dot(h.astype(bf16), mrw2_ref[...], preferred_element_type=f32) + mrb2_ref[...]
    red = jnp.maximum(red, 0.0).reshape(bt, S, REDUCED_DIM)

    # ---- concat reduced-method | duration, insert zero header row and zero
    #      tail padding rows, then add positional encoding (header token is
    #      folded into posh row 0; posh rows >= S+1 are zero).
    comb = jnp.concatenate([red, dur_ref[...]], axis=-1)          # (bt, S, 96)
    parts = [jnp.zeros((bt, 1, D_MODEL), f32), comb]
    if Lp - 1 - S > 0:
        parts.append(jnp.zeros((bt, Lp - 1 - S, D_MODEL), f32))
    x = jnp.concatenate(parts, axis=1) + posh_ref[...][None, :, :]  # (bt, Lp, 96)
    xf = x.reshape(rows_p, D_MODEL)

    # ---- self attention: all heads fused into one batched softmax.
    qkv = jnp.dot(xf.astype(bf16), wqkv_ref[...], preferred_element_type=f32) + bqkv_ref[...]
    scale = 1.0 / math.sqrt(HEAD_DIM)

    qs, ks, vs = [], [], []
    for hd_i in range(NUM_HEADS):
        lo = hd_i * HEAD_DIM
        qs.append(qkv[:, lo:lo + HEAD_DIM].reshape(bt, Lp, HEAD_DIM))
        ks.append(qkv[:, D_MODEL + lo:D_MODEL + lo + HEAD_DIM].reshape(bt, Lp, HEAD_DIM))
        vs.append(qkv[:, 2 * D_MODEL + lo:2 * D_MODEL + lo + HEAD_DIM].reshape(bt, Lp, HEAD_DIM))
    q3 = jnp.concatenate(qs, axis=0).astype(bf16)   # (H*bt, Lp, hd), head-major
    k3 = jnp.concatenate(ks, axis=0).astype(bf16)
    v3 = jnp.concatenate(vs, axis=0).astype(bf16)

    # additive key-padding bias: -1e4 masked / +1.0 valid (the +1.0 is uniform
    # over valid keys so it is softmax-invariant -- faithful to the reference).
    mask = mask_ref[...]                            # (bt, 1, Lp)
    mask_h = jnp.concatenate([mask] * NUM_HEADS, axis=0)          # (H*bt, 1, Lp)

    s = jnp.einsum('bqd,bkd->bqk', q3, k3, preferred_element_type=f32) * scale
    s = s + mask_h
    s = s - jnp.max(s, axis=-1, keepdims=True)
    p = jnp.exp(s)
    p = p / jnp.sum(p, axis=-1, keepdims=True)      # exact: weights are returned

    # head-averaged attention weights (stored at padded size Lp x Lp; wrapper
    # slices the valid (L, L) corner).
    attn_avg = p[0:bt]
    for hd_i in range(1, NUM_HEADS):
        attn_avg = attn_avg + p[hd_i * bt:(hd_i + 1) * bt]
    attn_ref[...] = attn_avg * (1.0 / NUM_HEADS)

    # context per head, lane-concat back to (rows, 96), single K=96 out-proj.
    ctx = jnp.einsum('bqk,bkd->bqd', p.astype(bf16), v3, preferred_element_type=f32)
    ctx_cols = [ctx[hd_i * bt:(hd_i + 1) * bt].reshape(rows_p, HEAD_DIM)
                for hd_i in range(NUM_HEADS)]
    ctx_all = jnp.concatenate(ctx_cols, axis=-1)                  # (rows_p, 96)
    attn_out = jnp.dot(ctx_all.astype(bf16), wo_ref[...],
                       preferred_element_type=f32) + bo_ref[...]

    # ---- residual + LayerNorm1
    src = xf + attn_out
    mu = jnp.mean(src, axis=-1, keepdims=True)
    var = jnp.mean((src - mu) ** 2, axis=-1, keepdims=True)
    src = (src - mu) * jax.lax.rsqrt(var + LN_EPS) * ln1w_ref[...] + ln1b_ref[...]

    # ---- feed-forward (ReLU, dropout = identity), FF_DIM tiled in chunks
    src16 = src.astype(bf16)
    ff = jnp.zeros((rows_p, D_MODEL), f32)
    for c in range(FF_DIM // FF_CHUNK):
        c0 = c * FF_CHUNK
        h1c = jnp.dot(src16, ffw1_ref[:, c0:c0 + FF_CHUNK],
                      preferred_element_type=f32) + ffb1_ref[:, c0:c0 + FF_CHUNK]
        h1c = jnp.maximum(h1c, 0.0)
        ff = ff + jnp.dot(h1c.astype(bf16), ffw2_ref[c0:c0 + FF_CHUNK, :],
                          preferred_element_type=f32)
    ff = ff + ffb2_ref[...]

    # ---- residual + LayerNorm2
    src = src + ff
    mu2 = jnp.mean(src, axis=-1, keepdims=True)
    var2 = jnp.mean((src - mu2) ** 2, axis=-1, keepdims=True)
    y = (src - mu2) * jax.lax.rsqrt(var2 + LN_EPS) * ln2w_ref[...] + ln2b_ref[...]

    # ---- classification head on the header rows (96->48->1, fc2 padded to 128)
    hrow = y.reshape(bt, Lp, D_MODEL)[:, 0, :]                    # (bt, 96)
    fc_h = jnp.dot(hrow.astype(bf16), fc1w_ref[...],
                   preferred_element_type=f32) + fc1b_ref[...]
    logit = jnp.dot(fc_h.astype(bf16), fc2w_ref[...],
                    preferred_element_type=f32) + fc2b_ref[...]
    logit_ref[...] = logit.reshape(bt, 1, OUT_LANES)


# ---------------------------------------------------------------------------
# Wrapper
# ---------------------------------------------------------------------------
def _pick_batch_block(B, S):
    if B <= 1:
        return 1
    bt = max(1, ROWS_TARGET // max(S, 1))        # ~256 matmul rows per grid step
    bt = min(bt, max(1, B // 2))                 # keep >=2 grid steps (2 TensorCores)
    return int(bt)


def transformer_forward(params, method_embeddings, category_embeddings,
                        duration_embeddings, attention_mask):
    # NOTE: category_embeddings accepted but unused — faithful to the PyTorch forward.
    del category_embeddings
    B = method_embeddings.shape[0]
    S = method_embeddings.shape[2]
    L = S + 1
    Lp = pl.cdiv(L, 8) * 8                       # padded seq length (sublane multiple)
    f32 = jnp.float32
    bf16 = jnp.bfloat16

    method = method_embeddings.reshape(B, S, METHOD_DIM).astype(bf16)   # squeeze(1), bf16
    dur = duration_embeddings.reshape(B, S, DURATION_DIM).astype(f32)   # squeeze(1)

    # key-padding bias exactly as the PyTorch code builds it:
    # masked (==0) positions -> -10000.0, valid positions -> +1.0 (softmax-invariant).
    # Keys beyond L (kernel-internal padding) also get -10000.0.
    # TODO(synk): the original 1-D attention_mask branch is shape-inconsistent in the
    # reference and is not replicated; a 2-D (B, S) mask is assumed.
    am = jnp.concatenate([jnp.ones((B, 1), attention_mask.dtype), attention_mask], axis=1)
    key_bias = jnp.where(am == 0, -10000.0, 1.0).astype(f32)            # (B, L)
    pad_keys = jnp.full((B, Lp - L), -10000.0, f32)
    mask_bias = jnp.concatenate([key_bias, pad_keys], axis=1).reshape(B, 1, Lp)

    bt = _pick_batch_block(B, S)
    n_blk = pl.cdiv(B, bt)
    Bp = n_blk * bt

    method_p = jnp.pad(method, ((0, Bp - B), (0, 0), (0, 0)))
    dur_p = jnp.pad(dur, ((0, Bp - B), (0, 0), (0, 0)))
    mask_p = jnp.pad(mask_bias, ((0, Bp - B), (0, 0), (0, 0)), constant_values=1.0)

    # positional encoding with the header token folded into row 0, zero-padded to Lp.
    posh = jnp.pad(params["pos_hdr"][:L], ((0, Lp - L), (0, 0)))

    const2 = lambda shape: pl.BlockSpec(shape, lambda b: (0, 0))
    batch3 = lambda shape: pl.BlockSpec(shape, lambda b: (b, 0, 0))

    logit_p, attn_p = pl.pallas_call(
        _fused_kernel,
        out_shape=(jax.ShapeDtypeStruct((Bp, 1, OUT_LANES), f32),
                   jax.ShapeDtypeStruct((Bp, Lp, Lp), f32)),
        grid=(n_blk,),
        in_specs=[
            batch3((bt, S, METHOD_DIM)),
            batch3((bt, S, DURATION_DIM)),
            batch3((bt, 1, Lp)),
            const2((Lp, D_MODEL)),
            const2((METHOD_DIM, MR_HID)), const2((1, MR_HID)),
            const2((MR_HID, REDUCED_DIM)), const2((1, REDUCED_DIM)),
            const2((D_MODEL, 3 * D_MODEL)), const2((1, 3 * D_MODEL)),
            const2((D_MODEL, D_MODEL)), const2((1, D_MODEL)),
            const2((1, D_MODEL)), const2((1, D_MODEL)),
            const2((D_MODEL, FF_DIM)), const2((1, FF_DIM)),
            const2((FF_DIM, D_MODEL)), const2((1, D_MODEL)),
            const2((1, D_MODEL)), const2((1, D_MODEL)),
            const2((D_MODEL, FC_HID)), const2((1, FC_HID)),
            const2((FC_HID, OUT_LANES)), const2((1, OUT_LANES)),
        ],
        out_specs=(batch3((bt, 1, OUT_LANES)),
                   batch3((bt, Lp, Lp))),
        compiler_params=pltpu.CompilerParams(
            dimension_semantics=("parallel",),
            vmem_limit_bytes=32 * 1024 * 1024),
    )(method_p, dur_p, mask_p, posh,
      params["mr_w1"], params["mr_b1"], params["mr_w2"], params["mr_b2"],
      params["attn_wqkv"], params["attn_bqkv"], params["attn_wo"], params["attn_bo"],
      params["ln1_w"], params["ln1_b"],
      params["ff_w1"], params["ff_b1"], params["ff_w2"], params["ff_b2"],
      params["ln2_w"], params["ln2_b"],
      params["fc1_w"], params["fc1_b"], params["fc2_w"], params["fc2_b"])

    final = logit_p[:B, 0, :1]                  # (B, 1)
    attn = attn_p[:B, :L, :L]                   # (B, L, L), averaged over heads
    return final, [attn]


# ---------------------------------------------------------------------------
# Parameter initialization (deterministic, shapes taken from __init__) and a
# one-time preparation step (bf16 weight cast, fc2 lane padding, pos/header fold).
# ---------------------------------------------------------------------------
def init_params(key):
    ks = iter(jax.random.split(key, 20))

    def lin(fin, fout):
        w = jax.random.normal(next(ks), (fin, fout), jnp.float32) / math.sqrt(fin)
        b = jax.random.normal(next(ks), (1, fout), jnp.float32) * 0.01
        return w, b

    p = {}
    p["mr_w1"], p["mr_b1"] = lin(METHOD_DIM, MR_HID)
    p["mr_w2"], p["mr_b2"] = lin(MR_HID, REDUCED_DIM)

    p["pos_enc"] = jax.random.normal(next(ks), (1, MAX_SEQ_LEN + 1, D_MODEL),
                                     jnp.float32) * 0.02
    p["header_token"] = jax.random.normal(next(ks), (1, 1, D_MODEL),
                                          jnp.float32) * 0.02

    p["attn_wqkv"], p["attn_bqkv"] = lin(D_MODEL, 3 * D_MODEL)
    p["attn_wo"], p["attn_bo"] = lin(D_MODEL, D_MODEL)
    p["ln1_w"] = jnp.ones((1, D_MODEL), jnp.float32)
    p["ln1_b"] = jnp.zeros((1, D_MODEL), jnp.float32)
    p["ff_w1"], p["ff_b1"] = lin(D_MODEL, FF_DIM)
    p["ff_w2"], p["ff_b2"] = lin(FF_DIM, D_MODEL)
    p["ln2_w"] = jnp.ones((1, D_MODEL), jnp.float32)
    p["ln2_b"] = jnp.zeros((1, D_MODEL), jnp.float32)

    p["fc1_w"], p["fc1_b"] = lin(D_MODEL, FC_HID)
    p["fc2_w"], p["fc2_b"] = lin(FC_HID, 1)
    return p


def prepare_params(p):
    """One-time conversion: bf16 matmul weights, f32 biases/LN, padded fc2,
    positional encoding with the header token pre-folded into row 0."""
    bf16 = jnp.bfloat16
    f32 = jnp.float32
    fc2w_pad = jnp.zeros((FC_HID, OUT_LANES), f32).at[:, :1].set(p["fc2_w"])
    fc2b_pad = jnp.zeros((1, OUT_LANES), f32).at[:, :1].set(p["fc2_b"])
    return {
        "mr_w1": p["mr_w1"].astype(bf16), "mr_b1": p["mr_b1"].astype(f32),
        "mr_w2": p["mr_w2"].astype(bf16), "mr_b2": p["mr_b2"].astype(f32),
        "attn_wqkv": p["attn_wqkv"].astype(bf16), "attn_bqkv": p["attn_bqkv"].astype(f32),
        "attn_wo": p["attn_wo"].astype(bf16), "attn_bo": p["attn_bo"].astype(f32),
        "ln1_w": p["ln1_w"].astype(f32), "ln1_b": p["ln1_b"].astype(f32),
        "ff_w1": p["ff_w1"].astype(bf16), "ff_b1": p["ff_b1"].astype(f32),
        "ff_w2": p["ff_w2"].astype(bf16), "ff_b2": p["ff_b2"].astype(f32),
        "ln2_w": p["ln2_w"].astype(f32), "ln2_b": p["ln2_b"].astype(f32),
        "fc1_w": p["fc1_w"].astype(bf16), "fc1_b": p["fc1_b"].astype(f32),
        "fc2_w": fc2w_pad.astype(bf16), "fc2_b": fc2b_pad,
        "pos_hdr": p["pos_enc"][0].at[0, :].add(p["header_token"][0, 0, :]).astype(f32),
    }


# ---------------------------------------------------------------------------
if __name__ == "__main__":
    key = jax.random.PRNGKey(0)
    pk, k1, k2, k3 = jax.random.split(key, 4)
    params = prepare_params(init_params(pk))

    B, S = 2, 8
    # method embeddings provided directly in bf16 (the kernel's matmul dtype)
    method = jax.random.normal(k1, (B, 1, S, METHOD_DIM), jnp.bfloat16)
    category = jax.random.normal(k2, (B, 1, S, 64), jnp.float32)      # unused by forward
    duration = jax.random.normal(k3, (B, 1, S, DURATION_DIM), jnp.float32)
    attention_mask = jnp.ones((B, S), jnp.float32)
    attention_mask = attention_mask.at[1, 6:].set(0.0)                # pad tail of batch 1

    fwd = jax.jit(transformer_forward)
    final_out, attn_list = fwd(params, method, category, duration, attention_mask)
    jax.block_until_ready(final_out)
    jax.block_until_ready(attn_list[0])

    assert final_out.shape == (B, 1)
    assert attn_list[0].shape == (B, S + 1, S + 1)
    assert bool(jnp.all(jnp.isfinite(final_out)))
    assert bool(jnp.all(jnp.isfinite(attn_list[0])))
    print("KERNEL_OK")
</pallas_src>

<mosaic_0001>
module attributes {stable_mosaic.version = 11 : i64} {
  func.func @_fused_kernel(%arg0: i32, %arg1: memref<1x8x768xbf16, #tpu.memory_space<vmem>>, %arg2: memref<1x8x64xf32, #tpu.memory_space<vmem>>, %arg3: memref<1x1x16xf32, #tpu.memory_space<vmem>>, %arg4: memref<16x96xf32, #tpu.memory_space<vmem>>, %arg5: memref<768x384xbf16, #tpu.memory_space<vmem>>, %arg6: memref<1x384xf32, #tpu.memory_space<vmem>>, %arg7: memref<384x32xbf16, #tpu.memory_space<vmem>>, %arg8: memref<1x32xf32, #tpu.memory_space<vmem>>, %arg9: memref<96x288xbf16, #tpu.memory_space<vmem>>, %arg10: memref<1x288xf32, #tpu.memory_space<vmem>>, %arg11: memref<96x96xbf16, #tpu.memory_space<vmem>>, %arg12: memref<1x96xf32, #tpu.memory_space<vmem>>, %arg13: memref<1x96xf32, #tpu.memory_space<vmem>>, %arg14: memref<1x96xf32, #tpu.memory_space<vmem>>, %arg15: memref<96x2048xbf16, #tpu.memory_space<vmem>>, %arg16: memref<1x2048xf32, #tpu.memory_space<vmem>>, %arg17: memref<2048x96xbf16, #tpu.memory_space<vmem>>, %arg18: memref<1x96xf32, #tpu.memory_space<vmem>>, %arg19: memref<1x96xf32, #tpu.memory_space<vmem>>, %arg20: memref<1x96xf32, #tpu.memory_space<vmem>>, %arg21: memref<96x48xbf16, #tpu.memory_space<vmem>>, %arg22: memref<1x48xf32, #tpu.memory_space<vmem>>, %arg23: memref<48x128xbf16, #tpu.memory_space<vmem>>, %arg24: memref<1x128xf32, #tpu.memory_space<vmem>>, %arg25: memref<1x1x128xf32, #tpu.memory_space<vmem>>, %arg26: memref<1x16x16xf32, #tpu.memory_space<vmem>>) attributes {dimension_semantics = [#tpu.dimension_semantics<parallel>], iteration_bounds = array<i64: 2>, scalar_prefetch = 0 : i64, scratch_operands = 0 : i64, tpu.core_type = #tpu.core_type<tc>, window_params = [{transform_indices = @transform_0, window_bounds = array<i64: 1, 8, 768>}, {transform_indices = @transform_1, window_bounds = array<i64: 1, 8, 64>}, {transform_indices = @transform_2, window_bounds = array<i64: 1, 1, 16>}, {pipeline_mode = #tpu.pipeline_mode<synchronous>, transform_indices = @transform_3, window_bounds = array<i64: 16, 96>}, {pipeline_mode = #tpu.pipeline_mode<synchronous>, transform_indices = @transform_4, window_bounds = array<i64: 768, 384>}, {pipeline_mode = #tpu.pipeline_mode<synchronous>, transform_indices = @transform_5, window_bounds = array<i64: 1, 384>}, {pipeline_mode = #tpu.pipeline_mode<synchronous>, transform_indices = @transform_6, window_bounds = array<i64: 384, 32>}, {pipeline_mode = #tpu.pipeline_mode<synchronous>, transform_indices = @transform_7, window_bounds = array<i64: 1, 32>}, {pipeline_mode = #tpu.pipeline_mode<synchronous>, transform_indices = @transform_8, window_bounds = array<i64: 96, 288>}, {pipeline_mode = #tpu.pipeline_mode<synchronous>, transform_indices = @transform_9, window_bounds = array<i64: 1, 288>}, {pipeline_mode = #tpu.pipeline_mode<synchronous>, transform_indices = @transform_10, window_bounds = array<i64: 96, 96>}, {pipeline_mode = #tpu.pipeline_mode<synchronous>, transform_indices = @transform_11, window_bounds = array<i64: 1, 96>}, {pipeline_mode = #tpu.pipeline_mode<synchronous>, transform_indices = @transform_12, window_bounds = array<i64: 1, 96>}, {pipeline_mode = #tpu.pipeline_mode<synchronous>, transform_indices = @transform_13, window_bounds = array<i64: 1, 96>}, {pipeline_mode = #tpu.pipeline_mode<synchronous>, transform_indices = @transform_14, window_bounds = array<i64: 96, 2048>}, {pipeline_mode = #tpu.pipeline_mode<synchronous>, transform_indices = @transform_15, window_bounds = array<i64: 1, 2048>}, {pipeline_mode = #tpu.pipeline_mode<synchronous>, transform_indices = @transform_16, window_bounds = array<i64: 2048, 96>}, {pipeline_mode = #tpu.pipeline_mode<synchronous>, transform_indices = @transform_17, window_bounds = array<i64: 1, 96>}, {pipeline_mode = #tpu.pipeline_mode<synchronous>, transform_indices = @transform_18, window_bounds = array<i64: 1, 96>}, {pipeline_mode = #tpu.pipeline_mode<synchronous>, transform_indices = @transform_19, window_bounds = array<i64: 1, 96>}, {pipeline_mode = #tpu.pipeline_mode<synchronous>, transform_indices = @transform_20, window_bounds = array<i64: 96, 48>}, {pipeline_mode = #tpu.pipeline_mode<synchronous>, transform_indices = @transform_21, window_bounds = array<i64: 1, 48>}, {pipeline_mode = #tpu.pipeline_mode<synchronous>, transform_indices = @transform_22, window_bounds = array<i64: 48, 128>}, {pipeline_mode = #tpu.pipeline_mode<synchronous>, transform_indices = @transform_23, window_bounds = array<i64: 1, 128>}, {transform_indices = @transform_24, window_bounds = array<i64: 1, 1, 128>}, {transform_indices = @transform_25, window_bounds = array<i64: 1, 16, 16>}]} {
    %c0 = arith.constant 0 : index
    %c0_0 = arith.constant 0 : index
    %c0_1 = arith.constant 0 : index
    %0 = vector.load %arg1[%c0, %c0_0, %c0_1] : memref<1x8x768xbf16, #tpu.memory_space<vmem>>, vector<1x8x768xbf16>
    %1 = vector.shape_cast %0 : vector<1x8x768xbf16> to vector<8x768xbf16>
    %c0_2 = arith.constant 0 : index
    %c0_3 = arith.constant 0 : index
    %2 = vector.load %arg5[%c0_2, %c0_3] : memref<768x384xbf16, #tpu.memory_space<vmem>>, vector<768x384xbf16>
    %cst = arith.constant dense<0.000000e+00> : vector<8x384xf32>
    %3 = tpu.matmul %1, %2, %cst {dimension_numbers = #tpu.dot_dimension_numbers<[1], [0], [0], [1], [0, 0, 1, 1], [], []>} : vector<8x768xbf16>, vector<768x384xbf16>, vector<8x384xf32> -> vector<8x384xf32>
    %c0_4 = arith.constant 0 : index
    %c0_5 = arith.constant 0 : index
    %4 = vector.load %arg6[%c0_4, %c0_5] : memref<1x384xf32, #tpu.memory_space<vmem>>, vector<1x384xf32>
    %5 = vector.broadcast %4 : vector<1x384xf32> to vector<8x384xf32>
    %6 = arith.addf %3, %5 : vector<8x384xf32>
    %cst_6 = arith.constant 0.000000e+00 : f32
    %7 = vector.broadcast %cst_6 : f32 to vector<8x384xf32>
    %8 = arith.maximumf %6, %7 : vector<8x384xf32>
    %9 = arith.truncf %8 : vector<8x384xf32> to vector<8x384xbf16>
    %c0_7 = arith.constant 0 : index
    %c0_8 = arith.constant 0 : index
    %10 = vector.load %arg7[%c0_7, %c0_8] : memref<384x32xbf16, #tpu.memory_space<vmem>>, vector<384x32xbf16>
    %cst_9 = arith.constant dense<0.000000e+00> : vector<8x32xf32>
    %11 = tpu.matmul %9, %10, %cst_9 {dimension_numbers = #tpu.dot_dimension_numbers<[1], [0], [0], [1], [0, 0, 1, 1], [], []>} : vector<8x384xbf16>, vector<384x32xbf16>, vector<8x32xf32> -> vector<8x32xf32>
    %c0_10 = arith.constant 0 : index
    %c0_11 = arith.constant 0 : index
    %12 = vector.load %arg8[%c0_10, %c0_11] : memref<1x32xf32, #tpu.memory_space<vmem>>, vector<1x32xf32>
    %13 = vector.broadcast %12 : vector<1x32xf32> to vector<8x32xf32>
    %14 = arith.addf %11, %13 : vector<8x32xf32>
    %cst_12 = arith.constant 0.000000e+00 : f32
    %15 = vector.broadcast %cst_12 : f32 to vector<8x32xf32>
    %16 = arith.maximumf %14, %15 : vector<8x32xf32>
    %17 = vector.shape_cast %16 : vector<8x32xf32> to vector<1x8x32xf32>
    %c0_13 = arith.constant 0 : index
    %c0_14 = arith.constant 0 : index
    %c0_15 = arith.constant 0 : index
    %18 = vector.load %arg2[%c0_13, %c0_14, %c0_15] : memref<1x8x64xf32, #tpu.memory_space<vmem>>, vector<1x8x64xf32>
    %19 = tpu.concatenate %17, %18 in 2 : vector<1x8x32xf32>, vector<1x8x64xf32> -> vector<1x8x96xf32>
    %cst_16 = arith.constant 0.000000e+00 : f32
    %20 = vector.broadcast %cst_16 : f32 to vector<1x1x96xf32>
    %cst_17 = arith.constant 0.000000e+00 : f32
    %21 = vector.broadcast %cst_17 : f32 to vector<1x7x96xf32>
    %22 = tpu.concatenate %20, %19, %21 in 1 : vector<1x1x96xf32>, vector<1x8x96xf32>, vector<1x7x96xf32> -> vector<1x16x96xf32>
    %c0_18 = arith.constant 0 : index
    %c0_19 = arith.constant 0 : index
    %23 = vector.load %arg4[%c0_18, %c0_19] : memref<16x96xf32, #tpu.memory_space<vmem>>, vector<16x96xf32>
    %24 = vector.shape_cast %23 : vector<16x96xf32> to vector<1x16x96xf32>
    %25 = arith.addf %22, %24 : vector<1x16x96xf32>
    %26 = vector.shape_cast %25 : vector<1x16x96xf32> to vector<16x96xf32>
    %27 = arith.truncf %26 : vector<16x96xf32> to vector<16x96xbf16>
    %c0_20 = arith.constant 0 : index
    %c0_21 = arith.constant 0 : index
    %28 = vector.load %arg9[%c0_20, %c0_21] : memref<96x288xbf16, #tpu.memory_space<vmem>>, vector<96x288xbf16>
    %cst_22 = arith.constant dense<0.000000e+00> : vector<16x288xf32>
    %29 = tpu.matmul %27, %28, %cst_22 {dimension_numbers = #tpu.dot_dimension_numbers<[1], [0], [0], [1], [0, 0, 1, 1], [], []>} : vector<16x96xbf16>, vector<96x288xbf16>, vector<16x288xf32> -> vector<16x288xf32>
    %c0_23 = arith.constant 0 : index
    %c0_24 = arith.constant 0 : index
    %30 = vector.load %arg10[%c0_23, %c0_24] : memref<1x288xf32, #tpu.memory_space<vmem>>, vector<1x288xf32>
    %31 = vector.broadcast %30 : vector<1x288xf32> to vector<16x288xf32>
    %32 = arith.addf %29, %31 : vector<16x288xf32>
    %33 = vector.extract_strided_slice %32 {offsets = [0, 0], sizes = [16, 24], strides = [1, 1]} : vector<16x288xf32> to vector<16x24xf32>
    %34 = vector.shape_cast %33 : vector<16x24xf32> to vector<1x16x24xf32>
    %35 = vector.extract_strided_slice %32 {offsets = [0, 96], sizes = [16, 24], strides = [1, 1]} : vector<16x288xf32> to vector<16x24xf32>
    %36 = vector.shape_cast %35 : vector<16x24xf32> to vector<1x16x24xf32>
    %37 = vector.extract_strided_slice %32 {offsets = [0, 192], sizes = [16, 24], strides = [1, 1]} : vector<16x288xf32> to vector<16x24xf32>
    %38 = vector.shape_cast %37 : vector<16x24xf32> to vector<1x16x24xf32>
    %39 = vector.extract_strided_slice %32 {offsets = [0, 24], sizes = [16, 24], strides = [1, 1]} : vector<16x288xf32> to vector<16x24xf32>
    %40 = vector.shape_cast %39 : vector<16x24xf32> to vector<1x16x24xf32>
    %41 = vector.extract_strided_slice %32 {offsets = [0, 120], sizes = [16, 24], strides = [1, 1]} : vector<16x288xf32> to vector<16x24xf32>
    %42 = vector.shape_cast %41 : vector<16x24xf32> to vector<1x16x24xf32>
    %43 = vector.extract_strided_slice %32 {offsets = [0, 216], sizes = [16, 24], strides = [1, 1]} : vector<16x288xf32> to vector<16x24xf32>
    %44 = vector.shape_cast %43 : vector<16x24xf32> to vector<1x16x24xf32>
    %45 = vector.extract_strided_slice %32 {offsets = [0, 48], sizes = [16, 24], strides = [1, 1]} : vector<16x288xf32> to vector<16x24xf32>
    %46 = vector.shape_cast %45 : vector<16x24xf32> to vector<1x16x24xf32>
    %47 = vector.extract_strided_slice %32 {offsets = [0, 144], sizes = [16, 24], strides = [1, 1]} : vector<16x288xf32> to vector<16x24xf32>
    %48 = vector.shape_cast %47 : vector<16x24xf32> to vector<1x16x24xf32>
    %49 = vector.extract_strided_slice %32 {offsets = [0, 240], sizes = [16, 24], strides = [1, 1]} : vector<16x288xf32> to vector<16x24xf32>
    %50 = vector.shape_cast %49 : vector<16x24xf32> to vector<1x16x24xf32>
    %51 = vector.extract_strided_slice %32 {offsets = [0, 72], sizes = [16, 24], strides = [1, 1]} : vector<16x288xf32> to vector<16x24xf32>
    %52 = vector.shape_cast %51 : vector<16x24xf32> to vector<1x16x24xf32>
    %53 = vector.extract_strided_slice %32 {offsets = [0, 168], sizes = [16, 24], strides = [1, 1]} : vector<16x288xf32> to vector<16x24xf32>
    %54 = vector.shape_cast %53 : vector<16x24xf32> to vector<1x16x24xf32>
    %55 = vector.extract_strided_slice %32 {offsets = [0, 264], sizes = [16, 24], strides = [1, 1]} : vector<16x288xf32> to vector<16x24xf32>
    %56 = vector.shape_cast %55 : vector<16x24xf32> to vector<1x16x24xf32>
    %57 = tpu.concatenate %34, %40, %46, %52 in 0 : vector<1x16x24xf32>, vector<1x16x24xf32>, vector<1x16x24xf32>, vector<1x16x24xf32> -> vector<4x16x24xf32>
    %58 = arith.truncf %57 : vector<4x16x24xf32> to vector<4x16x24xbf16>
    %59 = tpu.concatenate %36, %42, %48, %54 in 0 : vector<1x16x24xf32>, vector<1x16x24xf32>, vector<1x16x24xf32>, vector<1x16x24xf32> -> vector<4x16x24xf32>
    %60 = arith.truncf %59 : vector<4x16x24xf32> to vector<4x16x24xbf16>
    %61 = tpu.concatenate %38, %44, %50, %56 in 0 : vector<1x16x24xf32>, vector<1x16x24xf32>, vector<1x16x24xf32>, vector<1x16x24xf32> -> vector<4x16x24xf32>
    %62 = arith.truncf %61 : vector<4x16x24xf32> to vector<4x16x24xbf16>
    %c0_25 = arith.constant 0 : index
    %c0_26 = arith.constant 0 : index
    %c0_27 = arith.constant 0 : index
    %63 = vector.load %arg3[%c0_25, %c0_26, %c0_27] : memref<1x1x16xf32, #tpu.memory_space<vmem>>, vector<1x1x16xf32>
    %64 = tpu.concatenate %63, %63, %63, %63 in 0 : vector<1x1x16xf32>, vector<1x1x16xf32>, vector<1x1x16xf32>, vector<1x1x16xf32> -> vector<4x1x16xf32>
    "tpu.trace_start"() <{level = 10 : i32, message = "bqd,bkd->bqk"}> : () -> ()
    %cst_28 = arith.constant dense<0.000000e+00> : vector<4x16x16xf32>
    %65 = tpu.matmul %58, %60, %cst_28 {dimension_numbers = #tpu.dot_dimension_numbers<[2], [2], [1], [1], [0, 0, 0, 1, 1, 1], [0], [0]>} : vector<4x16x24xbf16>, vector<4x16x24xbf16>, vector<4x16x16xf32> -> vector<4x16x16xf32>
    "tpu.trace_stop"() : () -> ()
    %cst_29 = arith.constant 0.204124153 : f32
    %66 = vector.broadcast %cst_29 : f32 to vector<4x16x16xf32>
    %67 = arith.mulf %65, %66 : vector<4x16x16xf32>
    %68 = vector.broadcast %64 : vector<4x1x16xf32> to vector<4x16x16xf32>
    %69 = arith.addf %67, %68 : vector<4x16x16xf32>
    %cst_30 = arith.constant dense<0xFF800000> : vector<4x16xf32>
    %70 = vector.multi_reduction <maximumf>, %69, %cst_30 [2] : vector<4x16x16xf32> to vector<4x16xf32>
    %71 = vector.shape_cast %70 : vector<4x16xf32> to vector<4x16x1xf32>
    %72 = vector.broadcast %71 : vector<4x16x1xf32> to vector<4x16x16xf32>
    %73 = arith.subf %69, %72 : vector<4x16x16xf32>
    %74 = math.exp %73 : vector<4x16x16xf32>
    %cst_31 = arith.constant dense<0.000000e+00> : vector<4x16xf32>
    %75 = vector.multi_reduction <add>, %74, %cst_31 [2] : vector<4x16x16xf32> to vector<4x16xf32>
    %76 = vector.shape_cast %75 : vector<4x16xf32> to vector<4x16x1xf32>
    %77 = vector.broadcast %76 : vector<4x16x1xf32> to vector<4x16x16xf32>
    %78 = arith.divf %74, %77 : vector<4x16x16xf32>
    %79 = vector.extract_strided_slice %78 {offsets = [0, 0, 0], sizes = [1, 16, 16], strides = [1, 1, 1]} : vector<4x16x16xf32> to vector<1x16x16xf32>
    %80 = vector.extract_strided_slice %78 {offsets = [1, 0, 0], sizes = [1, 16, 16], strides = [1, 1, 1]} : vector<4x16x16xf32> to vector<1x16x16xf32>
    %81 = arith.addf %79, %80 : vector<1x16x16xf32>
    %82 = vector.extract_strided_slice %78 {offsets = [2, 0, 0], sizes = [1, 16, 16], strides = [1, 1, 1]} : vector<4x16x16xf32> to vector<1x16x16xf32>
    %83 = arith.addf %81, %82 : vector<1x16x16xf32>
    %84 = vector.extract_strided_slice %78 {offsets = [3, 0, 0], sizes = [1, 16, 16], strides = [1, 1, 1]} : vector<4x16x16xf32> to vector<1x16x16xf32>
    %85 = arith.addf %83, %84 : vector<1x16x16xf32>
    %cst_32 = arith.constant 2.500000e-01 : f32
    %86 = vector.broadcast %cst_32 : f32 to vector<1x16x16xf32>
    %87 = arith.mulf %85, %86 : vector<1x16x16xf32>
    %c0_33 = arith.constant 0 : index
    %c0_34 = arith.constant 0 : index
    %c0_35 = arith.constant 0 : index
    %88 = vector.load %arg26[%c0_33, %c0_34, %c0_35] : memref<1x16x16xf32, #tpu.memory_space<vmem>>, vector<1x16x16xf32>
    tpu.vector_store %arg26[%c0_33, %c0_34, %c0_35], %87 {strides = array<i32>} : memref<1x16x16xf32, #tpu.memory_space<vmem>>, vector<1x16x16xf32>,
    %89 = arith.truncf %78 : vector<4x16x16xf32> to vector<4x16x16xbf16>
    "tpu.trace_start"() <{level = 10 : i32, message = "bqk,bkd->bqd"}> : () -> ()
    %cst_36 = arith.constant dense<0.000000e+00> : vector<4x16x24xf32>
    %90 = tpu.matmul %89, %62, %cst_36 {dimension_numbers = #tpu.dot_dimension_numbers<[2], [1], [1], [2], [0, 0, 0, 1, 1, 2], [0], [0]>} : vector<4x16x16xbf16>, vector<4x16x24xbf16>, vector<4x16x24xf32> -> vector<4x16x24xf32>
    "tpu.trace_stop"() : () -> ()
    %91 = vector.extract_strided_slice %90 {offsets = [0, 0, 0], sizes = [1, 16, 24], strides = [1, 1, 1]} : vector<4x16x24xf32> to vector<1x16x24xf32>
    %92 = vector.shape_cast %91 : vector<1x16x24xf32> to vector<16x24xf32>
    %93 = vector.extract_strided_slice %90 {offsets = [1, 0, 0], sizes = [1, 16, 24], strides = [1, 1, 1]} : vector<4x16x24xf32> to vector<1x16x24xf32>
    %94 = vector.shape_cast %93 : vector<1x16x24xf32> to vector<16x24xf32>
    %95 = vector.extract_strided_slice %90 {offsets = [2, 0, 0], sizes = [1, 16, 24], strides = [1, 1, 1]} : vector<4x16x24xf32> to vector<1x16x24xf32>
    %96 = vector.shape_cast %95 : vector<1x16x24xf32> to vector<16x24xf32>
    %97 = vector.extract_strided_slice %90 {offsets = [3, 0, 0], sizes = [1, 16, 24], strides = [1, 1, 1]} : vector<4x16x24xf32> to vector<1x16x24xf32>
    %98 = vector.shape_cast %97 : vector<1x16x24xf32> to vector<16x24xf32>
    %99 = tpu.concatenate %92, %94, %96, %98 in 1 : vector<16x24xf32>, vector<16x24xf32>, vector<16x24xf32>, vector<16x24xf32> -> vector<16x96xf32>
    %100 = arith.truncf %99 : vector<16x96xf32> to vector<16x96xbf16>
    %c0_37 = arith.constant 0 : index
    %c0_38 = arith.constant 0 : index
    %101 = vector.load %arg11[%c0_37, %c0_38] : memref<96x96xbf16, #tpu.memory_space<vmem>>, vector<96x96xbf16>
    %cst_39 = arith.constant dense<0.000000e+00> : vector<16x96xf32>
    %102 = tpu.matmul %100, %101, %cst_39 {dimension_numbers = #tpu.dot_dimension_numbers<[1], [0], [0], [1], [0, 0, 1, 1], [], []>} : vector<16x96xbf16>, vector<96x96xbf16>, vector<16x96xf32> -> vector<16x96xf32>
    %c0_40 = arith.constant 0 : index
    %c0_41 = arith.constant 0 : index
    %103 = vector.load %arg12[%c0_40, %c0_41] : memref<1x96xf32, #tpu.memory_space<vmem>>, vector<1x96xf32>
    %104 = vector.broadcast %103 : vector<1x96xf32> to vector<16x96xf32>
    %105 = arith.addf %102, %104 : vector<16x96xf32>
    %106 = arith.addf %26, %105 : vector<16x96xf32>
    %cst_42 = arith.constant dense<0.000000e+00> : vector<16xf32>
    %107 = vector.multi_reduction <add>, %106, %cst_42 [1] : vector<16x96xf32> to vector<16xf32>
    %108 = vector.shape_cast %107 : vector<16xf32> to vector<16x1xf32>
    %cst_43 = arith.constant 9.600000e+01 : f32
    %109 = vector.broadcast %cst_43 : f32 to vector<16x1xf32>
    %110 = arith.divf %108, %109 : vector<16x1xf32>
    %111 = vector.broadcast %110 : vector<16x1xf32> to vector<16x96xf32>
    %112 = arith.subf %106, %111 : vector<16x96xf32>
    %113 = arith.mulf %112, %112 : vector<16x96xf32>
    %cst_44 = arith.constant dense<0.000000e+00> : vector<16xf32>
    %114 = vector.multi_reduction <add>, %113, %cst_44 [1] : vector<16x96xf32> to vector<16xf32>
    %115 = vector.shape_cast %114 : vector<16xf32> to vector<16x1xf32>
    %cst_45 = arith.constant 9.600000e+01 : f32
    %116 = vector.broadcast %cst_45 : f32 to vector<16x1xf32>
    %117 = arith.divf %115, %116 : vector<16x1xf32>
    %118 = vector.broadcast %110 : vector<16x1xf32> to vector<16x96xf32>
    %119 = arith.subf %106, %118 : vector<16x96xf32>
    %cst_46 = arith.constant 9.99999974E-6 : f32
    %120 = vector.broadcast %cst_46 : f32 to vector<16x1xf32>
    %121 = arith.addf %117, %120 : vector<16x1xf32>
    %122 = math.rsqrt %121 : vector<16x1xf32>
    %123 = vector.broadcast %122 : vector<16x1xf32> to vector<16x96xf32>
    %124 = arith.mulf %119, %123 : vector<16x96xf32>
    %c0_47 = arith.constant 0 : index
    %c0_48 = arith.constant 0 : index
    %125 = vector.load %arg13[%c0_47, %c0_48] : memref<1x96xf32, #tpu.memory_space<vmem>>, vector<1x96xf32>
    %126 = vector.broadcast %125 : vector<1x96xf32> to vector<16x96xf32>
    %127 = arith.mulf %124, %126 : vector<16x96xf32>
    %c0_49 = arith.constant 0 : index
    %c0_50 = arith.constant 0 : index
    %128 = vector.load %arg14[%c0_49, %c0_50] : memref<1x96xf32, #tpu.memory_space<vmem>>, vector<1x96xf32>
    %129 = vector.broadcast %128 : vector<1x96xf32> to vector<16x96xf32>
    %130 = arith.addf %127, %129 : vector<16x96xf32>
    %131 = arith.truncf %130 : vector<16x96xf32> to vector<16x96xbf16>
    %cst_51 = arith.constant 0.000000e+00 : f32
    %132 = vector.broadcast %cst_51 : f32 to vector<16x96xf32>
    %c0_52 = arith.constant 0 : index
    %c0_53 = arith.constant 0 : index
    %133 = vector.load %arg15[%c0_52, %c0_53] : memref<96x2048xbf16, #tpu.memory_space<vmem>>, vector<96x512xbf16>
    %cst_54 = arith.constant dense<0.000000e+00> : vector<16x512xf32>
    %134 = tpu.matmul %131, %133, %cst_54 {dimension_numbers = #tpu.dot_dimension_numbers<[1], [0], [0], [1], [0, 0, 1, 1], [], []>} : vector<16x96xbf16>, vector<96x512xbf16>, vector<16x512xf32> -> vector<16x512xf32>
    %c0_55 = arith.constant 0 : index
    %c0_56 = arith.constant 0 : index
    %135 = vector.load %arg16[%c0_55, %c0_56] : memref<1x2048xf32, #tpu.memory_space<vmem>>, vector<1x512xf32>
    %136 = vector.broadcast %135 : vector<1x512xf32> to vector<16x512xf32>
    %137 = arith.addf %134, %136 : vector<16x512xf32>
    %cst_57 = arith.constant 0.000000e+00 : f32
    %138 = vector.broadcast %cst_57 : f32 to vector<16x512xf32>
    %139 = arith.maximumf %137, %138 : vector<16x512xf32>
    %140 = arith.truncf %139 : vector<16x512xf32> to vector<16x512xbf16>
    %c0_58 = arith.constant 0 : index
    %c0_59 = arith.constant 0 : index
    %141 = vector.load %arg17[%c0_58, %c0_59] : memref<2048x96xbf16, #tpu.memory_space<vmem>>, vector<512x96xbf16>
    %cst_60 = arith.constant dense<0.000000e+00> : vector<16x96xf32>
    %142 = tpu.matmul %140, %141, %cst_60 {dimension_numbers = #tpu.dot_dimension_numbers<[1], [0], [0], [1], [0, 0, 1, 1], [], []>} : vector<16x512xbf16>, vector<512x96xbf16>, vector<16x96xf32> -> vector<16x96xf32>
    %143 = arith.addf %132, %142 : vector<16x96xf32>
    %c0_61 = arith.constant 0 : index
    %c512 = arith.constant 512 : index
    %144 = vector.load %arg15[%c0_61, %c512] : memref<96x2048xbf16, #tpu.memory_space<vmem>>, vector<96x512xbf16>
    %cst_62 = arith.constant dense<0.000000e+00> : vector<16x512xf32>
    %145 = tpu.matmul %131, %144, %cst_62 {dimension_numbers = #tpu.dot_dimension_numbers<[1], [0], [0], [1], [0, 0, 1, 1], [], []>} : vector<16x96xbf16>, vector<96x512xbf16>, vector<16x512xf32> -> vector<16x512xf32>
    %c0_63 = arith.constant 0 : index
    %c512_64 = arith.constant 512 : index
    %146 = vector.load %arg16[%c0_63, %c512_64] : memref<1x2048xf32, #tpu.memory_space<vmem>>, vector<1x512xf32>
    %147 = vector.broadcast %146 : vector<1x512xf32> to vector<16x512xf32>
    %148 = arith.addf %145, %147 : vector<16x512xf32>
    %cst_65 = arith.constant 0.000000e+00 : f32
    %149 = vector.broadcast %cst_65 : f32 to vector<16x512xf32>
    %150 = arith.maximumf %148, %149 : vector<16x512xf32>
    %151 = arith.truncf %150 : vector<16x512xf32> to vector<16x512xbf16>
    %c512_66 = arith.constant 512 : index
    %c0_67 = arith.constant 0 : index
    %152 = vector.load %arg17[%c512_66, %c0_67] : memref<2048x96xbf16, #tpu.memory_space<vmem>>, vector<512x96xbf16>
    %cst_68 = arith.constant dense<0.000000e+00> : vector<16x96xf32>
    %153 = tpu.matmul %151, %152, %cst_68 {dimension_numbers = #tpu.dot_dimension_numbers<[1], [0], [0], [1], [0, 0, 1, 1], [], []>} : vector<16x512xbf16>, vector<512x96xbf16>, vector<16x96xf32> -> vector<16x96xf32>
    %154 = arith.addf %143, %153 : vector<16x96xf32>
    %c0_69 = arith.constant 0 : index
    %c1024 = arith.constant 1024 : index
    %155 = vector.load %arg15[%c0_69, %c1024] : memref<96x2048xbf16, #tpu.memory_space<vmem>>, vector<96x512xbf16>
    %cst_70 = arith.constant dense<0.000000e+00> : vector<16x512xf32>
    %156 = tpu.matmul %131, %155, %cst_70 {dimension_numbers = #tpu.dot_dimension_numbers<[1], [0], [0], [1], [0, 0, 1, 1], [], []>} : vector<16x96xbf16>, vector<96x512xbf16>, vector<16x512xf32> -> vector<16x512xf32>
    %c0_71 = arith.constant 0 : index
    %c1024_72 = arith.constant 1024 : index
    %157 = vector.load %arg16[%c0_71, %c1024_72] : memref<1x2048xf32, #tpu.memory_space<vmem>>, vector<1x512xf32>
    %158 = vector.broadcast %157 : vector<1x512xf32> to vector<16x512xf32>
    %159 = arith.addf %156, %158 : vector<16x512xf32>
    %cst_73 = arith.constant 0.000000e+00 : f32
    %160 = vector.broadcast %cst_73 : f32 to vector<16x512xf32>
    %161 = arith.maximumf %159, %160 : vector<16x512xf32>
    %162 = arith.truncf %161 : vector<16x512xf32> to vector<16x512xbf16>
    %c1024_74 = arith.constant 1024 : index
    %c0_75 = arith.constant 0 : index
    %163 = vector.load %arg17[%c1024_74, %c0_75] : memref<2048x96xbf16, #tpu.memory_space<vmem>>, vector<512x96xbf16>
    %cst_76 = arith.constant dense<0.000000e+00> : vector<16x96xf32>
    %164 = tpu.matmul %162, %163, %cst_76 {dimension_numbers = #tpu.dot_dimension_numbers<[1], [0], [0], [1], [0, 0, 1, 1], [], []>} : vector<16x512xbf16>, vector<512x96xbf16>, vector<16x96xf32> -> vector<16x96xf32>
    %165 = arith.addf %154, %164 : vector<16x96xf32>
    %c0_77 = arith.constant 0 : index
    %c1536 = arith.constant 1536 : index
    %166 = vector.load %arg15[%c0_77, %c1536] : memref<96x2048xbf16, #tpu.memory_space<vmem>>, vector<96x512xbf16>
    %cst_78 = arith.constant dense<0.000000e+00> : vector<16x512xf32>
    %167 = tpu.matmul %131, %166, %cst_78 {dimension_numbers = #tpu.dot_dimension_numbers<[1], [0], [0], [1], [0, 0, 1, 1], [], []>} : vector<16x96xbf16>, vector<96x512xbf16>, vector<16x512xf32> -> vector<16x512xf32>
    %c0_79 = arith.constant 0 : index
    %c1536_80 = arith.constant 1536 : index
    %168 = vector.load %arg16[%c0_79, %c1536_80] : memref<1x2048xf32, #tpu.memory_space<vmem>>, vector<1x512xf32>
    %169 = vector.broadcast %168 : vector<1x512xf32> to vector<16x512xf32>
    %170 = arith.addf %167, %169 : vector<16x512xf32>
    %cst_81 = arith.constant 0.000000e+00 : f32
    %171 = vector.broadcast %cst_81 : f32 to vector<16x512xf32>
    %172 = arith.maximumf %170, %171 : vector<16x512xf32>
    %173 = arith.truncf %172 : vector<16x512xf32> to vector<16x512xbf16>
    %c1536_82 = arith.constant 1536 : index
    %c0_83 = arith.constant 0 : index
    %174 = vector.load %arg17[%c1536_82, %c0_83] : memref<2048x96xbf16, #tpu.memory_space<vmem>>, vector<512x96xbf16>
    %cst_84 = arith.constant dense<0.000000e+00> : vector<16x96xf32>
    %175 = tpu.matmul %173, %174, %cst_84 {dimension_numbers = #tpu.dot_dimension_numbers<[1], [0], [0], [1], [0, 0, 1, 1], [], []>} : vector<16x512xbf16>, vector<512x96xbf16>, vector<16x96xf32> -> vector<16x96xf32>
    %176 = arith.addf %165, %175 : vector<16x96xf32>
    %c0_85 = arith.constant 0 : index
    %c0_86 = arith.constant 0 : index
    %177 = vector.load %arg18[%c0_85, %c0_86] : memref<1x96xf32, #tpu.memory_space<vmem>>, vector<1x96xf32>
    %178 = vector.broadcast %177 : vector<1x96xf32> to vector<16x96xf32>
    %179 = arith.addf %176, %178 : vector<16x96xf32>
    %180 = arith.addf %130, %179 : vector<16x96xf32>
    %cst_87 = arith.constant dense<0.000000e+00> : vector<16xf32>
    %181 = vector.multi_reduction <add>, %180, %cst_87 [1] : vector<16x96xf32> to vector<16xf32>
    %182 = vector.shape_cast %181 : vector<16xf32> to vector<16x1xf32>
    %cst_88 = arith.constant 9.600000e+01 : f32
    %183 = vector.broadcast %cst_88 : f32 to vector<16x1xf32>
    %184 = arith.divf %182, %183 : vector<16x1xf32>
    %185 = vector.broadcast %184 : vector<16x1xf32> to vector<16x96xf32>
    %186 = arith.subf %180, %185 : vector<16x96xf32>
    %187 = arith.mulf %186, %186 : vector<16x96xf32>
    %cst_89 = arith.constant dense<0.000000e+00> : vector<16xf32>
    %188 = vector.multi_reduction <add>, %187, %cst_89 [1] : vector<16x96xf32> to vector<16xf32>
    %189 = vector.shape_cast %188 : vector<16xf32> to vector<16x1xf32>
    %cst_90 = arith.constant 9.600000e+01 : f32
    %190 = vector.broadcast %cst_90 : f32 to vector<16x1xf32>
    %191 = arith.divf %189, %190 : vector<16x1xf32>
    %192 = vector.broadcast %184 : vector<16x1xf32> to vector<16x96xf32>
    %193 = arith.subf %180, %192 : vector<16x96xf32>
    %cst_91 = arith.constant 9.99999974E-6 : f32
    %194 = vector.broadcast %cst_91 : f32 to vector<16x1xf32>
    %195 = arith.addf %191, %194 : vector<16x1xf32>
    %196 = math.rsqrt %195 : vector<16x1xf32>
    %197 = vector.broadcast %196 : vector<16x1xf32> to vector<16x96xf32>
    %198 = arith.mulf %193, %197 : vector<16x96xf32>
    %c0_92 = arith.constant 0 : index
    %c0_93 = arith.constant 0 : index
    %199 = vector.load %arg19[%c0_92, %c0_93] : memref<1x96xf32, #tpu.memory_space<vmem>>, vector<1x96xf32>
    %200 = vector.broadcast %199 : vector<1x96xf32> to vector<16x96xf32>
    %201 = arith.mulf %198, %200 : vector<16x96xf32>
    %c0_94 = arith.constant 0 : index
    %c0_95 = arith.constant 0 : index
    %202 = vector.load %arg20[%c0_94, %c0_95] : memref<1x96xf32, #tpu.memory_space<vmem>>, vector<1x96xf32>
    %203 = vector.broadcast %202 : vector<1x96xf32> to vector<16x96xf32>
    %204 = arith.addf %201, %203 : vector<16x96xf32>
    %205 = vector.shape_cast %204 : vector<16x96xf32> to vector<1x16x96xf32>
    %206 = vector.extract_strided_slice %205 {offsets = [0, 0, 0], sizes = [1, 1, 96], strides = [1, 1, 1]} : vector<1x16x96xf32> to vector<1x1x96xf32>
    %207 = vector.shape_cast %206 : vector<1x1x96xf32> to vector<1x96xf32>
    %208 = arith.truncf %207 : vector<1x96xf32> to vector<1x96xbf16>
    %c0_96 = arith.constant 0 : index
    %c0_97 = arith.constant 0 : index
    %209 = vector.load %arg21[%c0_96, %c0_97] : memref<96x48xbf16, #tpu.memory_space<vmem>>, vector<96x48xbf16>
    %cst_98 = arith.constant dense<0.000000e+00> : vector<1x48xf32>
    %210 = tpu.matmul %208, %209, %cst_98 {dimension_numbers = #tpu.dot_dimension_numbers<[1], [0], [0], [1], [0, 0, 1, 1], [], []>} : vector<1x96xbf16>, vector<96x48xbf16>, vector<1x48xf32> -> vector<1x48xf32>
    %c0_99 = arith.constant 0 : index
    %c0_100 = arith.constant 0 : index
    %211 = vector.load %arg22[%c0_99, %c0_100] : memref<1x48xf32, #tpu.memory_space<vmem>>, vector<1x48xf32>
    %212 = arith.addf %210, %211 : vector<1x48xf32>
    %213 = arith.truncf %212 : vector<1x48xf32> to vector<1x48xbf16>
    %c0_101 = arith.constant 0 : index
    %c0_102 = arith.constant 0 : index
    %214 = vector.load %arg23[%c0_101, %c0_102] : memref<48x128xbf16, #tpu.memory_space<vmem>>, vector<48x128xbf16>
    %cst_103 = arith.constant dense<0.000000e+00> : vector<1x128xf32>
    %215 = tpu.matmul %213, %214, %cst_103 {dimension_numbers = #tpu.dot_dimension_numbers<[1], [0], [0], [1], [0, 0, 1, 1], [], []>} : vector<1x48xbf16>, vector<48x128xbf16>, vector<1x128xf32> -> vector<1x128xf32>
    %c0_104 = arith.constant 0 : index
    %c0_105 = arith.constant 0 : index
    %216 = vector.load %arg24[%c0_104, %c0_105] : memref<1x128xf32, #tpu.memory_space<vmem>>, vector<1x128xf32>
    %217 = arith.addf %215, %216 : vector<1x128xf32>
    %218 = vector.shape_cast %217 : vector<1x128xf32> to vector<1x1x128xf32>
    %c0_106 = arith.constant 0 : index
    %c0_107 = arith.constant 0 : index
    %c0_108 = arith.constant 0 : index
    %219 = vector.load %arg25[%c0_106, %c0_107, %c0_108] : memref<1x1x128xf32, #tpu.memory_space<vmem>>, vector<1x1x128xf32>
    tpu.vector_store %arg25[%c0_106, %c0_107, %c0_108], %218 {strides = array<i32>} : memref<1x1x128xf32, #tpu.memory_space<vmem>>, vector<1x1x128xf32>,
    return
  }
  func.func @transform_0(%arg0: i32) -> (i32, i32, i32) {
    %c0_i32 = arith.constant 0 : i32
    %c0_i32_0 = arith.constant 0 : i32
    %c0_i32_1 = arith.constant 0 : i32
    return %arg0, %c0_i32, %c0_i32_0 : i32, i32, i32
  }
  func.func @transform_1(%arg0: i32) -> (i32, i32, i32) {
    %c0_i32 = arith.constant 0 : i32
    %c0_i32_0 = arith.constant 0 : i32
    %c0_i32_1 = arith.constant 0 : i32
    return %arg0, %c0_i32, %c0_i32_0 : i32, i32, i32
  }
  func.func @transform_2(%arg0: i32) -> (i32, i32, i32) {
    %c0_i32 = arith.constant 0 : i32
    %c0_i32_0 = arith.constant 0 : i32
    %c0_i32_1 = arith.constant 0 : i32
    return %arg0, %c0_i32, %c0_i32_0 : i32, i32, i32
  }
  func.func @transform_3(%arg0: i32) -> (i32, i32) {
    %c0_i32 = arith.constant 0 : i32
    %c0_i32_0 = arith.constant 0 : i32
    %c0_i32_1 = arith.constant 0 : i32
    return %c0_i32, %c0_i32_0 : i32, i32
  }
  func.func @transform_4(%arg0: i32) -> (i32, i32) {
    %c0_i32 = arith.constant 0 : i32
    %c0_i32_0 = arith.constant 0 : i32
    %c0_i32_1 = arith.constant 0 : i32
    return %c0_i32, %c0_i32_0 : i32, i32
  }
  func.func @transform_5(%arg0: i32) -> (i32, i32) {
    %c0_i32 = arith.constant 0 : i32
    %c0_i32_0 = arith.constant 0 : i32
    %c0_i32_1 = arith.constant 0 : i32
    return %c0_i32, %c0_i32_0 : i32, i32
  }
  func.func @transform_6(%arg0: i32) -> (i32, i32) {
    %c0_i32 = arith.constant 0 : i32
    %c0_i32_0 = arith.constant 0 : i32
    %c0_i32_1 = arith.constant 0 : i32
    return %c0_i32, %c0_i32_0 : i32, i32
  }
  func.func @transform_7(%arg0: i32) -> (i32, i32) {
    %c0_i32 = arith.constant 0 : i32
    %c0_i32_0 = arith.constant 0 : i32
    %c0_i32_1 = arith.constant 0 : i32
    return %c0_i32, %c0_i32_0 : i32, i32
  }
  func.func @transform_8(%arg0: i32) -> (i32, i32) {
    %c0_i32 = arith.constant 0 : i32
    %c0_i32_0 = arith.constant 0 : i32
    %c0_i32_1 = arith.constant 0 : i32
    return %c0_i32, %c0_i32_0 : i32, i32
  }
  func.func @transform_9(%arg0: i32) -> (i32, i32) {
    %c0_i32 = arith.constant 0 : i32
    %c0_i32_0 = arith.constant 0 : i32
    %c0_i32_1 = arith.constant 0 : i32
    return %c0_i32, %c0_i32_0 : i32, i32
  }
  func.func @transform_10(%arg0: i32) -> (i32, i32) {
    %c0_i32 = arith.constant 0 : i32
    %c0_i32_0 = arith.constant 0 : i32
    %c0_i32_1 = arith.constant 0 : i32
    return %c0_i32, %c0_i32_0 : i32, i32
  }
  func.func @transform_11(%arg0: i32) -> (i32, i32) {
    %c0_i32 = arith.constant 0 : i32
    %c0_i32_0 = arith.constant 0 : i32
    %c0_i32_1 = arith.constant 0 : i32
    return %c0_i32, %c0_i32_0 : i32, i32
  }
  func.func @transform_12(%arg0: i32) -> (i32, i32) {
    %c0_i32 = arith.constant 0 : i32
    %c0_i32_0 = arith.constant 0 : i32
    %c0_i32_1 = arith.constant 0 : i32
    return %c0_i32, %c0_i32_0 : i32, i32
  }
  func.func @transform_13(%arg0: i32) -> (i32, i32) {
    %c0_i32 = arith.constant 0 : i32
    %c0_i32_0 = arith.constant 0 : i32
    %c0_i32_1 = arith.constant 0 : i32
    return %c0_i32, %c0_i32_0 : i32, i32
  }
  func.func @transform_14(%arg0: i32) -> (i32, i32) {
    %c0_i32 = arith.constant 0 : i32
    %c0_i32_0 = arith.constant 0 : i32
    %c0_i32_1 = arith.constant 0 : i32
    return %c0_i32, %c0_i32_0 : i32, i32
  }
  func.func @transform_15(%arg0: i32) -> (i32, i32) {
    %c0_i32 = arith.constant 0 : i32
    %c0_i32_0 = arith.constant 0 : i32
    %c0_i32_1 = arith.constant 0 : i32
    return %c0_i32, %c0_i32_0 : i32, i32
  }
  func.func @transform_16(%arg0: i32) -> (i32, i32) {
    %c0_i32 = arith.constant 0 : i32
    %c0_i32_0 = arith.constant 0 : i32
    %c0_i32_1 = arith.constant 0 : i32
    return %c0_i32, %c0_i32_0 : i32, i32
  }
  func.func @transform_17(%arg0: i32) -> (i32, i32) {
    %c0_i32 = arith.constant 0 : i32
    %c0_i32_0 = arith.constant 0 : i32
    %c0_i32_1 = arith.constant 0 : i32
    return %c0_i32, %c0_i32_0 : i32, i32
  }
  func.func @transform_18(%arg0: i32) -> (i32, i32) {
    %c0_i32 = arith.constant 0 : i32
    %c0_i32_0 = arith.constant 0 : i32
    %c0_i32_1 = arith.constant 0 : i32
    return %c0_i32, %c0_i32_0 : i32, i32
  }
  func.func @transform_19(%arg0: i32) -> (i32, i32) {
    %c0_i32 = arith.constant 0 : i32
    %c0_i32_0 = arith.constant 0 : i32
    %c0_i32_1 = arith.constant 0 : i32
    return %c0_i32, %c0_i32_0 : i32, i32
  }
  func.func @transform_20(%arg0: i32) -> (i32, i32) {
    %c0_i32 = arith.constant 0 : i32
    %c0_i32_0 = arith.constant 0 : i32
    %c0_i32_1 = arith.constant 0 : i32
    return %c0_i32, %c0_i32_0 : i32, i32
  }
  func.func @transform_21(%arg0: i32) -> (i32, i32) {
    %c0_i32 = arith.constant 0 : i32
    %c0_i32_0 = arith.constant 0 : i32
    %c0_i32_1 = arith.constant 0 : i32
    return %c0_i32, %c0_i32_0 : i32, i32
  }
  func.func @transform_22(%arg0: i32) -> (i32, i32) {
    %c0_i32 = arith.constant 0 : i32
    %c0_i32_0 = arith.constant 0 : i32
    %c0_i32_1 = arith.constant 0 : i32
    return %c0_i32, %c0_i32_0 : i32, i32
  }
  func.func @transform_23(%arg0: i32) -> (i32, i32) {
    %c0_i32 = arith.constant 0 : i32
    %c0_i32_0 = arith.constant 0 : i32
    %c0_i32_1 = arith.constant 0 : i32
    return %c0_i32, %c0_i32_0 : i32, i32
  }
  func.func @transform_24(%arg0: i32) -> (i32, i32, i32) {
    %c0_i32 = arith.constant 0 : i32
    %c0_i32_0 = arith.constant 0 : i32
    %c0_i32_1 = arith.constant 0 : i32
    return %arg0, %c0_i32, %c0_i32_0 : i32, i32, i32
  }
  func.func @transform_25(%arg0: i32) -> (i32, i32, i32) {
    %c0_i32 = arith.constant 0 : i32
    %c0_i32_0 = arith.constant 0 : i32
    %c0_i32_1 = arith.constant 0 : i32
    return %arg0, %c0_i32, %c0_i32_0 : i32, i32, i32
  }
}

</mosaic_0001>

<llo_original>
// kernel: transformer_forward.1
$region0: #{transformer_forward.1}
  #allocation0 [shape = 'u32[]', space=smem, size = 0x4, offset = 0x4, fixed_abs, tag = 'smem constant byte address 0x4 - core index']
  #allocation1 [shape = 'u32[144,128]{1,0:T(1,128)}', space=vmem, size = 0x12000, scoped, tag = 'internal scratch']
  %s0 = inlined_call_operand.vmem [shape: bf16[2,8,768], index: 0, kind: input, shape index: {}]
  %s1 = inlined_call_operand.vmem [shape: f32[2,8,64], index: 1, kind: input, shape index: {}]
  %s2 = inlined_call_operand.vmem [shape: f32[2,1,16], index: 2, kind: input, shape index: {}]
  %s3 = inlined_call_operand.vmem [shape: f32[16,96], index: 3, kind: input, shape index: {}]
  %s4 = inlined_call_operand.vmem [shape: bf16[768,384], index: 4, kind: input, shape index: {}]
  %s5 = inlined_call_operand.vmem [shape: f32[1,384], index: 5, kind: input, shape index: {}]
  %s6 = inlined_call_operand.vmem [shape: bf16[384,32], index: 6, kind: input, shape index: {}]
  %s7 = inlined_call_operand.hbm [shape: f32[1,32], index: 7, kind: input, shape index: {}]
  %s8 = inlined_call_operand.vmem [shape: bf16[96,288], index: 8, kind: input, shape index: {}]
  %s9 = inlined_call_operand.hbm [shape: f32[1,288], index: 9, kind: input, shape index: {}]
  %s10 = inlined_call_operand.vmem [shape: bf16[96,96], index: 10, kind: input, shape index: {}]
  %s11 = inlined_call_operand.hbm [shape: f32[1,96], index: 11, kind: input, shape index: {}]
  %s12 = inlined_call_operand.hbm [shape: f32[1,96], index: 12, kind: input, shape index: {}]
  %s13 = inlined_call_operand.hbm [shape: f32[1,96], index: 13, kind: input, shape index: {}]
  %s14 = inlined_call_operand.vmem [shape: bf16[96,2048], index: 14, kind: input, shape index: {}]
  %s15 = inlined_call_operand.hbm [shape: f32[1,2048], index: 15, kind: input, shape index: {}]
  %s16 = inlined_call_operand.vmem [shape: bf16[2048,96], index: 16, kind: input, shape index: {}]
  %s17 = inlined_call_operand.hbm [shape: f32[1,96], index: 17, kind: input, shape index: {}]
  %s18 = inlined_call_operand.hbm [shape: f32[1,96], index: 18, kind: input, shape index: {}]
  %s19 = inlined_call_operand.hbm [shape: f32[1,96], index: 19, kind: input, shape index: {}]
  %s20 = inlined_call_operand.vmem [shape: bf16[96,48], index: 20, kind: input, shape index: {}]
  %s21 = inlined_call_operand.hbm [shape: f32[1,48], index: 21, kind: input, shape index: {}]
  %s22 = inlined_call_operand.hbm [shape: bf16[48,128], index: 22, kind: input, shape index: {}]
  %s23 = inlined_call_operand.hbm [shape: f32[1,128], index: 23, kind: input, shape index: {}]
  %s24 = inlined_call_operand.vmem [shape: f32[2,1,128], index: 24, kind: output, shape index: {0}]
  %s25 = inlined_call_operand.vmem [shape: f32[2,16,16], index: 25, kind: output, shape index: {1}]
  %26 = xla_tuple %s24, %s25
  %s27 = sld [smem:[#allocation0]]
  $region185: #{transformer_forward.1} parent=0
    _
  %s29 = ssub.s32 1, %s27
  %s30 = scalar_select 0, %s29, %s27
  $region1: #{transformer_forward.1} parent=0
    #allocation2 [shape = 'u8[512]{0}', space=vmem, size = 0x400, scoped, tag = 'input window, operand 7, single buffered']
    #allocation3 [shape = 's32[2]{0}', space=sflag, size = 0x8, scoped, tag = 'scoped memory for transformer_forward.1']
    #allocation4 [shape = 'u8[1536]{0}', space=vmem, size = 0x800, scoped, tag = 'input window, operand 9, single buffered']
    #allocation5 [shape = 's32[1]{0}', space=sflag, size = 0x4, scoped, tag = 'scoped memory for transformer_forward.1']
    #allocation6 [shape = 'u8[512]{0}', space=vmem, size = 0x400, scoped, tag = 'input window, operand 11, single buffered']
    #allocation7 [shape = 'u8[512]{0}', space=vmem, size = 0x400, scoped, tag = 'input window, operand 12, single buffered']
    #allocation8 [shape = 's32[1]{0}', space=sflag, size = 0x4, scoped, tag = 'scoped memory for transformer_forward.1']
    #allocation9 [shape = 'u8[512]{0}', space=vmem, size = 0x400, scoped, tag = 'input window, operand 13, single buffered']
    #allocation10 [shape = 'u8[8192]{0}', space=vmem, size = 0x2000, scoped, tag = 'input window, operand 15, single buffered']
    #allocation11 [shape = 's32[1]{0}', space=sflag, size = 0x4, scoped, tag = 'scoped memory for transformer_forward.1']
    #allocation12 [shape = 'u8[512]{0}', space=vmem, size = 0x400, scoped, tag = 'input window, operand 17, single buffered']
    #allocation13 [shape = 'u8[512]{0}', space=vmem, size = 0x400, scoped, tag = 'input window, operand 18, single buffered']
    #allocation14 [shape = 's32[1]{0}', space=sflag, size = 0x4, scoped, tag = 'scoped memory for transformer_forward.1']
    #allocation15 [shape = 'u8[512]{0}', space=vmem, size = 0x400, scoped, tag = 'input window, operand 19, single buffered']
    #allocation16 [shape = 'u8[512]{0}', space=vmem, size = 0x400, scoped, tag = 'input window, operand 21, single buffered']
    #allocation17 [shape = 's32[1]{0}', space=sflag, size = 0x4, scoped, tag = 'scoped memory for transformer_forward.1']
    #allocation18 [shape = 'u8[12288]{0}', space=vmem, size = 0x3000, scoped, tag = 'input window, operand 22, single buffered']
    #allocation19 [shape = 'u8[512]{0}', space=vmem, size = 0x400, scoped, tag = 'input window, operand 23, single buffered']
    #allocation20 [shape = 's32[1]{0}', space=sflag, size = 0x4, scoped, tag = 'scoped memory for transformer_forward.1']
    %31 = vsyncpa [#allocation3], 0
    %32 = vsyncpa [#allocation5], 0
    %33 = vsyncpa [#allocation8], 0
    %34 = vsyncpa [#allocation11], 0
    %35 = vsyncpa [#allocation14], 0
    %36 = vsyncpa [#allocation17], 0
    %37 = vsyncpa [#allocation20], 0
    loop: start=0, step=1, limit=4
    $region2: #{transformer_forward.1} parent=1 // loop_pre_header
      _
    $region3: #{transformer_forward.1} parent=1 // loop_header
      %s39 = sphi 0, %s43
      %p40 = scmp.ge.s32.totalorder %s39, 4
      %s49 = sphi 0, %s51
      %s52 = sphi 0, %s49
      %s53 = sphi 0, %s52
      %s69 = sphi 0, %s53
      %s75 = sphi 0, %s77
      %s78 = sphi 0, %s75
      %s79 = sphi 0, %s78
      %s95 = sphi 0, %s79
      %s101 = sphi 0, %s103
      %s104 = sphi 0, %s101
      %s105 = sphi 0, %s104
      %s121 = sphi 0, %s105
      %s125 = sphi 0, %s125
      %s127 = sphi 0, %s125
      %s128 = sphi 0, %s127
      %s142 = sphi 0, %s128
      %s146 = sphi 0, %s146
      %s148 = sphi 0, %s146
      %s149 = sphi 0, %s148
      %s163 = sphi 0, %s149
      %s167 = sphi 0, %s167
      %s169 = sphi 0, %s167
      %s170 = sphi 0, %s169
      %s184 = sphi 0, %s170
      %s188 = sphi 0, %s188
      %s190 = sphi 0, %s188
      %s191 = sphi 0, %s190
      %s205 = sphi 0, %s191
      %s209 = sphi 0, %s209
      %s211 = sphi 0, %s209
      %s212 = sphi 0, %s211
      %s226 = sphi 0, %s212
      %s230 = sphi 0, %s230
      %s232 = sphi 0, %s230
      %s233 = sphi 0, %s232
      %s247 = sphi 0, %s233
      %s251 = sphi 0, %s251
      %s253 = sphi 0, %s251
      %s254 = sphi 0, %s253
      %s268 = sphi 0, %s254
      %s272 = sphi 0, %s272
      %s274 = sphi 0, %s272
      %s275 = sphi 0, %s274
      %s289 = sphi 0, %s275
      %s293 = sphi 0, %s293
      %s295 = sphi 0, %s293
      %s296 = sphi 0, %s295
      %s310 = sphi 0, %s296
      %s314 = sphi 0, %s314
      %s316 = sphi 0, %s314
      %s317 = sphi 0, %s316
      %s331 = sphi 0, %s317
      %s335 = sphi 0, %s335
      %s337 = sphi 0, %s335
      %s338 = sphi 0, %s337
      %s352 = sphi 0, %s338
      %s356 = sphi 0, %s356
      %s358 = sphi 0, %s356
      %s359 = sphi 0, %s358
      %s373 = sphi 0, %s359
      %s377 = sphi 0, %s377
      %s379 = sphi 0, %s377
      %s380 = sphi 0, %s379
      %s394 = sphi 0, %s380
      %s398 = sphi 0, %s398
      %s400 = sphi 0, %s398
      %s401 = sphi 0, %s400
      %s415 = sphi 0, %s401
      %s419 = sphi 0, %s419
      %s421 = sphi 0, %s419
      %s422 = sphi 0, %s421
      %s436 = sphi 0, %s422
      %s440 = sphi 0, %s440
      %s442 = sphi 0, %s440
      %s443 = sphi 0, %s442
      %s457 = sphi 0, %s443
      %s461 = sphi 0, %s461
      %s463 = sphi 0, %s461
      %s464 = sphi 0, %s463
      %s478 = sphi 0, %s464
      %s482 = sphi 0, %s482
      %s484 = sphi 0, %s482
      %s485 = sphi 0, %s484
      %s499 = sphi 0, %s485
      %s503 = sphi 0, %s503
      %s505 = sphi 0, %s503
      %s506 = sphi 0, %s505
      %s520 = sphi 0, %s506
      %s524 = sphi 0, %s524
      %s526 = sphi 0, %s524
      %s527 = sphi 0, %s526
      %s541 = sphi 0, %s527
      %s545 = sphi 0, %s545
      %s547 = sphi 0, %s545
      %s548 = sphi 0, %s547
      %s562 = sphi 0, %s548
      %s568 = sphi 0, %s570
      %s571 = sphi 0, %s568
      %s572 = sphi 0, %s571
      %s588 = sphi 0, %s572
      %s594 = sphi 0, %s596
      %s597 = sphi 0, %s594
      %s598 = sphi 0, %s597
      %s614 = sphi 0, %s598
    $region4: #{transformer_forward.1} parent=1 // loop_header_branch
      %42 = sbr.rel (%p40) target = $region8
    $region5: #{transformer_forward.1} parent=1 // loop_body
      %s44 = ssub.s32 %s39, 1
      %s45 = ssub.s32 %s39, 2
      %s46 = sadd.s32 %s39, 1
      %s47 = ssub.s32 %s39, %s46
      %p48 = scmp.eq.s32.totalorder %s47, 0
      %s50 = sadd.s32 %s49, 1
      %s51 = scalar_select %p48, %s49, %s50
      %p54 = pneg %p48
      %p55 = scmp.eq.s32.totalorder %s39, 1
      %p56 = por %p54, %p55
      %p57 = scmp.ne.s32.totalorder %s49, %s52
      %p58 = scmp.eq.s32.totalorder %s39, 0
      %p59 = por %p57, %p58
      %p60 = scmp.ne.s32.totalorder %s49, %s52
      %p61 = scmp.eq.s32.totalorder %s44, 1
      %p62 = por %p60, %p61
      %p63 = scmp.ne.s32.totalorder %s52, %s53
      %p64 = scmp.eq.s32.totalorder %s44, 0
      %p65 = por %p63, %p64
      %p66 = scmp.ne.s32.totalorder %s52, %s53
      %p67 = scmp.eq.s32.totalorder %s45, 1
      %p68 = por %p66, %p67
      %p70 = scmp.ne.s32.totalorder %s53, %s69
      %p71 = scmp.eq.s32.totalorder %s45, 0
      %p72 = por %p70, %p71
      %s73 = ssub.s32 %s39, %s46
      %p74 = scmp.eq.s32.totalorder %s73, 0
      %s76 = sadd.s32 %s75, 1
      %s77 = scalar_select %p74, %s75, %s76
      %p80 = pneg %p74
      %p81 = scmp.eq.s32.totalorder %s39, 1
      %p82 = por %p80, %p81
      %p83 = scmp.ne.s32.totalorder %s75, %s78
      %p84 = scmp.eq.s32.totalorder %s39, 0
      %p85 = por %p83, %p84
      %p86 = scmp.ne.s32.totalorder %s75, %s78
      %p87 = scmp.eq.s32.totalorder %s44, 1
      %p88 = por %p86, %p87
      %p89 = scmp.ne.s32.totalorder %s78, %s79
      %p90 = scmp.eq.s32.totalorder %s44, 0
      %p91 = por %p89, %p90
      %p92 = scmp.ne.s32.totalorder %s78, %s79
      %p93 = scmp.eq.s32.totalorder %s45, 1
      %p94 = por %p92, %p93
      %p96 = scmp.ne.s32.totalorder %s79, %s95
      %p97 = scmp.eq.s32.totalorder %s45, 0
      %p98 = por %p96, %p97
      %s99 = ssub.s32 %s39, %s46
      %p100 = scmp.eq.s32.totalorder %s99, 0
      %s102 = sadd.s32 %s101, 1
      %s103 = scalar_select %p100, %s101, %s102
      %p106 = pneg %p100
      %p107 = scmp.eq.s32.totalorder %s39, 1
      %p108 = por %p106, %p107
      %p109 = scmp.ne.s32.totalorder %s101, %s104
      %p110 = scmp.eq.s32.totalorder %s39, 0
      %p111 = por %p109, %p110
      %p112 = scmp.ne.s32.totalorder %s101, %s104
      %p113 = scmp.eq.s32.totalorder %s44, 1
      %p114 = por %p112, %p113
      %p115 = scmp.ne.s32.totalorder %s104, %s105
      %p116 = scmp.eq.s32.totalorder %s44, 0
      %p117 = por %p115, %p116
      %p118 = scmp.ne.s32.totalorder %s104, %s105
      %p119 = scmp.eq.s32.totalorder %s45, 1
      %p120 = por %p118, %p119
      %p122 = scmp.ne.s32.totalorder %s105, %s121
      %p123 = scmp.eq.s32.totalorder %s45, 0
      %p124 = por %p122, %p123
      %s126 = sadd.s32 %s125, 1
      %p129 = scmp.eq.s32.totalorder %s39, 1
      %p130 = scmp.ne.s32.totalorder %s125, %s127
      %p131 = scmp.eq.s32.totalorder %s39, 0
      %p132 = por %p130, %p131
      %p133 = scmp.ne.s32.totalorder %s125, %s127
      %p134 = scmp.eq.s32.totalorder %s44, 1
      %p135 = por %p133, %p134
      %p136 = scmp.ne.s32.totalorder %s127, %s128
      %p137 = scmp.eq.s32.totalorder %s44, 0
      %p138 = por %p136, %p137
      %p139 = scmp.ne.s32.totalorder %s127, %s128
      %p140 = scmp.eq.s32.totalorder %s45, 1
      %p141 = por %p139, %p140
      %p143 = scmp.ne.s32.totalorder %s128, %s142
      %p144 = scmp.eq.s32.totalorder %s45, 0
      %p145 = por %p143, %p144
      %s147 = sadd.s32 %s146, 1
      %p150 = scmp.eq.s32.totalorder %s39, 1
      %p151 = scmp.ne.s32.totalorder %s146, %s148
      %p152 = scmp.eq.s32.totalorder %s39, 0
      %p153 = por %p151, %p152
      %p154 = scmp.ne.s32.totalorder %s146, %s148
      %p155 = scmp.eq.s32.totalorder %s44, 1
      %p156 = por %p154, %p155
      %p157 = scmp.ne.s32.totalorder %s148, %s149
      %p158 = scmp.eq.s32.totalorder %s44, 0
      %p159 = por %p157, %p158
      %p160 = scmp.ne.s32.totalorder %s148, %s149
      %p161 = scmp.eq.s32.totalorder %s45, 1
      %p162 = por %p160, %p161
      %p164 = scmp.ne.s32.totalorder %s149, %s163
      %p165 = scmp.eq.s32.totalorder %s45, 0
      %p166 = por %p164, %p165
      %s168 = sadd.s32 %s167, 1
      %p171 = scmp.eq.s32.totalorder %s39, 1
      %p172 = scmp.ne.s32.totalorder %s167, %s169
      %p173 = scmp.eq.s32.totalorder %s39, 0
      %p174 = por %p172, %p173
      %p175 = scmp.ne.s32.totalorder %s167, %s169
      %p176 = scmp.eq.s32.totalorder %s44, 1
      %p177 = por %p175, %p176
      %p178 = scmp.ne.s32.totalorder %s169, %s170
      %p179 = scmp.eq.s32.totalorder %s44, 0
      %p180 = por %p178, %p179
      %p181 = scmp.ne.s32.totalorder %s169, %s170
      %p182 = scmp.eq.s32.totalorder %s45, 1
      %p183 = por %p181, %p182
      %p185 = scmp.ne.s32.totalorder %s170, %s184
      %p186 = scmp.eq.s32.totalorder %s45, 0
      %p187 = por %p185, %p186
      %s189 = sadd.s32 %s188, 1
      %p192 = scmp.eq.s32.totalorder %s39, 1
      %p193 = scmp.ne.s32.totalorder %s188, %s190
      %p194 = scmp.eq.s32.totalorder %s39, 0
      %p195 = por %p193, %p194
      %p196 = scmp.ne.s32.totalorder %s188, %s190
      %p197 = scmp.eq.s32.totalorder %s44, 1
      %p198 = por %p196, %p197
      %p199 = scmp.ne.s32.totalorder %s190, %s191
      %p200 = scmp.eq.s32.totalorder %s44, 0
      %p201 = por %p199, %p200
      %p202 = scmp.ne.s32.totalorder %s190, %s191
      %p203 = scmp.eq.s32.totalorder %s45, 1
      %p204 = por %p202, %p203
      %p206 = scmp.ne.s32.totalorder %s191, %s205
      %p207 = scmp.eq.s32.totalorder %s45, 0
      %p208 = por %p206, %p207
      %s210 = sadd.s32 %s209, 1
      %p213 = scmp.eq.s32.totalorder %s39, 1
      %p214 = scmp.ne.s32.totalorder %s209, %s211
      %p215 = scmp.eq.s32.totalorder %s39, 0
      %p216 = por %p214, %p215
      %p217 = scmp.ne.s32.totalorder %s209, %s211
      %p218 = scmp.eq.s32.totalorder %s44, 1
      %p219 = por %p217, %p218
      %p220 = scmp.ne.s32.totalorder %s211, %s212
      %p221 = scmp.eq.s32.totalorder %s44, 0
      %p222 = por %p220, %p221
      %p223 = scmp.ne.s32.totalorder %s211, %s212
      %p224 = scmp.eq.s32.totalorder %s45, 1
      %p225 = por %p223, %p224
      %p227 = scmp.ne.s32.totalorder %s212, %s226
      %p228 = scmp.eq.s32.totalorder %s45, 0
      %p229 = por %p227, %p228
      %s231 = sadd.s32 %s230, 1
      %p234 = scmp.eq.s32.totalorder %s39, 1
      %p235 = scmp.ne.s32.totalorder %s230, %s232
      %p236 = scmp.eq.s32.totalorder %s39, 0
      %p237 = por %p235, %p236
      %p238 = scmp.ne.s32.totalorder %s230, %s232
      %p239 = scmp.eq.s32.totalorder %s44, 1
      %p240 = por %p238, %p239
      %p241 = scmp.ne.s32.totalorder %s232, %s233
      %p242 = scmp.eq.s32.totalorder %s44, 0
      %p243 = por %p241, %p242
      %p244 = scmp.ne.s32.totalorder %s232, %s233
      %p245 = scmp.eq.s32.totalorder %s45, 1
      %p246 = por %p244, %p245
      %p248 = scmp.ne.s32.totalorder %s233, %s247
      %p249 = scmp.eq.s32.totalorder %s45, 0
      %p250 = por %p248, %p249
      %s252 = sadd.s32 %s251, 1
      %p255 = scmp.eq.s32.totalorder %s39, 1
      %p256 = scmp.ne.s32.totalorder %s251, %s253
      %p257 = scmp.eq.s32.totalorder %s39, 0
      %p258 = por %p256, %p257
      %p259 = scmp.ne.s32.totalorder %s251, %s253
      %p260 = scmp.eq.s32.totalorder %s44, 1
      %p261 = por %p259, %p260
      %p262 = scmp.ne.s32.totalorder %s253, %s254
      %p263 = scmp.eq.s32.totalorder %s44, 0
      %p264 = por %p262, %p263
      %p265 = scmp.ne.s32.totalorder %s253, %s254
      %p266 = scmp.eq.s32.totalorder %s45, 1
      %p267 = por %p265, %p266
      %p269 = scmp.ne.s32.totalorder %s254, %s268
      %p270 = scmp.eq.s32.totalorder %s45, 0
      %p271 = por %p269, %p270
      %s273 = sadd.s32 %s272, 1
      %p276 = scmp.eq.s32.totalorder %s39, 1
      %p277 = scmp.ne.s32.totalorder %s272, %s274
      %p278 = scmp.eq.s32.totalorder %s39, 0
      %p279 = por %p277, %p278
      %p280 = scmp.ne.s32.totalorder %s272, %s274
      %p281 = scmp.eq.s32.totalorder %s44, 1
      %p282 = por %p280, %p281
      %p283 = scmp.ne.s32.totalorder %s274, %s275
      %p284 = scmp.eq.s32.totalorder %s44, 0
      %p285 = por %p283, %p284
      %p286 = scmp.ne.s32.totalorder %s274, %s275
      %p287 = scmp.eq.s32.totalorder %s45, 1
      %p288 = por %p286, %p287
      %p290 = scmp.ne.s32.totalorder %s275, %s289
      %p291 = scmp.eq.s32.totalorder %s45, 0
      %p292 = por %p290, %p291
      %s294 = sadd.s32 %s293, 1
      %p297 = scmp.eq.s32.totalorder %s39, 1
      %p298 = scmp.ne.s32.totalorder %s293, %s295
      %p299 = scmp.eq.s32.totalorder %s39, 0
      %p300 = por %p298, %p299
      %p301 = scmp.ne.s32.totalorder %s293, %s295
      %p302 = scmp.eq.s32.totalorder %s44, 1
      %p303 = por %p301, %p302
      %p304 = scmp.ne.s32.totalorder %s295, %s296
      %p305 = scmp.eq.s32.totalorder %s44, 0
      %p306 = por %p304, %p305
      %p307 = scmp.ne.s32.totalorder %s295, %s296
      %p308 = scmp.eq.s32.totalorder %s45, 1
      %p309 = por %p307, %p308
      %p311 = scmp.ne.s32.totalorder %s296, %s310
      %p312 = scmp.eq.s32.totalorder %s45, 0
      %p313 = por %p311, %p312
      %s315 = sadd.s32 %s314, 1
      %p318 = scmp.eq.s32.totalorder %s39, 1
      %p319 = scmp.ne.s32.totalorder %s314, %s316
      %p320 = scmp.eq.s32.totalorder %s39, 0
      %p321 = por %p319, %p320
      %p322 = scmp.ne.s32.totalorder %s314, %s316
      %p323 = scmp.eq.s32.totalorder %s44, 1
      %p324 = por %p322, %p323
      %p325 = scmp.ne.s32.totalorder %s316, %s317
      %p326 = scmp.eq.s32.totalorder %s44, 0
      %p327 = por %p325, %p326
      %p328 = scmp.ne.s32.totalorder %s316, %s317
      %p329 = scmp.eq.s32.totalorder %s45, 1
      %p330 = por %p328, %p329
      %p332 = scmp.ne.s32.totalorder %s317, %s331
      %p333 = scmp.eq.s32.totalorder %s45, 0
      %p334 = por %p332, %p333
      %s336 = sadd.s32 %s335, 1
      %p339 = scmp.eq.s32.totalorder %s39, 1
      %p340 = scmp.ne.s32.totalorder %s335, %s337
      %p341 = scmp.eq.s32.totalorder %s39, 0
      %p342 = por %p340, %p341
      %p343 = scmp.ne.s32.totalorder %s335, %s337
      %p344 = scmp.eq.s32.totalorder %s44, 1
      %p345 = por %p343, %p344
      %p346 = scmp.ne.s32.totalorder %s337, %s338
      %p347 = scmp.eq.s32.totalorder %s44, 0
      %p348 = por %p346, %p347
      %p349 = scmp.ne.s32.totalorder %s337, %s338
      %p350 = scmp.eq.s32.totalorder %s45, 1
      %p351 = por %p349, %p350
      %p353 = scmp.ne.s32.totalorder %s338, %s352
      %p354 = scmp.eq.s32.totalorder %s45, 0
      %p355 = por %p353, %p354
      %s357 = sadd.s32 %s356, 1
      %p360 = scmp.eq.s32.totalorder %s39, 1
      %p361 = scmp.ne.s32.totalorder %s356, %s358
      %p362 = scmp.eq.s32.totalorder %s39, 0
      %p363 = por %p361, %p362
      %p364 = scmp.ne.s32.totalorder %s356, %s358
      %p365 = scmp.eq.s32.totalorder %s44, 1
      %p366 = por %p364, %p365
      %p367 = scmp.ne.s32.totalorder %s358, %s359
      %p368 = scmp.eq.s32.totalorder %s44, 0
      %p369 = por %p367, %p368
      %p370 = scmp.ne.s32.totalorder %s358, %s359
      %p371 = scmp.eq.s32.totalorder %s45, 1
      %p372 = por %p370, %p371
      %p374 = scmp.ne.s32.totalorder %s359, %s373
      %p375 = scmp.eq.s32.totalorder %s45, 0
      %p376 = por %p374, %p375
      %s378 = sadd.s32 %s377, 1
      %p381 = scmp.eq.s32.totalorder %s39, 1
      %p382 = scmp.ne.s32.totalorder %s377, %s379
      %p383 = scmp.eq.s32.totalorder %s39, 0
      %p384 = por %p382, %p383
      %p385 = scmp.ne.s32.totalorder %s377, %s379
      %p386 = scmp.eq.s32.totalorder %s44, 1
      %p387 = por %p385, %p386
      %p388 = scmp.ne.s32.totalorder %s379, %s380
      %p389 = scmp.eq.s32.totalorder %s44, 0
      %p390 = por %p388, %p389
      %p391 = scmp.ne.s32.totalorder %s379, %s380
      %p392 = scmp.eq.s32.totalorder %s45, 1
      %p393 = por %p391, %p392
      %p395 = scmp.ne.s32.totalorder %s380, %s394
      %p396 = scmp.eq.s32.totalorder %s45, 0
      %p397 = por %p395, %p396
      %s399 = sadd.s32 %s398, 1
      %p402 = scmp.eq.s32.totalorder %s39, 1
      %p403 = scmp.ne.s32.totalorder %s398, %s400
      %p404 = scmp.eq.s32.totalorder %s39, 0
      %p405 = por %p403, %p404
      %p406 = scmp.ne.s32.totalorder %s398, %s400
      %p407 = scmp.eq.s32.totalorder %s44, 1
      %p408 = por %p406, %p407
      %p409 = scmp.ne.s32.totalorder %s400, %s401
      %p410 = scmp.eq.s32.totalorder %s44, 0
      %p411 = por %p409, %p410
      %p412 = scmp.ne.s32.totalorder %s400, %s401
      %p413 = scmp.eq.s32.totalorder %s45, 1
      %p414 = por %p412, %p413
      %p416 = scmp.ne.s32.totalorder %s401, %s415
      %p417 = scmp.eq.s32.totalorder %s45, 0
      %p418 = por %p416, %p417
      %s420 = sadd.s32 %s419, 1
      %p423 = scmp.eq.s32.totalorder %s39, 1
      %p424 = scmp.ne.s32.totalorder %s419, %s421
      %p425 = scmp.eq.s32.totalorder %s39, 0
      %p426 = por %p424, %p425
      %p427 = scmp.ne.s32.totalorder %s419, %s421
      %p428 = scmp.eq.s32.totalorder %s44, 1
      %p429 = por %p427, %p428
      %p430 = scmp.ne.s32.totalorder %s421, %s422
      %p431 = scmp.eq.s32.totalorder %s44, 0
      %p432 = por %p430, %p431
      %p433 = scmp.ne.s32.totalorder %s421, %s422
      %p434 = scmp.eq.s32.totalorder %s45, 1
      %p435 = por %p433, %p434
      %p437 = scmp.ne.s32.totalorder %s422, %s436
      %p438 = scmp.eq.s32.totalorder %s45, 0
      %p439 = por %p437, %p438
      %s441 = sadd.s32 %s440, 1
      %p444 = scmp.eq.s32.totalorder %s39, 1
      %p445 = scmp.ne.s32.totalorder %s440, %s442
      %p446 = scmp.eq.s32.totalorder %s39, 0
      %p447 = por %p445, %p446
      %p448 = scmp.ne.s32.totalorder %s440, %s442
      %p449 = scmp.eq.s32.totalorder %s44, 1
      %p450 = por %p448, %p449
      %p451 = scmp.ne.s32.totalorder %s442, %s443
      %p452 = scmp.eq.s32.totalorder %s44, 0
      %p453 = por %p451, %p452
      %p454 = scmp.ne.s32.totalorder %s442, %s443
      %p455 = scmp.eq.s32.totalorder %s45, 1
      %p456 = por %p454, %p455
      %p458 = scmp.ne.s32.totalorder %s443, %s457
      %p459 = scmp.eq.s32.totalorder %s45, 0
      %p460 = por %p458, %p459
      %s462 = sadd.s32 %s461, 1
      %p465 = scmp.eq.s32.totalorder %s39, 1
      %p466 = scmp.ne.s32.totalorder %s461, %s463
      %p467 = scmp.eq.s32.totalorder %s39, 0
      %p468 = por %p466, %p467
      %p469 = scmp.ne.s32.totalorder %s461, %s463
      %p470 = scmp.eq.s32.totalorder %s44, 1
      %p471 = por %p469, %p470
      %p472 = scmp.ne.s32.totalorder %s463, %s464
      %p473 = scmp.eq.s32.totalorder %s44, 0
      %p474 = por %p472, %p473
      %p475 = scmp.ne.s32.totalorder %s463, %s464
      %p476 = scmp.eq.s32.totalorder %s45, 1
      %p477 = por %p475, %p476
      %p479 = scmp.ne.s32.totalorder %s464, %s478
      %p480 = scmp.eq.s32.totalorder %s45, 0
      %p481 = por %p479, %p480
      %s483 = sadd.s32 %s482, 1
      %p486 = scmp.eq.s32.totalorder %s39, 1
      %p487 = scmp.ne.s32.totalorder %s482, %s484
      %p488 = scmp.eq.s32.totalorder %s39, 0
      %p489 = por %p487, %p488
      %p490 = scmp.ne.s32.totalorder %s482, %s484
      %p491 = scmp.eq.s32.totalorder %s44, 1
      %p492 = por %p490, %p491
      %p493 = scmp.ne.s32.totalorder %s484, %s485
      %p494 = scmp.eq.s32.totalorder %s44, 0
      %p495 = por %p493, %p494
      %p496 = scmp.ne.s32.totalorder %s484, %s485
      %p497 = scmp.eq.s32.totalorder %s45, 1
      %p498 = por %p496, %p497
      %p500 = scmp.ne.s32.totalorder %s485, %s499
      %p501 = scmp.eq.s32.totalorder %s45, 0
      %p502 = por %p500, %p501
      %s504 = sadd.s32 %s503, 1
      %p507 = scmp.eq.s32.totalorder %s39, 1
      %p508 = scmp.ne.s32.totalorder %s503, %s505
      %p509 = scmp.eq.s32.totalorder %s39, 0
      %p510 = por %p508, %p509
      %p511 = scmp.ne.s32.totalorder %s503, %s505
      %p512 = scmp.eq.s32.totalorder %s44, 1
      %p513 = por %p511, %p512
      %p514 = scmp.ne.s32.totalorder %s505, %s506
      %p515 = scmp.eq.s32.totalorder %s44, 0
      %p516 = por %p514, %p515
      %p517 = scmp.ne.s32.totalorder %s505, %s506
      %p518 = scmp.eq.s32.totalorder %s45, 1
      %p519 = por %p517, %p518
      %p521 = scmp.ne.s32.totalorder %s506, %s520
      %p522 = scmp.eq.s32.totalorder %s45, 0
      %p523 = por %p521, %p522
      %s525 = sadd.s32 %s524, 1
      %p528 = scmp.eq.s32.totalorder %s39, 1
      %p529 = scmp.ne.s32.totalorder %s524, %s526
      %p530 = scmp.eq.s32.totalorder %s39, 0
      %p531 = por %p529, %p530
      %p532 = scmp.ne.s32.totalorder %s524, %s526
      %p533 = scmp.eq.s32.totalorder %s44, 1
      %p534 = por %p532, %p533
      %p535 = scmp.ne.s32.totalorder %s526, %s527
      %p536 = scmp.eq.s32.totalorder %s44, 0
      %p537 = por %p535, %p536
      %p538 = scmp.ne.s32.totalorder %s526, %s527
      %p539 = scmp.eq.s32.totalorder %s45, 1
      %p540 = por %p538, %p539
      %p542 = scmp.ne.s32.totalorder %s527, %s541
      %p543 = scmp.eq.s32.totalorder %s45, 0
      %p544 = por %p542, %p543
      %s546 = sadd.s32 %s545, 1
      %p549 = scmp.eq.s32.totalorder %s39, 1
      %p550 = scmp.ne.s32.totalorder %s545, %s547
      %p551 = scmp.eq.s32.totalorder %s39, 0
      %p552 = por %p550, %p551
      %p553 = scmp.ne.s32.totalorder %s545, %s547
      %p554 = scmp.eq.s32.totalorder %s44, 1
      %p555 = por %p553, %p554
      %p556 = scmp.ne.s32.totalorder %s547, %s548
      %p557 = scmp.eq.s32.totalorder %s44, 0
      %p558 = por %p556, %p557
      %p559 = scmp.ne.s32.totalorder %s547, %s548
      %p560 = scmp.eq.s32.totalorder %s45, 1
      %p561 = por %p559, %p560
      %p563 = scmp.ne.s32.totalorder %s548, %s562
      %p564 = scmp.eq.s32.totalorder %s45, 0
      %p565 = por %p563, %p564
      %s566 = ssub.s32 %s39, %s46
      %p567 = scmp.eq.s32.totalorder %s566, 0
      %s569 = sadd.s32 %s568, 1
      %s570 = scalar_select %p567, %s568, %s569
      %p573 = pneg %p567
      %p574 = scmp.eq.s32.totalorder %s39, 1
      %p575 = por %p573, %p574
      %p576 = scmp.ne.s32.totalorder %s568, %s571
      %p577 = scmp.eq.s32.totalorder %s39, 0
      %p578 = por %p576, %p577
      %p579 = scmp.ne.s32.totalorder %s568, %s571
      %p580 = scmp.eq.s32.totalorder %s44, 1
      %p581 = por %p579, %p580
      %p582 = scmp.ne.s32.totalorder %s571, %s572
      %p583 = scmp.eq.s32.totalorder %s44, 0
      %p584 = por %p582, %p583
      %p585 = scmp.ne.s32.totalorder %s571, %s572
      %p586 = scmp.eq.s32.totalorder %s45, 1
      %p587 = por %p585, %p586
      %p589 = scmp.ne.s32.totalorder %s572, %s588
      %p590 = scmp.eq.s32.totalorder %s45, 0
      %p591 = por %p589, %p590
      %s592 = ssub.s32 %s39, %s46
      %p593 = scmp.eq.s32.totalorder %s592, 0
      %s595 = sadd.s32 %s594, 1
      %s596 = scalar_select %p593, %s594, %s595
      %p599 = pneg %p593
      %p600 = scmp.eq.s32.totalorder %s39, 1
      %p601 = por %p599, %p600
      %p602 = scmp.ne.s32.totalorder %s594, %s597
      %p603 = scmp.eq.s32.totalorder %s39, 0
      %p604 = por %p602, %p603
      %p605 = scmp.ne.s32.totalorder %s594, %s597
      %p606 = scmp.eq.s32.totalorder %s44, 1
      %p607 = por %p605, %p606
      %p608 = scmp.ne.s32.totalorder %s597, %s598
      %p609 = scmp.eq.s32.totalorder %s44, 0
      %p610 = por %p608, %p609
      %p611 = scmp.ne.s32.totalorder %s597, %s598
      %p612 = scmp.eq.s32.totalorder %s45, 1
      %p613 = por %p611, %p612
      %p615 = scmp.ne.s32.totalorder %s598, %s614
      %p616 = scmp.eq.s32.totalorder %s45, 0
      %p617 = por %p615, %p616
      %p618 = scmp.le.s32.totalorder 1, %s39
      %p619 = scmp.lt.s32.totalorder %s39, 3
      %p620 = pnand %p618, %p619
      %p621 = pneg %p620
      // Predicated region
      $region9: #{transformer_forward.1} parent=5 // pred_check
        _
      $region10: #{transformer_forward.1} parent=5 // pred_check_branch
        %623 = sbr.rel (%p620) target = $region12
      $region11: #{transformer_forward.1} parent=5 // pred_region
        %s624 = ssub.s32 %s39, 1
        // Predicated region
        $region13: #{transformer_forward.1} parent=11 // pred_check
          %p625 = pneg %p138
        $region14: #{transformer_forward.1} parent=11 // pred_check_branch
          %627 = sbr.rel (%p625) target = $region16
        $region15: #{transformer_forward.1} parent=11 // pred_region
          _
        $region16: #{transformer_forward.1} parent=11 // pred_fallthru
          _
        // Predicated region
        $region17: #{transformer_forward.1} parent=11 // pred_check
          %p628 = pneg %p159
        $region18: #{transformer_forward.1} parent=11 // pred_check_branch
          %630 = sbr.rel (%p628) target = $region20
        $region19: #{transformer_forward.1} parent=11 // pred_region
          _
        $region20: #{transformer_forward.1} parent=11 // pred_fallthru
          _
        // Predicated region
        $region21: #{transformer_forward.1} parent=11 // pred_check
          %p631 = pneg %p180
        $region22: #{transformer_forward.1} parent=11 // pred_check_branch
          %633 = sbr.rel (%p631) target = $region24
        $region23: #{transformer_forward.1} parent=11 // pred_region
          _
        $region24: #{transformer_forward.1} parent=11 // pred_fallthru
          _
        // Predicated region
        $region25: #{transformer_forward.1} parent=11 // pred_check
          %p634 = pneg %p201
        $region26: #{transformer_forward.1} parent=11 // pred_check_branch
          %636 = sbr.rel (%p634) target = $region28
        $region27: #{transformer_forward.1} parent=11 // pred_region
          _
        $region28: #{transformer_forward.1} parent=11 // pred_fallthru
          _
        // Predicated region
        $region29: #{transformer_forward.1} parent=11 // pred_check
          %p637 = pneg %p222
        $region30: #{transformer_forward.1} parent=11 // pred_check_branch
          %639 = sbr.rel (%p637) target = $region32
        $region31: #{transformer_forward.1} parent=11 // pred_region
          %s641 = ssub.s32 16, 16
          %642 = vsyncadd [#allocation3], %s641
          %s644 = sshll.u32 [#allocation2], 4
          %s645 = int_to_ptr.vmem [resolvable:$true] %s644
          %647 = dma.hbm_to_vmem [thread:$0]  %s7, 16, %s645, [#allocation3]
        $region32: #{transformer_forward.1} parent=11 // pred_fallthru
          _
        // Predicated region
        $region33: #{transformer_forward.1} parent=11 // pred_check
          %p648 = pneg %p243
        $region34: #{transformer_forward.1} parent=11 // pred_check_branch
          %650 = sbr.rel (%p648) target = $region36
        $region35: #{transformer_forward.1} parent=11 // pred_region
          _
        $region36: #{transformer_forward.1} parent=11 // pred_fallthru
          _
        // Predicated region
        $region37: #{transformer_forward.1} parent=11 // pred_check
          %p651 = pneg %p264
        $region38: #{transformer_forward.1} parent=11 // pred_check_branch
          %653 = sbr.rel (%p651) target = $region40
        $region39: #{transformer_forward.1} parent=11 // pred_region
          %s655 = ssub.s32 48, 48
          %656 = vsyncadd [#allocation5], %s655
          %s658 = sshll.u32 [#allocation4], 4
          %s659 = int_to_ptr.vmem [resolvable:$true] %s658
          %661 = dma.hbm_to_vmem [thread:$0]  %s9, 48, %s659, [#allocation5]
        $region40: #{transformer_forward.1} parent=11 // pred_fallthru
          _
        // Predicated region
        $region41: #{transformer_forward.1} parent=11 // pred_check
          %p662 = pneg %p285
        $region42: #{transformer_forward.1} parent=11 // pred_check_branch
          %664 = sbr.rel (%p662) target = $region44
        $region43: #{transformer_forward.1} parent=11 // pred_region
          _
        $region44: #{transformer_forward.1} parent=11 // pred_fallthru
          _
        // Predicated region
        $region45: #{transformer_forward.1} parent=11 // pred_check
          %p665 = pneg %p306
        $region46: #{transformer_forward.1} parent=11 // pred_check_branch
          %667 = sbr.rel (%p665) target = $region48
        $region47: #{transformer_forward.1} parent=11 // pred_region
          %s669 = ssub.s32 16, 16
          %670 = vsyncadd [#allocation5], %s669
          %s672 = sshll.u32 [#allocation6], 4
          %s673 = int_to_ptr.vmem [resolvable:$true] %s672
          %675 = dma.hbm_to_vmem [thread:$0]  %s11, 16, %s673, [#allocation5]
        $region48: #{transformer_forward.1} parent=11 // pred_fallthru
          _
        // Predicated region
        $region49: #{transformer_forward.1} parent=11 // pred_check
          %p676 = pneg %p327
        $region50: #{transformer_forward.1} parent=11 // pred_check_branch
          %678 = sbr.rel (%p676) target = $region52
        $region51: #{transformer_forward.1} parent=11 // pred_region
          %s680 = ssub.s32 16, 16
          %681 = vsyncadd [#allocation8], %s680
          %s683 = sshll.u32 [#allocation7], 4
          %s684 = int_to_ptr.vmem [resolvable:$true] %s683
          %686 = dma.hbm_to_vmem [thread:$0]  %s12, 16, %s684, [#allocation8]
        $region52: #{transformer_forward.1} parent=11 // pred_fallthru
          _
        // Predicated region
        $region53: #{transformer_forward.1} parent=11 // pred_check
          %p687 = pneg %p348
        $region54: #{transformer_forward.1} parent=11 // pred_check_branch
          %689 = sbr.rel (%p687) target = $region56
        $region55: #{transformer_forward.1} parent=11 // pred_region
          %s691 = ssub.s32 16, 16
          %692 = vsyncadd [#allocation8], %s691
          %s694 = sshll.u32 [#allocation9], 4
          %s695 = int_to_ptr.vmem [resolvable:$true] %s694
          %697 = dma.hbm_to_vmem [thread:$0]  %s13, 16, %s695, [#allocation8]
        $region56: #{transformer_forward.1} parent=11 // pred_fallthru
          _
        // Predicated region
        $region57: #{transformer_forward.1} parent=11 // pred_check
          %p698 = pneg %p369
        $region58: #{transformer_forward.1} parent=11 // pred_check_branch
          %700 = sbr.rel (%p698) target = $region60
        $region59: #{transformer_forward.1} parent=11 // pred_region
          _
        $region60: #{transformer_forward.1} parent=11 // pred_fallthru
          _
        // Predicated region
        $region61: #{transformer_forward.1} parent=11 // pred_check
          %p701 = pneg %p390
        $region62: #{transformer_forward.1} parent=11 // pred_check_branch
          %703 = sbr.rel (%p701) target = $region64
        $region63: #{transformer_forward.1} parent=11 // pred_region
          %s705 = ssub.s32 256, 256
          %706 = vsyncadd [#allocation11], %s705
          %s708 = sshll.u32 [#allocation10], 4
          %s709 = int_to_ptr.vmem [resolvable:$true] %s708
          %711 = dma.hbm_to_vmem [thread:$0]  %s15, 256, %s709, [#allocation11]
        $region64: #{transformer_forward.1} parent=11 // pred_fallthru
          _
        // Predicated region
        $region65: #{transformer_forward.1} parent=11 // pred_check
          %p712 = pneg %p411
        $region66: #{transformer_forward.1} parent=11 // pred_check_branch
          %714 = sbr.rel (%p712) target = $region68
        $region67: #{transformer_forward.1} parent=11 // pred_region
          _
        $region68: #{transformer_forward.1} parent=11 // pred_fallthru
          _
        // Predicated region
        $region69: #{transformer_forward.1} parent=11 // pred_check
          %p715 = pneg %p432
        $region70: #{transformer_forward.1} parent=11 // pred_check_branch
          %717 = sbr.rel (%p715) target = $region72
        $region71: #{transformer_forward.1} parent=11 // pred_region
          %s719 = ssub.s32 16, 16
          %720 = vsyncadd [#allocation11], %s719
          %s722 = sshll.u32 [#allocation12], 4
          %s723 = int_to_ptr.vmem [resolvable:$true] %s722
          %725 = dma.hbm_to_vmem [thread:$0]  %s17, 16, %s723, [#allocation11]
        $region72: #{transformer_forward.1} parent=11 // pred_fallthru
          _
        // Predicated region
        $region73: #{transformer_forward.1} parent=11 // pred_check
          %p726 = pneg %p453
        $region74: #{transformer_forward.1} parent=11 // pred_check_branch
          %728 = sbr.rel (%p726) target = $region76
        $region75: #{transformer_forward.1} parent=11 // pred_region
          %s730 = ssub.s32 16, 16
          %731 = vsyncadd [#allocation14], %s730
          %s733 = sshll.u32 [#allocation13], 4
          %s734 = int_to_ptr.vmem [resolvable:$true] %s733
          %736 = dma.hbm_to_vmem [thread:$0]  %s18, 16, %s734, [#allocation14]
        $region76: #{transformer_forward.1} parent=11 // pred_fallthru
          _
        // Predicated region
        $region77: #{transformer_forward.1} parent=11 // pred_check
          %p737 = pneg %p474
        $region78: #{transformer_forward.1} parent=11 // pred_check_branch
          %739 = sbr.rel (%p737) target = $region80
        $region79: #{transformer_forward.1} parent=11 // pred_region
          %s741 = ssub.s32 16, 16
          %742 = vsyncadd [#allocation14], %s741
          %s744 = sshll.u32 [#allocation15], 4
          %s745 = int_to_ptr.vmem [resolvable:$true] %s744
          %747 = dma.hbm_to_vmem [thread:$0]  %s19, 16, %s745, [#allocation14]
        $region80: #{transformer_forward.1} parent=11 // pred_fallthru
          _
        // Predicated region
        $region81: #{transformer_forward.1} parent=11 // pred_check
          %p748 = pneg %p495
        $region82: #{transformer_forward.1} parent=11 // pred_check_branch
          %750 = sbr.rel (%p748) target = $region84
        $region83: #{transformer_forward.1} parent=11 // pred_region
          _
        $region84: #{transformer_forward.1} parent=11 // pred_fallthru
          _
        // Predicated region
        $region85: #{transformer_forward.1} parent=11 // pred_check
          %p751 = pneg %p516
        $region86: #{transformer_forward.1} parent=11 // pred_check_branch
          %753 = sbr.rel (%p751) target = $region88
        $region87: #{transformer_forward.1} parent=11 // pred_region
          %s755 = ssub.s32 16, 16
          %756 = vsyncadd [#allocation17], %s755
          %s758 = sshll.u32 [#allocation16], 4
          %s759 = int_to_ptr.vmem [resolvable:$true] %s758
          %761 = dma.hbm_to_vmem [thread:$0]  %s21, 16, %s759, [#allocation17]
        $region88: #{transformer_forward.1} parent=11 // pred_fallthru
          _
        // Predicated region
        $region89: #{transformer_forward.1} parent=11 // pred_check
          %p762 = pneg %p537
        $region90: #{transformer_forward.1} parent=11 // pred_check_branch
          %764 = sbr.rel (%p762) target = $region92
        $region91: #{transformer_forward.1} parent=11 // pred_region
          %s766 = ssub.s32 384, 384
          %767 = vsyncadd [#allocation17], %s766
          %s768 = sshll.u32 [#allocation18], 4
          %s769 = int_to_ptr.vmem [resolvable:$true] %s768
          %774 = dma.hbm_to_vmem [thread:$0]  %s22, 384, %s769, [#allocation17], 64, 64, 4
        $region92: #{transformer_forward.1} parent=11 // pred_fallthru
          _
        // Predicated region
        $region93: #{transformer_forward.1} parent=11 // pred_check
          %p775 = pneg %p558
        $region94: #{transformer_forward.1} parent=11 // pred_check_branch
          %777 = sbr.rel (%p775) target = $region96
        $region95: #{transformer_forward.1} parent=11 // pred_region
          %s779 = ssub.s32 16, 16
          %780 = vsyncadd [#allocation20], %s779
          %s782 = sshll.u32 [#allocation19], 4
          %s783 = int_to_ptr.vmem [resolvable:$true] %s782
          %785 = dma.hbm_to_vmem [thread:$0]  %s23, 16, %s783, [#allocation20]
        $region96: #{transformer_forward.1} parent=11 // pred_fallthru
          _
      $region12: #{transformer_forward.1} parent=5 // pred_fallthru
        _
      %p786 = scmp.lt.s32.totalorder %s39, 2
      // Predicated region
      $region97: #{transformer_forward.1} parent=5 // pred_check
        %p787 = pneg %p786
      $region98: #{transformer_forward.1} parent=5 // pred_check_branch
        %789 = sbr.rel (%p787) target = $region100
      $region99: #{transformer_forward.1} parent=5 // pred_region
        // Predicated region
        $region101: #{transformer_forward.1} parent=99 // pred_check
          %p790 = pneg %p59
        $region102: #{transformer_forward.1} parent=99 // pred_check_branch
          %792 = sbr.rel (%p790) target = $region104
        $region103: #{transformer_forward.1} parent=99 // pred_region
          %p793 = scmp.lt.s32.totalorder %s39, 1
          %s794 = scalar_select %p793, %s39, 1
          %s795 = smul.addr %s794, 6
          %s796 = smul.addr %s795, 4
          %s797 = scalar_lea.vmem %s0, %s796
        $region104: #{transformer_forward.1} parent=99 // pred_fallthru
          _
        // Predicated region
        $region105: #{transformer_forward.1} parent=99 // pred_check
          %p798 = pneg %p85
        $region106: #{transformer_forward.1} parent=99 // pred_check_branch
          %800 = sbr.rel (%p798) target = $region108
        $region107: #{transformer_forward.1} parent=99 // pred_region
          %p801 = scmp.lt.s32.totalorder %s39, 1
          %s802 = scalar_select %p801, %s39, 1
          %s803 = smul.addr %s802, 8
          %s804 = scalar_lea.vmem %s1, %s803
        $region108: #{transformer_forward.1} parent=99 // pred_fallthru
          _
        // Predicated region
        $region109: #{transformer_forward.1} parent=99 // pred_check
          %p805 = pneg %p111
        $region110: #{transformer_forward.1} parent=99 // pred_check_branch
          %807 = sbr.rel (%p805) target = $region112
        $region111: #{transformer_forward.1} parent=99 // pred_region
          %p808 = scmp.lt.s32.totalorder %s39, 1
          %s809 = scalar_select %p808, %s39, 1
          %s810 = scalar_lea.vmem %s2, %s809
        $region112: #{transformer_forward.1} parent=99 // pred_fallthru
          _
      $region100: #{transformer_forward.1} parent=5 // pred_fallthru
        _
      %p811 = scmp.le.s32.totalorder 1, %s39
      %p812 = scmp.lt.s32.totalorder %s39, 3
      %p813 = pnand %p811, %p812
      %p814 = pneg %p813
      // Predicated region
      $region113: #{transformer_forward.1} parent=5 // pred_check
        _
      $region114: #{transformer_forward.1} parent=5 // pred_check_branch
        %816 = sbr.rel (%p813) target = $region116
      $region115: #{transformer_forward.1} parent=5 // pred_region
        %s817 = ssub.s32 %s39, 1
        // Predicated region
        $region117: #{transformer_forward.1} parent=115 // pred_check
          %p818 = pneg %p222
        $region118: #{transformer_forward.1} parent=115 // pred_check_branch
          %820 = sbr.rel (%p818) target = $region120
        $region119: #{transformer_forward.1} parent=115 // pred_region
          %821 = dma.done [#allocation3], 16
        $region120: #{transformer_forward.1} parent=115 // pred_fallthru
          _
        // Predicated region
        $region121: #{transformer_forward.1} parent=115 // pred_check
          %p822 = pneg %p264
        $region122: #{transformer_forward.1} parent=115 // pred_check_branch
          %824 = sbr.rel (%p822) target = $region124
        $region123: #{transformer_forward.1} parent=115 // pred_region
          %825 = dma.done [#allocation5], 48
        $region124: #{transformer_forward.1} parent=115 // pred_fallthru
          _
        // Predicated region
        $region125: #{transformer_forward.1} parent=115 // pred_check
          %p826 = pneg %p306
        $region126: #{transformer_forward.1} parent=115 // pred_check_branch
          %828 = sbr.rel (%p826) target = $region128
        $region127: #{transformer_forward.1} parent=115 // pred_region
          %829 = dma.done [#allocation5], 16
        $region128: #{transformer_forward.1} parent=115 // pred_fallthru
          _
        // Predicated region
        $region129: #{transformer_forward.1} parent=115 // pred_check
          %p830 = pneg %p327
        $region130: #{transformer_forward.1} parent=115 // pred_check_branch
          %832 = sbr.rel (%p830) target = $region132
        $region131: #{transformer_forward.1} parent=115 // pred_region
          %833 = dma.done [#allocation8], 16
        $region132: #{transformer_forward.1} parent=115 // pred_fallthru
          _
        // Predicated region
        $region133: #{transformer_forward.1} parent=115 // pred_check
          %p834 = pneg %p348
        $region134: #{transformer_forward.1} parent=115 // pred_check_branch
          %836 = sbr.rel (%p834) target = $region136
        $region135: #{transformer_forward.1} parent=115 // pred_region
          %837 = dma.done [#allocation8], 16
        $region136: #{transformer_forward.1} parent=115 // pred_fallthru
          _
        // Predicated region
        $region137: #{transformer_forward.1} parent=115 // pred_check
          %p838 = pneg %p390
        $region138: #{transformer_forward.1} parent=115 // pred_check_branch
          %840 = sbr.rel (%p838) target = $region140
        $region139: #{transformer_forward.1} parent=115 // pred_region
          %841 = dma.done [#allocation11], 256
        $region140: #{transformer_forward.1} parent=115 // pred_fallthru
          _
        // Predicated region
        $region141: #{transformer_forward.1} parent=115 // pred_check
          %p842 = pneg %p432
        $region142: #{transformer_forward.1} parent=115 // pred_check_branch
          %844 = sbr.rel (%p842) target = $region144
        $region143: #{transformer_forward.1} parent=115 // pred_region
          %845 = dma.done [#allocation11], 16
        $region144: #{transformer_forward.1} parent=115 // pred_fallthru
          _
        // Predicated region
        $region145: #{transformer_forward.1} parent=115 // pred_check
          %p846 = pneg %p453
        $region146: #{transformer_forward.1} parent=115 // pred_check_branch
          %848 = sbr.rel (%p846) target = $region148
        $region147: #{transformer_forward.1} parent=115 // pred_region
          %849 = dma.done [#allocation14], 16
        $region148: #{transformer_forward.1} parent=115 // pred_fallthru
          _
        // Predicated region
        $region149: #{transformer_forward.1} parent=115 // pred_check
          %p850 = pneg %p474
        $region150: #{transformer_forward.1} parent=115 // pred_check_branch
          %852 = sbr.rel (%p850) target = $region152
        $region151: #{transformer_forward.1} parent=115 // pred_region
          %853 = dma.done [#allocation14], 16
        $region152: #{transformer_forward.1} parent=115 // pred_fallthru
          _
        // Predicated region
        $region153: #{transformer_forward.1} parent=115 // pred_check
          %p854 = pneg %p516
        $region154: #{transformer_forward.1} parent=115 // pred_check_branch
          %856 = sbr.rel (%p854) target = $region156
        $region155: #{transformer_forward.1} parent=115 // pred_region
          %857 = dma.done [#allocation17], 16
        $region156: #{transformer_forward.1} parent=115 // pred_fallthru
          _
        // Predicated region
        $region157: #{transformer_forward.1} parent=115 // pred_check
          %p858 = pneg %p537
        $region158: #{transformer_forward.1} parent=115 // pred_check_branch
          %860 = sbr.rel (%p858) target = $region160
        $region159: #{transformer_forward.1} parent=115 // pred_region
          %861 = dma.done [#allocation17], 384
        $region160: #{transformer_forward.1} parent=115 // pred_fallthru
          _
        // Predicated region
        $region161: #{transformer_forward.1} parent=115 // pred_check
          %p862 = pneg %p558
        $region162: #{transformer_forward.1} parent=115 // pred_check_branch
          %864 = sbr.rel (%p862) target = $region164
        $region163: #{transformer_forward.1} parent=115 // pred_region
          %865 = dma.done [#allocation20], 16
        $region164: #{transformer_forward.1} parent=115 // pred_fallthru
          _
        %p866 = scmp.lt.s32.totalorder %s44, 1
        %s867 = scalar_select %p866, %s44, 1
        %s868 = smul.addr %s867, 6
        %s869 = smul.addr %s868, 4
        %s870 = scalar_lea.vmem %s0, %s869
        %p871 = pneg %p65
        %p872 = pneg %p62
        %p873 = scmp.lt.s32.totalorder %s44, 1
        %s874 = scalar_select %p873, %s44, 1
        %s875 = smul.addr %s874, 8
        %s876 = scalar_lea.vmem %s1, %s875
        %p877 = pneg %p91
        %p878 = pneg %p88
        %p879 = scmp.lt.s32.totalorder %s44, 1
        %s880 = scalar_select %p879, %s44, 1
        %s881 = scalar_lea.vmem %s2, %s880
        %p882 = pneg %p117
        %p883 = pneg %p114
        %p884 = pneg %p138
        %p885 = pneg %p135
        %p886 = pneg %p159
        %p887 = pneg %p156
        %p888 = pneg %p180
        %p889 = pneg %p177
        %p890 = pneg %p201
        %p891 = pneg %p198
        %p892 = pneg %p222
        %p893 = pneg %p219
        %p894 = pneg %p243
        %p895 = pneg %p240
        %p896 = pneg %p264
        %p897 = pneg %p261
        %p898 = pneg %p285
        %p899 = pneg %p282
        %p900 = pneg %p306
        %p901 = pneg %p303
        %p902 = pneg %p327
        %p903 = pneg %p324
        %p904 = pneg %p348
        %p905 = pneg %p345
        %p906 = pneg %p369
        %p907 = pneg %p366
        %p908 = pneg %p390
        %p909 = pneg %p387
        %p910 = pneg %p411
        %p911 = pneg %p408
        %p912 = pneg %p432
        %p913 = pneg %p429
        %p914 = pneg %p453
        %p915 = pneg %p450
        %p916 = pneg %p474
        %p917 = pneg %p471
        %p918 = pneg %p495
        %p919 = pneg %p492
        %p920 = pneg %p516
        %p921 = pneg %p513
        %p922 = pneg %p537
        %p923 = pneg %p534
        %p924 = pneg %p558
        %p925 = pneg %p555
        %p926 = pneg %p584
        %p927 = pneg %p581
        %p928 = scmp.lt.s32.totalorder %s44, 1
        %s929 = scalar_select %p928, %s44, 1
        %s930 = scalar_lea.vmem %s24, %s929
        %p931 = pneg %p610
        %p932 = pneg %p607
        %p933 = scmp.lt.s32.totalorder %s44, 1
        %s934 = scalar_select %p933, %s44, 1
        %s935 = smul.addr %s934, 2
        %s936 = smul.addr %s935, 8
        %s937 = scalar_lea.vmem %s25, %s936
        %p938 = scmp.lt.s32.totalorder %s44, 1
        %s939 = scalar_select %p938, %s44, 1
        %s940 = smul.addr %s939, 6
        %s941 = smul.addr %s940, 4
        %s942 = scalar_lea.vmem %s0, %s941
        %p943 = scmp.lt.s32.totalorder %s44, 1
        %s944 = scalar_select %p943, %s44, 1
        %s945 = smul.addr %s944, 8
        %s946 = scalar_lea.vmem %s1, %s945
        %p947 = scmp.lt.s32.totalorder %s44, 1
        %s948 = scalar_select %p947, %s44, 1
        %s949 = scalar_lea.vmem %s2, %s948
        %p950 = scmp.lt.s32.totalorder %s44, 1
        %s951 = scalar_select %p950, %s44, 1
        %s952 = scalar_lea.vmem %s24, %s951
        %p953 = scmp.lt.s32.totalorder %s44, 1
        %s954 = scalar_select %p953, %s44, 1
        %s955 = smul.addr %s954, 2
        %s956 = smul.addr %s955, 8
        %s957 = scalar_lea.vmem %s25, %s956
        %v959 = vld [vmem:[%s942] sm:$0xff]
        %v960 = vld [vmem:[%s942 + $0x8] sm:$0xff]
        %v961 = vld [vmem:[%s942 + $0x10] sm:$0xff]
        %v962 = vld [vmem:[%s4] sm:$0xff]
        %v963 = vld [vmem:[%s4 + $0x8] sm:$0xf]
        %v964 = vld [vmem:[%s4 + $0xc] sm:$0xff]
        %v965 = vld [vmem:[%s4 + $0x14] sm:$0xf]
        %v966 = vld [vmem:[%s4 + $0x18] sm:$0xff]
        %v967 = vld [vmem:[%s4 + $0x20] sm:$0xf]
        %v968 = vld [vmem:[%s4 + $0x24] sm:$0xff]
        %v969 = vld [vmem:[%s4 + $0x2c] sm:$0xf]
        %v970 = vld [vmem:[%s4 + $0x30] sm:$0xff]
        %v971 = vld [vmem:[%s4 + $0x38] sm:$0xf]
        %v972 = vld [vmem:[%s4 + $0x3c] sm:$0xff]
        %v973 = vld [vmem:[%s4 + $0x44] sm:$0xf]
        %v974 = vld [vmem:[%s4 + $0x48] sm:$0xff]
        %v975 = vld [vmem:[%s4 + $0x50] sm:$0xf]
        %v976 = vld [vmem:[%s4 + $0x54] sm:$0xff]
        %v977 = vld [vmem:[%s4 + $0x5c] sm:$0xf]
        %v978 = vld [vmem:[%s4 + $0x60] sm:$0xff]
        %v979 = vld [vmem:[%s4 + $0x68] sm:$0xf]
        %v980 = vld [vmem:[%s4 + $0x6c] sm:$0xff]
        %v981 = vld [vmem:[%s4 + $0x74] sm:$0xf]
        %v982 = vld [vmem:[%s4 + $0x78] sm:$0xff]
        %v983 = vld [vmem:[%s4 + $0x80] sm:$0xf]
        %v984 = vld [vmem:[%s4 + $0x84] sm:$0xff]
        %v985 = vld [vmem:[%s4 + $0x8c] sm:$0xf]
        %v986 = vld [vmem:[%s4 + $0x90] sm:$0xff]
        %v987 = vld [vmem:[%s4 + $0x98] sm:$0xf]
        %v988 = vld [vmem:[%s4 + $0x9c] sm:$0xff]
        %v989 = vld [vmem:[%s4 + $0xa4] sm:$0xf]
        %v990 = vld [vmem:[%s4 + $0xa8] sm:$0xff]
        %v991 = vld [vmem:[%s4 + $0xb0] sm:$0xf]
        %v992 = vld [vmem:[%s4 + $0xb4] sm:$0xff]
        %v993 = vld [vmem:[%s4 + $0xbc] sm:$0xf]
        %v994 = vld [vmem:[%s4 + $0xc0] sm:$0xff]
        %v995 = vld [vmem:[%s4 + $0xc8] sm:$0xf]
        %v996 = vld [vmem:[%s4 + $0xcc] sm:$0xff]
        %v997 = vld [vmem:[%s4 + $0xd4] sm:$0xf]
        %v998 = vld [vmem:[%s4 + $0xd8] sm:$0xff]
        %v999 = vld [vmem:[%s4 + $0xe0] sm:$0xf]
        %v1000 = vld [vmem:[%s4 + $0xe4] sm:$0xff]
        %v1001 = vld [vmem:[%s4 + $0xec] sm:$0xf]
        %v1002 = vld [vmem:[%s4 + $0xf0] sm:$0xff]
        %v1003 = vld [vmem:[%s4 + $0xf8] sm:$0xf]
        %v1004 = vld [vmem:[%s4 + $0xfc] sm:$0xff]
        %v1005 = vld [vmem:[%s4 + $0x104] sm:$0xf]
        %v1006 = vld [vmem:[%s4 + $0x108] sm:$0xff]
        %v1007 = vld [vmem:[%s4 + $0x110] sm:$0xf]
        %v1008 = vld [vmem:[%s4 + $0x114] sm:$0xff]
        %v1009 = vld [vmem:[%s4 + $0x11c] sm:$0xf]
        %v1010 = vld [vmem:[%s4 + $0x120] sm:$0xff]
        %v1011 = vld [vmem:[%s4 + $0x128] sm:$0xf]
        %v1012 = vld [vmem:[%s4 + $0x12c] sm:$0xff]
        %v1013 = vld [vmem:[%s4 + $0x134] sm:$0xf]
        %v1014 = vld [vmem:[%s4 + $0x138] sm:$0xff]
        %v1015 = vld [vmem:[%s4 + $0x140] sm:$0xf]
        %v1016 = vld [vmem:[%s4 + $0x144] sm:$0xff]
        %v1017 = vld [vmem:[%s4 + $0x14c] sm:$0xf]
        %v1018 = vld [vmem:[%s4 + $0x150] sm:$0xff]
        %v1019 = vld [vmem:[%s4 + $0x158] sm:$0xf]
        %v1020 = vld [vmem:[%s4 + $0x15c] sm:$0xff]
        %v1021 = vld [vmem:[%s4 + $0x164] sm:$0xf]
        %v1022 = vld [vmem:[%s4 + $0x168] sm:$0xff]
        %v1023 = vld [vmem:[%s4 + $0x170] sm:$0xf]
        %v1024 = vld [vmem:[%s4 + $0x174] sm:$0xff]
        %v1025 = vld [vmem:[%s4 + $0x17c] sm:$0xf]
        %v1026 = vld [vmem:[%s4 + $0x180] sm:$0xff]
        %v1027 = vld [vmem:[%s4 + $0x188] sm:$0xf]
        %v1028 = vld [vmem:[%s4 + $0x18c] sm:$0xff]
        %v1029 = vld [vmem:[%s4 + $0x194] sm:$0xf]
        %v1030 = vld [vmem:[%s4 + $0x198] sm:$0xff]
        %v1031 = vld [vmem:[%s4 + $0x1a0] sm:$0xf]
        %v1032 = vld [vmem:[%s4 + $0x1a4] sm:$0xff]
        %v1033 = vld [vmem:[%s4 + $0x1ac] sm:$0xf]
        %v1034 = vld [vmem:[%s4 + $0x1b0] sm:$0xff]
        %v1035 = vld [vmem:[%s4 + $0x1b8] sm:$0xf]
        %v1036 = vld [vmem:[%s4 + $0x1bc] sm:$0xff]
        %v1037 = vld [vmem:[%s4 + $0x1c4] sm:$0xf]
        %v1038 = vld [vmem:[%s4 + $0x1c8] sm:$0xff]
        %v1039 = vld [vmem:[%s4 + $0x1d0] sm:$0xf]
        %v1040 = vld [vmem:[%s4 + $0x1d4] sm:$0xff]
        %v1041 = vld [vmem:[%s4 + $0x1dc] sm:$0xf]
        %v1042 = vld [vmem:[%s4 + $0x1e0] sm:$0xff]
        %v1043 = vld [vmem:[%s4 + $0x1e8] sm:$0xf]
        %v1044 = vld [vmem:[%s4 + $0x1ec] sm:$0xff]
        %v1045 = vld [vmem:[%s4 + $0x1f4] sm:$0xf]
        %v1046 = vld [vmem:[%s4 + $0x1f8] sm:$0xff]
        %v1047 = vld [vmem:[%s4 + $0x200] sm:$0xf]
        %v1048 = vld [vmem:[%s4 + $0x204] sm:$0xff]
        %v1049 = vld [vmem:[%s4 + $0x20c] sm:$0xf]
        %v1050 = vld [vmem:[%s4 + $0x210] sm:$0xff]
        %v1051 = vld [vmem:[%s4 + $0x218] sm:$0xf]
        %v1052 = vld [vmem:[%s4 + $0x21c] sm:$0xff]
        %v1053 = vld [vmem:[%s4 + $0x224] sm:$0xf]
        %v1054 = vld [vmem:[%s4 + $0x228] sm:$0xff]
        %v1055 = vld [vmem:[%s4 + $0x230] sm:$0xf]
        %v1056 = vld [vmem:[%s4 + $0x234] sm:$0xff]
        %v1057 = vld [vmem:[%s4 + $0x23c] sm:$0xf]
        %v1058 = vld [vmem:[%s4 + $0x240] sm:$0xff]
        %v1059 = vld [vmem:[%s4 + $0x248] sm:$0xf]
        %v1060 = vld [vmem:[%s4 + $0x24c] sm:$0xff]
        %v1061 = vld [vmem:[%s4 + $0x254] sm:$0xf]
        %v1062 = vld [vmem:[%s4 + $0x258] sm:$0xff]
        %v1063 = vld [vmem:[%s4 + $0x260] sm:$0xf]
        %v1064 = vld [vmem:[%s4 + $0x264] sm:$0xff]
        %v1065 = vld [vmem:[%s4 + $0x26c] sm:$0xf]
        %v1066 = vld [vmem:[%s4 + $0x270] sm:$0xff]
        %v1067 = vld [vmem:[%s4 + $0x278] sm:$0xf]
        %v1068 = vld [vmem:[%s4 + $0x27c] sm:$0xff]
        %v1069 = vld [vmem:[%s4 + $0x284] sm:$0xf]
        %v1070 = vld [vmem:[%s4 + $0x288] sm:$0xff]
        %v1071 = vld [vmem:[%s4 + $0x290] sm:$0xf]
        %v1072 = vld [vmem:[%s4 + $0x294] sm:$0xff]
        %v1073 = vld [vmem:[%s4 + $0x29c] sm:$0xf]
        %v1074 = vld [vmem:[%s4 + $0x2a0] sm:$0xff]
        %v1075 = vld [vmem:[%s4 + $0x2a8] sm:$0xf]
        %v1076 = vld [vmem:[%s4 + $0x2ac] sm:$0xff]
        %v1077 = vld [vmem:[%s4 + $0x2b4] sm:$0xf]
        %v1078 = vld [vmem:[%s4 + $0x2b8] sm:$0xff]
        %v1079 = vld [vmem:[%s4 + $0x2c0] sm:$0xf]
        %v1080 = vld [vmem:[%s4 + $0x2c4] sm:$0xff]
        %v1081 = vld [vmem:[%s4 + $0x2cc] sm:$0xf]
        %v1082 = vld [vmem:[%s4 + $0x2d0] sm:$0xff]
        %v1083 = vld [vmem:[%s4 + $0x2d8] sm:$0xf]
        %v1084 = vld [vmem:[%s4 + $0x2dc] sm:$0xff]
        %v1085 = vld [vmem:[%s4 + $0x2e4] sm:$0xf]
        %v1086 = vld [vmem:[%s4 + $0x2e8] sm:$0xff]
        %v1087 = vld [vmem:[%s4 + $0x2f0] sm:$0xf]
        %v1088 = vld [vmem:[%s4 + $0x2f4] sm:$0xff]
        %v1089 = vld [vmem:[%s4 + $0x2fc] sm:$0xf]
        %v1090 = vld [vmem:[%s4 + $0x300] sm:$0xff]
        %v1091 = vld [vmem:[%s4 + $0x308] sm:$0xf]
        %v1092 = vld [vmem:[%s4 + $0x30c] sm:$0xff]
        %v1093 = vld [vmem:[%s4 + $0x314] sm:$0xf]
        %v1094 = vld [vmem:[%s4 + $0x318] sm:$0xff]
        %v1095 = vld [vmem:[%s4 + $0x320] sm:$0xf]
        %v1096 = vld [vmem:[%s4 + $0x324] sm:$0xff]
        %v1097 = vld [vmem:[%s4 + $0x32c] sm:$0xf]
        %v1098 = vld [vmem:[%s4 + $0x330] sm:$0xff]
        %v1099 = vld [vmem:[%s4 + $0x338] sm:$0xf]
        %v1100 = vld [vmem:[%s4 + $0x33c] sm:$0xff]
        %v1101 = vld [vmem:[%s4 + $0x344] sm:$0xf]
        %v1102 = vld [vmem:[%s4 + $0x348] sm:$0xff]
        %v1103 = vld [vmem:[%s4 + $0x350] sm:$0xf]
        %v1104 = vld [vmem:[%s4 + $0x354] sm:$0xff]
        %v1105 = vld [vmem:[%s4 + $0x35c] sm:$0xf]
        %v1106 = vld [vmem:[%s4 + $0x360] sm:$0xff]
        %v1107 = vld [vmem:[%s4 + $0x368] sm:$0xf]
        %v1108 = vld [vmem:[%s4 + $0x36c] sm:$0xff]
        %v1109 = vld [vmem:[%s4 + $0x374] sm:$0xf]
        %v1110 = vld [vmem:[%s4 + $0x378] sm:$0xff]
        %v1111 = vld [vmem:[%s4 + $0x380] sm:$0xf]
        %v1112 = vld [vmem:[%s4 + $0x384] sm:$0xff]
        %v1113 = vld [vmem:[%s4 + $0x38c] sm:$0xf]
        %v1114 = vld [vmem:[%s4 + $0x390] sm:$0xff]
        %v1115 = vld [vmem:[%s4 + $0x398] sm:$0xf]
        %v1116 = vld [vmem:[%s4 + $0x39c] sm:$0xff]
        %v1117 = vld [vmem:[%s4 + $0x3a4] sm:$0xf]
        %v1118 = vld [vmem:[%s4 + $0x3a8] sm:$0xff]
        %v1119 = vld [vmem:[%s4 + $0x3b0] sm:$0xf]
        %v1120 = vld [vmem:[%s4 + $0x3b4] sm:$0xff]
        %v1121 = vld [vmem:[%s4 + $0x3bc] sm:$0xf]
        %v1122 = vld [vmem:[%s4 + $0x3c0] sm:$0xff]
        %v1123 = vld [vmem:[%s4 + $0x3c8] sm:$0xf]
        %v1124 = vld [vmem:[%s4 + $0x3cc] sm:$0xff]
        %v1125 = vld [vmem:[%s4 + $0x3d4] sm:$0xf]
        %v1126 = vld [vmem:[%s4 + $0x3d8] sm:$0xff]
        %v1127 = vld [vmem:[%s4 + $0x3e0] sm:$0xf]
        %v1128 = vld [vmem:[%s4 + $0x3e4] sm:$0xff]
        %v1129 = vld [vmem:[%s4 + $0x3ec] sm:$0xf]
        %v1130 = vld [vmem:[%s4 + $0x3f0] sm:$0xff]
        %v1131 = vld [vmem:[%s4 + $0x3f8] sm:$0xf]
        %v1132 = vld [vmem:[%s4 + $0x3fc] sm:$0xff]
        %v1133 = vld [vmem:[%s4 + $0x404] sm:$0xf]
        %v1134 = vld [vmem:[%s4 + $0x408] sm:$0xff]
        %v1135 = vld [vmem:[%s4 + $0x410] sm:$0xf]
        %v1136 = vld [vmem:[%s4 + $0x414] sm:$0xff]
        %v1137 = vld [vmem:[%s4 + $0x41c] sm:$0xf]
        %v1138 = vld [vmem:[%s4 + $0x420] sm:$0xff]
        %v1139 = vld [vmem:[%s4 + $0x428] sm:$0xf]
        %v1140 = vld [vmem:[%s4 + $0x42c] sm:$0xff]
        %v1141 = vld [vmem:[%s4 + $0x434] sm:$0xf]
        %v1142 = vld [vmem:[%s4 + $0x438] sm:$0xff]
        %v1143 = vld [vmem:[%s4 + $0x440] sm:$0xf]
        %v1144 = vld [vmem:[%s4 + $0x444] sm:$0xff]
        %v1145 = vld [vmem:[%s4 + $0x44c] sm:$0xf]
        %v1146 = vld [vmem:[%s4 + $0x450] sm:$0xff]
        %v1147 = vld [vmem:[%s4 + $0x458] sm:$0xf]
        %v1148 = vld [vmem:[%s4 + $0x45c] sm:$0xff]
        %v1149 = vld [vmem:[%s4 + $0x464] sm:$0xf]
        %v1150 = vld [vmem:[%s4 + $0x468] sm:$0xff]
        %v1151 = vld [vmem:[%s4 + $0x470] sm:$0xf]
        %v1152 = vld [vmem:[%s4 + $0x474] sm:$0xff]
        %v1153 = vld [vmem:[%s4 + $0x47c] sm:$0xf]
        %v1154 = vld [vmem:[%s5] sm:$0x7]
        %v1156 = vlaneseq
        %v1157 = vshrl.u32 %v1156, 7
        %v1158 = vsub.s32 0, %v1157
        %v1159 = vrot.slane %v1154, %v1158
        %v1160 = vlaneseq
        %v1161 = vshrl.u32 %v1160, 7
        %v1162 = vsub.s32 1, %v1161
        %v1163 = vrot.slane %v1154, %v1162
        %v1164 = vlaneseq
        %v1165 = vshrl.u32 %v1164, 7
        %v1166 = vsub.s32 2, %v1165
        %v1167 = vrot.slane %v1154, %v1166
        %v1174 = vunpack.c.l.b16 %v959
        %v1175 = vunpack.c.h.b16 %v959
        %v1176 = vunpack.c.l.b16 %v960
        %v1177 = vunpack.c.h.b16 %v960
        %v1178 = vunpack.c.l.b16 %v961
        %v1179 = vunpack.c.h.b16 %v961
        %v1180 = vpack.c.b16 %v1174, %v1174
        %v1181 = vpack.c.b16 %v1175, %v1175
        %v1182 = vpack.c.b16 %v1176, %v1176
        %v1183 = vpack.c.b16 %v1177, %v1177
        %v1184 = vpack.c.b16 %v1178, %v1178
        %v1185 = vpack.c.b16 %v1179, %v1179
        %v1384 = vunpack.c.l.b16 %v962
        %v1385 = vunpack.c.h.b16 %v962
        %v1386 = vunpack.c.l.b16 %v963
        %v1387 = vunpack.c.l.b16 %v964
        %v1388 = vunpack.c.h.b16 %v964
        %v1389 = vunpack.c.l.b16 %v965
        %v1390 = vunpack.c.l.b16 %v966
        %v1391 = vunpack.c.h.b16 %v966
        %v1392 = vunpack.c.l.b16 %v967
        %v1393 = vunpack.c.l.b16 %v968
        %v1394 = vunpack.c.h.b16 %v968
        %v1395 = vunpack.c.l.b16 %v969
        %v1396 = vunpack.c.l.b16 %v970
        %v1397 = vunpack.c.h.b16 %v970
        %v1398 = vunpack.c.l.b16 %v971
        %v1399 = vunpack.c.l.b16 %v972
        %v1400 = vunpack.c.h.b16 %v972
        %v1401 = vunpack.c.l.b16 %v973
        %v1402 = vunpack.c.l.b16 %v974
        %v1403 = vunpack.c.h.b16 %v974
        %v1404 = vunpack.c.l.b16 %v975
        %v1405 = vunpack.c.l.b16 %v976
        %v1406 = vunpack.c.h.b16 %v976
        %v1407 = vunpack.c.l.b16 %v977
        %v1408 = vunpack.c.l.b16 %v978
        %v1409 = vunpack.c.h.b16 %v978
        %v1410 = vunpack.c.l.b16 %v979
        %v1411 = vunpack.c.l.b16 %v980
        %v1412 = vunpack.c.h.b16 %v980
        %v1413 = vunpack.c.l.b16 %v981
        %v1414 = vunpack.c.l.b16 %v982
        %v1415 = vunpack.c.h.b16 %v982
        %v1416 = vunpack.c.l.b16 %v983
        %v1417 = vunpack.c.l.b16 %v984
        %v1418 = vunpack.c.h.b16 %v984
        %v1419 = vunpack.c.l.b16 %v985
        %v1420 = vunpack.c.l.b16 %v986
        %v1421 = vunpack.c.h.b16 %v986
        %v1422 = vunpack.c.l.b16 %v987
        %v1423 = vunpack.c.l.b16 %v988
        %v1424 = vunpack.c.h.b16 %v988
        %v1425 = vunpack.c.l.b16 %v989
        %v1426 = vunpack.c.l.b16 %v990
        %v1427 = vunpack.c.h.b16 %v990
        %v1428 = vunpack.c.l.b16 %v991
        %v1429 = vunpack.c.l.b16 %v992
        %v1430 = vunpack.c.h.b16 %v992
        %v1431 = vunpack.c.l.b16 %v993
        %v1432 = vunpack.c.l.b16 %v994
        %v1433 = vunpack.c.h.b16 %v994
        %v1434 = vunpack.c.l.b16 %v995
        %v1435 = vunpack.c.l.b16 %v996
        %v1436 = vunpack.c.h.b16 %v996
        %v1437 = vunpack.c.l.b16 %v997
        %v1438 = vunpack.c.l.b16 %v998
        %v1439 = vunpack.c.h.b16 %v998
        %v1440 = vunpack.c.l.b16 %v999
        %v1441 = vunpack.c.l.b16 %v1000
        %v1442 = vunpack.c.h.b16 %v1000
        %v1443 = vunpack.c.l.b16 %v1001
        %v1444 = vunpack.c.l.b16 %v1002
        %v1445 = vunpack.c.h.b16 %v1002
        %v1446 = vunpack.c.l.b16 %v1003
        %v1447 = vunpack.c.l.b16 %v1004
        %v1448 = vunpack.c.h.b16 %v1004
        %v1449 = vunpack.c.l.b16 %v1005
        %v1450 = vunpack.c.l.b16 %v1006
        %v1451 = vunpack.c.h.b16 %v1006
        %v1452 = vunpack.c.l.b16 %v1007
        %v1453 = vunpack.c.l.b16 %v1008
        %v1454 = vunpack.c.h.b16 %v1008
        %v1455 = vunpack.c.l.b16 %v1009
        %v1456 = vunpack.c.l.b16 %v1010
        %v1457 = vunpack.c.h.b16 %v1010
        %v1458 = vunpack.c.l.b16 %v1011
        %v1459 = vunpack.c.l.b16 %v1012
        %v1460 = vunpack.c.h.b16 %v1012
        %v1461 = vunpack.c.l.b16 %v1013
        %v1462 = vunpack.c.l.b16 %v1014
        %v1463 = vunpack.c.h.b16 %v1014
        %v1464 = vunpack.c.l.b16 %v1015
        %v1465 = vunpack.c.l.b16 %v1016
        %v1466 = vunpack.c.h.b16 %v1016
        %v1467 = vunpack.c.l.b16 %v1017
        %v1468 = vunpack.c.l.b16 %v1018
        %v1469 = vunpack.c.h.b16 %v1018
        %v1470 = vunpack.c.l.b16 %v1019
        %v1471 = vunpack.c.l.b16 %v1020
        %v1472 = vunpack.c.h.b16 %v1020
        %v1473 = vunpack.c.l.b16 %v1021
        %v1474 = vunpack.c.l.b16 %v1022
        %v1475 = vunpack.c.h.b16 %v1022
        %v1476 = vunpack.c.l.b16 %v1023
        %v1477 = vunpack.c.l.b16 %v1024
        %v1478 = vunpack.c.h.b16 %v1024
        %v1479 = vunpack.c.l.b16 %v1025
        %v1480 = vunpack.c.l.b16 %v1026
        %v1481 = vunpack.c.h.b16 %v1026
        %v1482 = vunpack.c.l.b16 %v1027
        %v1483 = vunpack.c.l.b16 %v1028
        %v1484 = vunpack.c.h.b16 %v1028
        %v1485 = vunpack.c.l.b16 %v1029
        %v1486 = vunpack.c.l.b16 %v1030
        %v1487 = vunpack.c.h.b16 %v1030
        %v1488 = vunpack.c.l.b16 %v1031
        %v1489 = vunpack.c.l.b16 %v1032
        %v1490 = vunpack.c.h.b16 %v1032
        %v1491 = vunpack.c.l.b16 %v1033
        %v1492 = vunpack.c.l.b16 %v1034
        %v1493 = vunpack.c.h.b16 %v1034
        %v1494 = vunpack.c.l.b16 %v1035
        %v1495 = vunpack.c.l.b16 %v1036
        %v1496 = vunpack.c.h.b16 %v1036
        %v1497 = vunpack.c.l.b16 %v1037
        %v1498 = vunpack.c.l.b16 %v1038
        %v1499 = vunpack.c.h.b16 %v1038
        %v1500 = vunpack.c.l.b16 %v1039
        %v1501 = vunpack.c.l.b16 %v1040
        %v1502 = vunpack.c.h.b16 %v1040
        %v1503 = vunpack.c.l.b16 %v1041
        %v1504 = vunpack.c.l.b16 %v1042
        %v1505 = vunpack.c.h.b16 %v1042
        %v1506 = vunpack.c.l.b16 %v1043
        %v1507 = vunpack.c.l.b16 %v1044
        %v1508 = vunpack.c.h.b16 %v1044
        %v1509 = vunpack.c.l.b16 %v1045
        %v1510 = vunpack.c.l.b16 %v1046
        %v1511 = vunpack.c.h.b16 %v1046
        %v1512 = vunpack.c.l.b16 %v1047
        %v1513 = vunpack.c.l.b16 %v1048
        %v1514 = vunpack.c.h.b16 %v1048
        %v1515 = vunpack.c.l.b16 %v1049
        %v1516 = vunpack.c.l.b16 %v1050
        %v1517 = vunpack.c.h.b16 %v1050
        %v1518 = vunpack.c.l.b16 %v1051
        %v1519 = vunpack.c.l.b16 %v1052
        %v1520 = vunpack.c.h.b16 %v1052
        %v1521 = vunpack.c.l.b16 %v1053
        %v1522 = vunpack.c.l.b16 %v1054
        %v1523 = vunpack.c.h.b16 %v1054
        %v1524 = vunpack.c.l.b16 %v1055
        %v1525 = vunpack.c.l.b16 %v1056
        %v1526 = vunpack.c.h.b16 %v1056
        %v1527 = vunpack.c.l.b16 %v1057
        %v1528 = vunpack.c.l.b16 %v1058
        %v1529 = vunpack.c.h.b16 %v1058
        %v1530 = vunpack.c.l.b16 %v1059
        %v1531 = vunpack.c.l.b16 %v1060
        %v1532 = vunpack.c.h.b16 %v1060
        %v1533 = vunpack.c.l.b16 %v1061
        %v1534 = vunpack.c.l.b16 %v1062
        %v1535 = vunpack.c.h.b16 %v1062
        %v1536 = vunpack.c.l.b16 %v1063
        %v1537 = vunpack.c.l.b16 %v1064
        %v1538 = vunpack.c.h.b16 %v1064
        %v1539 = vunpack.c.l.b16 %v1065
        %v1540 = vunpack.c.l.b16 %v1066
        %v1541 = vunpack.c.h.b16 %v1066
        %v1542 = vunpack.c.l.b16 %v1067
        %v1543 = vunpack.c.l.b16 %v1068
        %v1544 = vunpack.c.h.b16 %v1068
        %v1545 = vunpack.c.l.b16 %v1069
        %v1546 = vunpack.c.l.b16 %v1070
        %v1547 = vunpack.c.h.b16 %v1070
        %v1548 = vunpack.c.l.b16 %v1071
        %v1549 = vunpack.c.l.b16 %v1072
        %v1550 = vunpack.c.h.b16 %v1072
        %v1551 = vunpack.c.l.b16 %v1073
        %v1552 = vunpack.c.l.b16 %v1074
        %v1553 = vunpack.c.h.b16 %v1074
        %v1554 = vunpack.c.l.b16 %v1075
        %v1555 = vunpack.c.l.b16 %v1076
        %v1556 = vunpack.c.h.b16 %v1076
        %v1557 = vunpack.c.l.b16 %v1077
        %v1558 = vunpack.c.l.b16 %v1078
        %v1559 = vunpack.c.h.b16 %v1078
        %v1560 = vunpack.c.l.b16 %v1079
        %v1561 = vunpack.c.l.b16 %v1080
        %v1562 = vunpack.c.h.b16 %v1080
        %v1563 = vunpack.c.l.b16 %v1081
        %v1564 = vunpack.c.l.b16 %v1082
        %v1565 = vunpack.c.h.b16 %v1082
        %v1566 = vunpack.c.l.b16 %v1083
        %v1567 = vunpack.c.l.b16 %v1084
        %v1568 = vunpack.c.h.b16 %v1084
        %v1569 = vunpack.c.l.b16 %v1085
        %v1570 = vunpack.c.l.b16 %v1086
        %v1571 = vunpack.c.h.b16 %v1086
        %v1572 = vunpack.c.l.b16 %v1087
        %v1573 = vunpack.c.l.b16 %v1088
        %v1574 = vunpack.c.h.b16 %v1088
        %v1575 = vunpack.c.l.b16 %v1089
        %v1576 = vunpack.c.l.b16 %v1090
        %v1577 = vunpack.c.h.b16 %v1090
        %v1578 = vunpack.c.l.b16 %v1091
        %v1579 = vunpack.c.l.b16 %v1092
        %v1580 = vunpack.c.h.b16 %v1092
        %v1581 = vunpack.c.l.b16 %v1093
        %v1582 = vunpack.c.l.b16 %v1094
        %v1583 = vunpack.c.h.b16 %v1094
        %v1584 = vunpack.c.l.b16 %v1095
        %v1585 = vunpack.c.l.b16 %v1096
        %v1586 = vunpack.c.h.b16 %v1096
        %v1587 = vunpack.c.l.b16 %v1097
        %v1588 = vunpack.c.l.b16 %v1098
        %v1589 = vunpack.c.h.b16 %v1098
        %v1590 = vunpack.c.l.b16 %v1099
        %v1591 = vunpack.c.l.b16 %v1100
        %v1592 = vunpack.c.h.b16 %v1100
        %v1593 = vunpack.c.l.b16 %v1101
        %v1594 = vunpack.c.l.b16 %v1102
        %v1595 = vunpack.c.h.b16 %v1102
        %v1596 = vunpack.c.l.b16 %v1103
        %v1597 = vunpack.c.l.b16 %v1104
        %v1598 = vunpack.c.h.b16 %v1104
        %v1599 = vunpack.c.l.b16 %v1105
        %v1600 = vunpack.c.l.b16 %v1106
        %v1601 = vunpack.c.h.b16 %v1106
        %v1602 = vunpack.c.l.b16 %v1107
        %v1603 = vunpack.c.l.b16 %v1108
        %v1604 = vunpack.c.h.b16 %v1108
        %v1605 = vunpack.c.l.b16 %v1109
        %v1606 = vunpack.c.l.b16 %v1110
        %v1607 = vunpack.c.h.b16 %v1110
        %v1608 = vunpack.c.l.b16 %v1111
        %v1609 = vunpack.c.l.b16 %v1112
        %v1610 = vunpack.c.h.b16 %v1112
        %v1611 = vunpack.c.l.b16 %v1113
        %v1612 = vunpack.c.l.b16 %v1114
        %v1613 = vunpack.c.h.b16 %v1114
        %v1614 = vunpack.c.l.b16 %v1115
        %v1615 = vunpack.c.l.b16 %v1116
        %v1616 = vunpack.c.h.b16 %v1116
        %v1617 = vunpack.c.l.b16 %v1117
        %v1618 = vunpack.c.l.b16 %v1118
        %v1619 = vunpack.c.h.b16 %v1118
        %v1620 = vunpack.c.l.b16 %v1119
        %v1621 = vunpack.c.l.b16 %v1120
        %v1622 = vunpack.c.h.b16 %v1120
        %v1623 = vunpack.c.l.b16 %v1121
        %v1624 = vunpack.c.l.b16 %v1122
        %v1625 = vunpack.c.h.b16 %v1122
        %v1626 = vunpack.c.l.b16 %v1123
        %v1627 = vunpack.c.l.b16 %v1124
        %v1628 = vunpack.c.h.b16 %v1124
        %v1629 = vunpack.c.l.b16 %v1125
        %v1630 = vunpack.c.l.b16 %v1126
        %v1631 = vunpack.c.h.b16 %v1126
        %v1632 = vunpack.c.l.b16 %v1127
        %v1633 = vunpack.c.l.b16 %v1128
        %v1634 = vunpack.c.h.b16 %v1128
        %v1635 = vunpack.c.l.b16 %v1129
        %v1636 = vunpack.c.l.b16 %v1130
        %v1637 = vunpack.c.h.b16 %v1130
        %v1638 = vunpack.c.l.b16 %v1131
        %v1639 = vunpack.c.l.b16 %v1132
        %v1640 = vunpack.c.h.b16 %v1132
        %v1641 = vunpack.c.l.b16 %v1133
        %v1642 = vunpack.c.l.b16 %v1134
        %v1643 = vunpack.c.h.b16 %v1134
        %v1644 = vunpack.c.l.b16 %v1135
        %v1645 = vunpack.c.l.b16 %v1136
        %v1646 = vunpack.c.h.b16 %v1136
        %v1647 = vunpack.c.l.b16 %v1137
        %v1648 = vunpack.c.l.b16 %v1138
        %v1649 = vunpack.c.h.b16 %v1138
        %v1650 = vunpack.c.l.b16 %v1139
        %v1651 = vunpack.c.l.b16 %v1140
        %v1652 = vunpack.c.h.b16 %v1140
        %v1653 = vunpack.c.l.b16 %v1141
        %v1654 = vunpack.c.l.b16 %v1142
        %v1655 = vunpack.c.h.b16 %v1142
        %v1656 = vunpack.c.l.b16 %v1143
        %v1657 = vunpack.c.l.b16 %v1144
        %v1658 = vunpack.c.h.b16 %v1144
        %v1659 = vunpack.c.l.b16 %v1145
        %v1660 = vunpack.c.l.b16 %v1146
        %v1661 = vunpack.c.h.b16 %v1146
        %v1662 = vunpack.c.l.b16 %v1147
        %v1663 = vunpack.c.l.b16 %v1148
        %v1664 = vunpack.c.h.b16 %v1148
        %v1665 = vunpack.c.l.b16 %v1149
        %v1666 = vunpack.c.l.b16 %v1150
        %v1667 = vunpack.c.h.b16 %v1150
        %v1668 = vunpack.c.l.b16 %v1151
        %v1669 = vunpack.c.l.b16 %v1152
        %v1670 = vunpack.c.h.b16 %v1152
        %v1671 = vunpack.c.l.b16 %v1153
        %v1672 = vpack.c.b16 %v1387, %v1384
        %v1673 = vpack.c.b16 %v1388, %v1385
        %v1674 = vpack.c.b16 %v1389, %v1386
        %v1675 = vpack.c.b16 %v1393, %v1390
        %v1676 = vpack.c.b16 %v1394, %v1391
        %v1677 = vpack.c.b16 %v1395, %v1392
        %v1678 = vpack.c.b16 %v1399, %v1396
        %v1679 = vpack.c.b16 %v1400, %v1397
        %v1680 = vpack.c.b16 %v1401, %v1398
        %v1681 = vpack.c.b16 %v1405, %v1402
        %v1682 = vpack.c.b16 %v1406, %v1403
        %v1683 = vpack.c.b16 %v1407, %v1404
        %v1684 = vpack.c.b16 %v1411, %v1408
        %v1685 = vpack.c.b16 %v1412, %v1409
        %v1686 = vpack.c.b16 %v1413, %v1410
        %v1687 = vpack.c.b16 %v1417, %v1414
        %v1688 = vpack.c.b16 %v1418, %v1415
        %v1689 = vpack.c.b16 %v1419, %v1416
        %v1690 = vpack.c.b16 %v1423, %v1420
        %v1691 = vpack.c.b16 %v1424, %v1421
        %v1692 = vpack.c.b16 %v1425, %v1422
        %v1693 = vpack.c.b16 %v1429, %v1426
        %v1694 = vpack.c.b16 %v1430, %v1427
        %v1695 = vpack.c.b16 %v1431, %v1428
        %v1696 = vpack.c.b16 %v1435, %v1432
        %v1697 = vpack.c.b16 %v1436, %v1433
        %v1698 = vpack.c.b16 %v1437, %v1434
        %v1699 = vpack.c.b16 %v1441, %v1438
        %v1700 = vpack.c.b16 %v1442, %v1439
        %v1701 = vpack.c.b16 %v1443, %v1440
        %v1702 = vpack.c.b16 %v1447, %v1444
        %v1703 = vpack.c.b16 %v1448, %v1445
        %v1704 = vpack.c.b16 %v1449, %v1446
        %v1705 = vpack.c.b16 %v1453, %v1450
        %v1706 = vpack.c.b16 %v1454, %v1451
        %v1707 = vpack.c.b16 %v1455, %v1452
        %v1708 = vpack.c.b16 %v1459, %v1456
        %v1709 = vpack.c.b16 %v1460, %v1457
        %v1710 = vpack.c.b16 %v1461, %v1458
        %v1711 = vpack.c.b16 %v1465, %v1462
        %v1712 = vpack.c.b16 %v1466, %v1463
        %v1713 = vpack.c.b16 %v1467, %v1464
        %v1714 = vpack.c.b16 %v1471, %v1468
        %v1715 = vpack.c.b16 %v1472, %v1469
        %v1716 = vpack.c.b16 %v1473, %v1470
        %v1717 = vpack.c.b16 %v1477, %v1474
        %v1718 = vpack.c.b16 %v1478, %v1475
        %v1719 = vpack.c.b16 %v1479, %v1476
        %v1720 = vpack.c.b16 %v1483, %v1480
        %v1721 = vpack.c.b16 %v1484, %v1481
        %v1722 = vpack.c.b16 %v1485, %v1482
        %v1723 = vpack.c.b16 %v1489, %v1486
        %v1724 = vpack.c.b16 %v1490, %v1487
        %v1725 = vpack.c.b16 %v1491, %v1488
        %v1726 = vpack.c.b16 %v1495, %v1492
        %v1727 = vpack.c.b16 %v1496, %v1493
        %v1728 = vpack.c.b16 %v1497, %v1494
        %v1729 = vpack.c.b16 %v1501, %v1498
        %v1730 = vpack.c.b16 %v1502, %v1499
        %v1731 = vpack.c.b16 %v1503, %v1500
        %v1732 = vpack.c.b16 %v1507, %v1504
        %v1733 = vpack.c.b16 %v1508, %v1505
        %v1734 = vpack.c.b16 %v1509, %v1506
        %v1735 = vpack.c.b16 %v1513, %v1510
        %v1736 = vpack.c.b16 %v1514, %v1511
        %v1737 = vpack.c.b16 %v1515, %v1512
        %v1738 = vpack.c.b16 %v1519, %v1516
        %v1739 = vpack.c.b16 %v1520, %v1517
        %v1740 = vpack.c.b16 %v1521, %v1518
        %v1741 = vpack.c.b16 %v1525, %v1522
        %v1742 = vpack.c.b16 %v1526, %v1523
        %v1743 = vpack.c.b16 %v1527, %v1524
        %v1744 = vpack.c.b16 %v1531, %v1528
        %v1745 = vpack.c.b16 %v1532, %v1529
        %v1746 = vpack.c.b16 %v1533, %v1530
        %v1747 = vpack.c.b16 %v1537, %v1534
        %v1748 = vpack.c.b16 %v1538, %v1535
        %v1749 = vpack.c.b16 %v1539, %v1536
        %v1750 = vpack.c.b16 %v1543, %v1540
        %v1751 = vpack.c.b16 %v1544, %v1541
        %v1752 = vpack.c.b16 %v1545, %v1542
        %v1753 = vpack.c.b16 %v1549, %v1546
        %v1754 = vpack.c.b16 %v1550, %v1547
        %v1755 = vpack.c.b16 %v1551, %v1548
        %v1756 = vpack.c.b16 %v1555, %v1552
        %v1757 = vpack.c.b16 %v1556, %v1553
        %v1758 = vpack.c.b16 %v1557, %v1554
        %v1759 = vpack.c.b16 %v1561, %v1558
        %v1760 = vpack.c.b16 %v1562, %v1559
        %v1761 = vpack.c.b16 %v1563, %v1560
        %v1762 = vpack.c.b16 %v1567, %v1564
        %v1763 = vpack.c.b16 %v1568, %v1565
        %v1764 = vpack.c.b16 %v1569, %v1566
        %v1765 = vpack.c.b16 %v1573, %v1570
        %v1766 = vpack.c.b16 %v1574, %v1571
        %v1767 = vpack.c.b16 %v1575, %v1572
        %v1768 = vpack.c.b16 %v1579, %v1576
        %v1769 = vpack.c.b16 %v1580, %v1577
        %v1770 = vpack.c.b16 %v1581, %v1578
        %v1771 = vpack.c.b16 %v1585, %v1582
        %v1772 = vpack.c.b16 %v1586, %v1583
        %v1773 = vpack.c.b16 %v1587, %v1584
        %v1774 = vpack.c.b16 %v1591, %v1588
        %v1775 = vpack.c.b16 %v1592, %v1589
        %v1776 = vpack.c.b16 %v1593, %v1590
        %v1777 = vpack.c.b16 %v1597, %v1594
        %v1778 = vpack.c.b16 %v1598, %v1595
        %v1779 = vpack.c.b16 %v1599, %v1596
        %v1780 = vpack.c.b16 %v1603, %v1600
        %v1781 = vpack.c.b16 %v1604, %v1601
        %v1782 = vpack.c.b16 %v1605, %v1602
        %v1783 = vpack.c.b16 %v1609, %v1606
        %v1784 = vpack.c.b16 %v1610, %v1607
        %v1785 = vpack.c.b16 %v1611, %v1608
        %v1786 = vpack.c.b16 %v1615, %v1612
        %v1787 = vpack.c.b16 %v1616, %v1613
        %v1788 = vpack.c.b16 %v1617, %v1614
        %v1789 = vpack.c.b16 %v1621, %v1618
        %v1790 = vpack.c.b16 %v1622, %v1619
        %v1791 = vpack.c.b16 %v1623, %v1620
        %v1792 = vpack.c.b16 %v1627, %v1624
        %v1793 = vpack.c.b16 %v1628, %v1625
        %v1794 = vpack.c.b16 %v1629, %v1626
        %v1795 = vpack.c.b16 %v1633, %v1630
        %v1796 = vpack.c.b16 %v1634, %v1631
        %v1797 = vpack.c.b16 %v1635, %v1632
        %v1798 = vpack.c.b16 %v1639, %v1636
        %v1799 = vpack.c.b16 %v1640, %v1637
        %v1800 = vpack.c.b16 %v1641, %v1638
        %v1801 = vpack.c.b16 %v1645, %v1642
        %v1802 = vpack.c.b16 %v1646, %v1643
        %v1803 = vpack.c.b16 %v1647, %v1644
        %v1804 = vpack.c.b16 %v1651, %v1648
        %v1805 = vpack.c.b16 %v1652, %v1649
        %v1806 = vpack.c.b16 %v1653, %v1650
        %v1807 = vpack.c.b16 %v1657, %v1654
        %v1808 = vpack.c.b16 %v1658, %v1655
        %v1809 = vpack.c.b16 %v1659, %v1656
        %v1810 = vpack.c.b16 %v1663, %v1660
        %v1811 = vpack.c.b16 %v1664, %v1661
        %v1812 = vpack.c.b16 %v1665, %v1662
        %v1813 = vpack.c.b16 %v1669, %v1666
        %v1814 = vpack.c.b16 %v1670, %v1667
        %v1815 = vpack.c.b16 %v1671, %v1668
        %1960 = vmatprep.subr.bf16.mxu0 %v1673
        %1961 = vmatpush1.bf16.msra.mxu0 %v1672
        %1962 = vmatprep.subr.bf16.mxu0 %v1676
        %1963 = vmatpush1.bf16.msra.mxu0 %v1675
        %1964 = vmatprep.subr.bf16.mxu0 %v1679
        %1965 = vmatpush1.bf16.msra.mxu0 %v1678
        %1966 = vmatprep.subr.bf16.mxu0 %v1682
        %1967 = vmatpush1.bf16.msra.mxu0 %v1681
        %1968 = vmatprep.subr.bf16.mxu0 %v1685
        %1969 = vmatpush1.bf16.msra.mxu0 %v1684
        %1970 = vmatprep.subr.bf16.mxu0 %v1688
        %1971 = vmatpush1.bf16.msra.mxu0 %v1687
        %1972 = vmatprep.subr.bf16.mxu0 %v1691
        %1973 = vmatpush1.bf16.msra.mxu0 %v1690
        %1974 = vmatprep.subr.bf16.mxu0 %v1694
        %1975 = vmatpush1.bf16.msra.mxu0 %v1693
        %1976 = vmatprep.subr.bf16.mxu0 %v1697
        %1977 = vmatpush1.bf16.msra.mxu0 %v1696
        %1978 = vmatprep.subr.bf16.mxu0 %v1700
        %1979 = vmatpush1.bf16.msra.mxu0 %v1699
        %1980 = vmatprep.subr.bf16.mxu0 %v1703
        %1981 = vmatpush1.bf16.msra.mxu0 %v1702
        %1982 = vmatprep.subr.bf16.mxu0 %v1706
        %1983 = vmatpush1.bf16.msra.mxu0 %v1705
        %1984 = vmatprep.subr.bf16.mxu0 %v1709
        %1985 = vmatpush1.bf16.msra.mxu0 %v1708
        %1986 = vmatprep.subr.bf16.mxu0 %v1712
        %1987 = vmatpush1.bf16.msra.mxu0 %v1711
        %1988 = vmatprep.subr.bf16.mxu0 %v1715
        %1989 = vmatpush1.bf16.msra.mxu0 %v1714
        %1990 = vmatprep.subr.bf16.mxu0 %v1718
        %1991 = vmatpush1.bf16.msra.mxu0 %v1717
        %1992 = vmatprep.mubr.bf16.mxu0 %v1181
        %1993 = vmatmul.mubr.bf16.gmra.mrb[0].mxu0 %v1180
        %v1994 = vpop.f32.mrb[0].mxu0
        %v1995 = vadd.f32 %v1159, %v1994
        %v1996 = vpop.f32.mrb[0].mxu0
        %v1997 = vadd.f32 %v1163, %v1996
        %v1998 = vpop.f32.mrb[0].mxu0
        %v1999 = vpop.f32.mrb[0].mxu0
        %2000 = vdwg.mxu0
        %2001 = vmatprep.subr.bf16.mxu0 %v1721
        %2002 = vmatpush1.bf16.msra.mxu0 %v1720
        %2003 = vmatprep.subr.bf16.mxu0 %v1724
        %2004 = vmatpush1.bf16.msra.mxu0 %v1723
        %2005 = vmatprep.subr.bf16.mxu0 %v1727
        %2006 = vmatpush1.bf16.msra.mxu0 %v1726
        %2007 = vmatprep.subr.bf16.mxu0 %v1730
        %2008 = vmatpush1.bf16.msra.mxu0 %v1729
        %2009 = vmatprep.subr.bf16.mxu0 %v1733
        %2010 = vmatpush1.bf16.msra.mxu0 %v1732
        %2011 = vmatprep.subr.bf16.mxu0 %v1736
        %2012 = vmatpush1.bf16.msra.mxu0 %v1735
        %2013 = vmatprep.subr.bf16.mxu0 %v1739
        %2014 = vmatpush1.bf16.msra.mxu0 %v1738
        %2015 = vmatprep.subr.bf16.mxu0 %v1742
        %2016 = vmatpush1.bf16.msra.mxu0 %v1741
        %2017 = vmatprep.subr.bf16.mxu0 %v1745
        %2018 = vmatpush1.bf16.msra.mxu0 %v1744
        %2019 = vmatprep.subr.bf16.mxu0 %v1748
        %2020 = vmatpush1.bf16.msra.mxu0 %v1747
        %2021 = vmatprep.subr.bf16.mxu0 %v1751
        %2022 = vmatpush1.bf16.msra.mxu0 %v1750
        %2023 = vmatprep.subr.bf16.mxu0 %v1754
        %2024 = vmatpush1.bf16.msra.mxu0 %v1753
        %2025 = vmatprep.subr.bf16.mxu0 %v1757
        %2026 = vmatpush1.bf16.msra.mxu0 %v1756
        %2027 = vmatprep.subr.bf16.mxu0 %v1760
        %2028 = vmatpush1.bf16.msra.mxu0 %v1759
        %2029 = vmatprep.subr.bf16.mxu0 %v1763
        %2030 = vmatpush1.bf16.msra.mxu0 %v1762
        %2031 = vmatprep.subr.bf16.mxu0 %v1766
        %2032 = vmatpush1.bf16.msra.mxu0 %v1765
        %2033 = vmatprep.mubr.bf16.mxu0 %v1183
        %2034 = vmatmul.mubr.bf16.gmra.mrb[0].mxu0 %v1182
        %v2035 = vpop.f32.mrb[0].mxu0
        %v2036 = vadd.f32 %v1995, %v2035
        %v2037 = vpop.f32.mrb[0].mxu0
        %v2038 = vadd.f32 %v1997, %v2037
        %v2039 = vpop.f32.mrb[0].mxu0
        %v2040 = vpop.f32.mrb[0].mxu0
        %2041 = vdwg.mxu0
        %2042 = vmatprep.subr.bf16.mxu0 %v1769
        %2043 = vmatpush1.bf16.msra.mxu0 %v1768
        %2044 = vmatprep.subr.bf16.mxu0 %v1772
        %2045 = vmatpush1.bf16.msra.mxu0 %v1771
        %2046 = vmatprep.subr.bf16.mxu0 %v1775
        %2047 = vmatpush1.bf16.msra.mxu0 %v1774
        %2048 = vmatprep.subr.bf16.mxu0 %v1778
        %2049 = vmatpush1.bf16.msra.mxu0 %v1777
        %2050 = vmatprep.subr.bf16.mxu0 %v1781
        %2051 = vmatpush1.bf16.msra.mxu0 %v1780
        %2052 = vmatprep.subr.bf16.mxu0 %v1784
        %2053 = vmatpush1.bf16.msra.mxu0 %v1783
        %2054 = vmatprep.subr.bf16.mxu0 %v1787
        %2055 = vmatpush1.bf16.msra.mxu0 %v1786
        %2056 = vmatprep.subr.bf16.mxu0 %v1790
        %2057 = vmatpush1.bf16.msra.mxu0 %v1789
        %2058 = vmatprep.subr.bf16.mxu0 %v1793
        %2059 = vmatpush1.bf16.msra.mxu0 %v1792
        %2060 = vmatprep.subr.bf16.mxu0 %v1796
        %2061 = vmatpush1.bf16.msra.mxu0 %v1795
        %2062 = vmatprep.subr.bf16.mxu0 %v1799
        %2063 = vmatpush1.bf16.msra.mxu0 %v1798
        %2064 = vmatprep.subr.bf16.mxu0 %v1802
        %2065 = vmatpush1.bf16.msra.mxu0 %v1801
        %2066 = vmatprep.subr.bf16.mxu0 %v1805
        %2067 = vmatpush1.bf16.msra.mxu0 %v1804
        %2068 = vmatprep.subr.bf16.mxu0 %v1808
        %2069 = vmatpush1.bf16.msra.mxu0 %v1807
        %2070 = vmatprep.subr.bf16.mxu0 %v1811
        %2071 = vmatpush1.bf16.msra.mxu0 %v1810
        %2072 = vmatprep.subr.bf16.mxu0 %v1814
        %2073 = vmatpush1.bf16.msra.mxu0 %v1813
        %2074 = vmatprep.mubr.bf16.mxu0 %v1185
        %2075 = vmatmul.mubr.bf16.gmra.mrb[0].mxu0 %v1184
        %v2076 = vpop.f32.mrb[0].mxu0
        %v2077 = vadd.f32 %v2036, %v2076
        %v2078 = vpop.f32.mrb[0].mxu0
        %v2079 = vadd.f32 %v2038, %v2078
        %v2080 = vpop.f32.mrb[0].mxu0
        %v2081 = vpop.f32.mrb[0].mxu0
        %2082 = vdwg.mxu0
        %2083 = vmatprep.subr.bf16.mxu0 0
        %2084 = vmatpush1.bf16.msra.mxu0 %v1674
        %2085 = vmatprep.subr.bf16.mxu0 0
        %2086 = vmatpush1.bf16.msra.mxu0 %v1677
        %2087 = vmatprep.subr.bf16.mxu0 0
        %2088 = vmatpush1.bf16.msra.mxu0 %v1680
        %2089 = vmatprep.subr.bf16.mxu0 0
        %2090 = vmatpush1.bf16.msra.mxu0 %v1683
        %2091 = vmatprep.subr.bf16.mxu0 0
        %2092 = vmatpush1.bf16.msra.mxu0 %v1686
        %2093 = vmatprep.subr.bf16.mxu0 0
        %2094 = vmatpush1.bf16.msra.mxu0 %v1689
        %2095 = vmatprep.subr.bf16.mxu0 0
        %2096 = vmatpush1.bf16.msra.mxu0 %v1692
        %2097 = vmatprep.subr.bf16.mxu0 0
        %2098 = vmatpush1.bf16.msra.mxu0 %v1695
        %2099 = vmatprep.subr.bf16.mxu0 0
        %2100 = vmatpush1.bf16.msra.mxu0 %v1698
        %2101 = vmatprep.subr.bf16.mxu0 0
        %2102 = vmatpush1.bf16.msra.mxu0 %v1701
        %2103 = vmatprep.subr.bf16.mxu0 0
        %2104 = vmatpush1.bf16.msra.mxu0 %v1704
        %2105 = vmatprep.subr.bf16.mxu0 0
        %2106 = vmatpush1.bf16.msra.mxu0 %v1707
        %2107 = vmatprep.subr.bf16.mxu0 0
        %2108 = vmatpush1.bf16.msra.mxu0 %v1710
        %2109 = vmatprep.subr.bf16.mxu0 0
        %2110 = vmatpush1.bf16.msra.mxu0 %v1713
        %2111 = vmatprep.subr.bf16.mxu0 0
        %2112 = vmatpush1.bf16.msra.mxu0 %v1716
        %2113 = vmatprep.subr.bf16.mxu0 0
        %2114 = vmatpush1.bf16.msra.mxu0 %v1719
        %2115 = vmatprep.mubr.bf16.mxu0 %v1181
        %2116 = vmatmul.mubr.bf16.gmra.mrb[0].mxu0 %v1180
        %v2117 = vpop.f32.mrb[0].mxu0
        %v2118 = vadd.f32 %v1167, %v2117
        %v2119 = vpop.f32.mrb[0].mxu0
        %v2120 = vpop.f32.mrb[0].mxu0
        %v2121 = vpop.f32.mrb[0].mxu0
        %2122 = vdwg.mxu0
        %2123 = vmatprep.subr.bf16.mxu0 0
        %2124 = vmatpush1.bf16.msra.mxu0 %v1722
        %2125 = vmatprep.subr.bf16.mxu0 0
        %2126 = vmatpush1.bf16.msra.mxu0 %v1725
        %2127 = vmatprep.subr.bf16.mxu0 0
        %2128 = vmatpush1.bf16.msra.mxu0 %v1728
        %2129 = vmatprep.subr.bf16.mxu0 0
        %2130 = vmatpush1.bf16.msra.mxu0 %v1731
        %2131 = vmatprep.subr.bf16.mxu0 0
        %2132 = vmatpush1.bf16.msra.mxu0 %v1734
        %2133 = vmatprep.subr.bf16.mxu0 0
        %2134 = vmatpush1.bf16.msra.mxu0 %v1737
        %2135 = vmatprep.subr.bf16.mxu0 0
        %2136 = vmatpush1.bf16.msra.mxu0 %v1740
        %2137 = vmatprep.subr.bf16.mxu0 0
        %2138 = vmatpush1.bf16.msra.mxu0 %v1743
        %2139 = vmatprep.subr.bf16.mxu0 0
        %2140 = vmatpush1.bf16.msra.mxu0 %v1746
        %2141 = vmatprep.subr.bf16.mxu0 0
        %2142 = vmatpush1.bf16.msra.mxu0 %v1749
        %2143 = vmatprep.subr.bf16.mxu0 0
        %2144 = vmatpush1.bf16.msra.mxu0 %v1752
        %2145 = vmatprep.subr.bf16.mxu0 0
        %2146 = vmatpush1.bf16.msra.mxu0 %v1755
        %2147 = vmatprep.subr.bf16.mxu0 0
        %2148 = vmatpush1.bf16.msra.mxu0 %v1758
        %2149 = vmatprep.subr.bf16.mxu0 0
        %2150 = vmatpush1.bf16.msra.mxu0 %v1761
        %2151 = vmatprep.subr.bf16.mxu0 0
        %2152 = vmatpush1.bf16.msra.mxu0 %v1764
        %2153 = vmatprep.subr.bf16.mxu0 0
        %2154 = vmatpush1.bf16.msra.mxu0 %v1767
        %2155 = vmatprep.mubr.bf16.mxu0 %v1183
        %2156 = vmatmul.mubr.bf16.gmra.mrb[0].mxu0 %v1182
        %v2157 = vpop.f32.mrb[0].mxu0
        %v2158 = vadd.f32 %v2118, %v2157
        %v2159 = vpop.f32.mrb[0].mxu0
        %v2160 = vpop.f32.mrb[0].mxu0
        %v2161 = vpop.f32.mrb[0].mxu0
        %2162 = vdwg.mxu0
        %2163 = vmatprep.subr.bf16.mxu0 0
        %2164 = vmatpush1.bf16.msra.mxu0 %v1770
        %2165 = vmatprep.subr.bf16.mxu0 0
        %2166 = vmatpush1.bf16.msra.mxu0 %v1773
        %2167 = vmatprep.subr.bf16.mxu0 0
        %2168 = vmatpush1.bf16.msra.mxu0 %v1776
        %2169 = vmatprep.subr.bf16.mxu0 0
        %2170 = vmatpush1.bf16.msra.mxu0 %v1779
        %2171 = vmatprep.subr.bf16.mxu0 0
        %2172 = vmatpush1.bf16.msra.mxu0 %v1782
        %2173 = vmatprep.subr.bf16.mxu0 0
        %2174 = vmatpush1.bf16.msra.mxu0 %v1785
        %2175 = vmatprep.subr.bf16.mxu0 0
        %2176 = vmatpush1.bf16.msra.mxu0 %v1788
        %2177 = vmatprep.subr.bf16.mxu0 0
        %2178 = vmatpush1.bf16.msra.mxu0 %v1791
        %2179 = vmatprep.subr.bf16.mxu0 0
        %2180 = vmatpush1.bf16.msra.mxu0 %v1794
        %2181 = vmatprep.subr.bf16.mxu0 0
        %2182 = vmatpush1.bf16.msra.mxu0 %v1797
        %2183 = vmatprep.subr.bf16.mxu0 0
        %2184 = vmatpush1.bf16.msra.mxu0 %v1800
        %2185 = vmatprep.subr.bf16.mxu0 0
        %2186 = vmatpush1.bf16.msra.mxu0 %v1803
        %2187 = vmatprep.subr.bf16.mxu0 0
        %2188 = vmatpush1.bf16.msra.mxu0 %v1806
        %2189 = vmatprep.subr.bf16.mxu0 0
        %2190 = vmatpush1.bf16.msra.mxu0 %v1809
        %2191 = vmatprep.subr.bf16.mxu0 0
        %2192 = vmatpush1.bf16.msra.mxu0 %v1812
        %2193 = vmatprep.subr.bf16.mxu0 0
        %2194 = vmatpush1.bf16.msra.mxu0 %v1815
        %2195 = vmatprep.mubr.bf16.mxu0 %v1185
        %2196 = vmatmul.mubr.bf16.gmra.mrb[0].mxu0 %v1184
        %v2197 = vpop.f32.mrb[0].mxu0
        %v2198 = vadd.f32 %v2158, %v2197
        %v2199 = vpop.f32.mrb[0].mxu0
        %v2200 = vpop.f32.mrb[0].mxu0
        %v2201 = vpop.f32.mrb[0].mxu0
        %2202 = vdwg.mxu0
        %v2203 = vmax.f32 %v2077, 0.0
        %v2204 = vmax.f32 %v2079, 0.0
        %v2205 = vmax.f32 %v2198, 0.0
        %v2206 = vpack.c.bf16 %v2203, %v2203
        %v2207 = vpack.c.bf16 %v2204, %v2204
        %v2208 = vpack.c.bf16 %v2205, %v2205
        %v2209 = vld [vmem:[%s6] sm:$0xf]
        %v2210 = vld [vmem:[%s6 + $0x4] sm:$0xf]
        %v2211 = vld [vmem:[%s6 + $0x8] sm:$0xf]
        %v2212 = vld [vmem:[%s6 + $0xc] sm:$0xf]
        %v2213 = vld [vmem:[%s6 + $0x10] sm:$0xf]
        %v2214 = vld [vmem:[%s6 + $0x14] sm:$0xf]
        %v2215 = vld [vmem:[%s6 + $0x18] sm:$0xf]
        %v2216 = vld [vmem:[%s6 + $0x1c] sm:$0xf]
        %v2217 = vld [vmem:[%s6 + $0x20] sm:$0xf]
        %v2218 = vld [vmem:[%s6 + $0x24] sm:$0xf]
        %v2219 = vld [vmem:[%s6 + $0x28] sm:$0xf]
        %v2220 = vld [vmem:[%s6 + $0x2c] sm:$0xf]
        %v2221 = vld [vmem:[%s6 + $0x30] sm:$0xf]
        %v2222 = vld [vmem:[%s6 + $0x34] sm:$0xf]
        %v2223 = vld [vmem:[%s6 + $0x38] sm:$0xf]
        %v2224 = vld [vmem:[%s6 + $0x3c] sm:$0xf]
        %v2225 = vld [vmem:[%s6 + $0x40] sm:$0xf]
        %v2226 = vld [vmem:[%s6 + $0x44] sm:$0xf]
        %v2227 = vld [vmem:[%s6 + $0x48] sm:$0xf]
        %v2228 = vld [vmem:[%s6 + $0x4c] sm:$0xf]
        %v2229 = vld [vmem:[%s6 + $0x50] sm:$0xf]
        %v2230 = vld [vmem:[%s6 + $0x54] sm:$0xf]
        %v2231 = vld [vmem:[%s6 + $0x58] sm:$0xf]
        %v2232 = vld [vmem:[%s6 + $0x5c] sm:$0xf]
        %v2233 = vld [vmem:[%s6 + $0x60] sm:$0xf]
        %v2234 = vld [vmem:[%s6 + $0x64] sm:$0xf]
        %v2235 = vld [vmem:[%s6 + $0x68] sm:$0xf]
        %v2236 = vld [vmem:[%s6 + $0x6c] sm:$0xf]
        %v2237 = vld [vmem:[%s6 + $0x70] sm:$0xf]
        %v2238 = vld [vmem:[%s6 + $0x74] sm:$0xf]
        %v2239 = vld [vmem:[%s6 + $0x78] sm:$0xf]
        %v2240 = vld [vmem:[%s6 + $0x7c] sm:$0xf]
        %v2241 = vld [vmem:[%s6 + $0x80] sm:$0xf]
        %v2242 = vld [vmem:[%s6 + $0x84] sm:$0xf]
        %v2243 = vld [vmem:[%s6 + $0x88] sm:$0xf]
        %v2244 = vld [vmem:[%s6 + $0x8c] sm:$0xf]
        %v2245 = vld [vmem:[%s6 + $0x90] sm:$0xf]
        %v2246 = vld [vmem:[%s6 + $0x94] sm:$0xf]
        %v2247 = vld [vmem:[%s6 + $0x98] sm:$0xf]
        %v2248 = vld [vmem:[%s6 + $0x9c] sm:$0xf]
        %v2249 = vld [vmem:[%s6 + $0xa0] sm:$0xf]
        %v2250 = vld [vmem:[%s6 + $0xa4] sm:$0xf]
        %v2251 = vld [vmem:[%s6 + $0xa8] sm:$0xf]
        %v2252 = vld [vmem:[%s6 + $0xac] sm:$0xf]
        %v2253 = vld [vmem:[%s6 + $0xb0] sm:$0xf]
        %v2254 = vld [vmem:[%s6 + $0xb4] sm:$0xf]
        %v2255 = vld [vmem:[%s6 + $0xb8] sm:$0xf]
        %v2256 = vld [vmem:[%s6 + $0xbc] sm:$0xf]
        %v2257 = vld [vmem:[#allocation2] sm:$0x1]
        %v2259 = vlaneseq
        %v2260 = vshrl.u32 %v2259, 7
        %v2261 = vsub.s32 0, %v2260
        %v2262 = vrot.slane %v2257, %v2261
        %v2312 = vunpack.c.l.b16 %v2209
        %v2313 = vunpack.c.l.b16 %v2210
        %v2314 = vunpack.c.l.b16 %v2211
        %v2315 = vunpack.c.l.b16 %v2212
        %v2316 = vunpack.c.l.b16 %v2213
        %v2317 = vunpack.c.l.b16 %v2214
        %v2318 = vunpack.c.l.b16 %v2215
        %v2319 = vunpack.c.l.b16 %v2216
        %v2320 = vunpack.c.l.b16 %v2217
        %v2321 = vunpack.c.l.b16 %v2218
        %v2322 = vunpack.c.l.b16 %v2219
        %v2323 = vunpack.c.l.b16 %v2220
        %v2324 = vunpack.c.l.b16 %v2221
        %v2325 = vunpack.c.l.b16 %v2222
        %v2326 = vunpack.c.l.b16 %v2223
        %v2327 = vunpack.c.l.b16 %v2224
        %v2328 = vunpack.c.l.b16 %v2225
        %v2329 = vunpack.c.l.b16 %v2226
        %v2330 = vunpack.c.l.b16 %v2227
        %v2331 = vunpack.c.l.b16 %v2228
        %v2332 = vunpack.c.l.b16 %v2229
        %v2333 = vunpack.c.l.b16 %v2230
        %v2334 = vunpack.c.l.b16 %v2231
        %v2335 = vunpack.c.l.b16 %v2232
        %v2336 = vunpack.c.l.b16 %v2233
        %v2337 = vunpack.c.l.b16 %v2234
        %v2338 = vunpack.c.l.b16 %v2235
        %v2339 = vunpack.c.l.b16 %v2236
        %v2340 = vunpack.c.l.b16 %v2237
        %v2341 = vunpack.c.l.b16 %v2238
        %v2342 = vunpack.c.l.b16 %v2239
        %v2343 = vunpack.c.l.b16 %v2240
        %v2344 = vunpack.c.l.b16 %v2241
        %v2345 = vunpack.c.l.b16 %v2242
        %v2346 = vunpack.c.l.b16 %v2243
        %v2347 = vunpack.c.l.b16 %v2244
        %v2348 = vunpack.c.l.b16 %v2245
        %v2349 = vunpack.c.l.b16 %v2246
        %v2350 = vunpack.c.l.b16 %v2247
        %v2351 = vunpack.c.l.b16 %v2248
        %v2352 = vunpack.c.l.b16 %v2249
        %v2353 = vunpack.c.l.b16 %v2250
        %v2354 = vunpack.c.l.b16 %v2251
        %v2355 = vunpack.c.l.b16 %v2252
        %v2356 = vunpack.c.l.b16 %v2253
        %v2357 = vunpack.c.l.b16 %v2254
        %v2358 = vunpack.c.l.b16 %v2255
        %v2359 = vunpack.c.l.b16 %v2256
        %v2360 = vpack.c.b16 %v2313, %v2312
        %v2361 = vpack.c.b16 %v2315, %v2314
        %v2362 = vpack.c.b16 %v2317, %v2316
        %v2363 = vpack.c.b16 %v2319, %v2318
        %v2364 = vpack.c.b16 %v2321, %v2320
        %v2365 = vpack.c.b16 %v2323, %v2322
        %v2366 = vpack.c.b16 %v2325, %v2324
        %v2367 = vpack.c.b16 %v2327, %v2326
        %v2368 = vpack.c.b16 %v2329, %v2328
        %v2369 = vpack.c.b16 %v2331, %v2330
        %v2370 = vpack.c.b16 %v2333, %v2332
        %v2371 = vpack.c.b16 %v2335, %v2334
        %v2372 = vpack.c.b16 %v2337, %v2336
        %v2373 = vpack.c.b16 %v2339, %v2338
        %v2374 = vpack.c.b16 %v2341, %v2340
        %v2375 = vpack.c.b16 %v2343, %v2342
        %v2376 = vpack.c.b16 %v2345, %v2344
        %v2377 = vpack.c.b16 %v2347, %v2346
        %v2378 = vpack.c.b16 %v2349, %v2348
        %v2379 = vpack.c.b16 %v2351, %v2350
        %v2380 = vpack.c.b16 %v2353, %v2352
        %v2381 = vpack.c.b16 %v2355, %v2354
        %v2382 = vpack.c.b16 %v2357, %v2356
        %v2383 = vpack.c.b16 %v2359, %v2358
        %2408 = vmatprep.subr.bf16.mxu0 0
        %2409 = vmatpush1.bf16.msra.mxu0 %v2360
        %2410 = vmatprep.subr.bf16.mxu0 0
        %2411 = vmatpush1.bf16.msra.mxu0 %v2361
        %2412 = vmatprep.subr.bf16.mxu0 0
        %2413 = vmatpush1.bf16.msra.mxu0 %v2362
        %2414 = vmatprep.subr.bf16.mxu0 0
        %2415 = vmatpush1.bf16.msra.mxu0 %v2363
        %2416 = vmatprep.subr.bf16.mxu0 0
        %2417 = vmatpush1.bf16.msra.mxu0 %v2364
        %2418 = vmatprep.subr.bf16.mxu0 0
        %2419 = vmatpush1.bf16.msra.mxu0 %v2365
        %2420 = vmatprep.subr.bf16.mxu0 0
        %2421 = vmatpush1.bf16.msra.mxu0 %v2366
        %2422 = vmatprep.subr.bf16.mxu0 0
        %2423 = vmatpush1.bf16.msra.mxu0 %v2367
        %2424 = vmatprep.subr.bf16.mxu0 0
        %2425 = vmatpush1.bf16.msra.mxu0 %v2368
        %2426 = vmatprep.subr.bf16.mxu0 0
        %2427 = vmatpush1.bf16.msra.mxu0 %v2369
        %2428 = vmatprep.subr.bf16.mxu0 0
        %2429 = vmatpush1.bf16.msra.mxu0 %v2370
        %2430 = vmatprep.subr.bf16.mxu0 0
        %2431 = vmatpush1.bf16.msra.mxu0 %v2371
        %2432 = vmatprep.subr.bf16.mxu0 0
        %2433 = vmatpush1.bf16.msra.mxu0 %v2372
        %2434 = vmatprep.subr.bf16.mxu0 0
        %2435 = vmatpush1.bf16.msra.mxu0 %v2373
        %2436 = vmatprep.subr.bf16.mxu0 0
        %2437 = vmatpush1.bf16.msra.mxu0 %v2374
        %2438 = vmatprep.subr.bf16.mxu0 0
        %2439 = vmatpush1.bf16.msra.mxu0 %v2375
        %2440 = vmatprep.mubr.bf16.mxu0 %v2207
        %2441 = vmatmul.mubr.bf16.gmra.mrb[0].mxu0 %v2206
        %v2442 = vpop.f32.mrb[0].mxu0
        %v2443 = vadd.f32 %v2262, %v2442
        %v2444 = vpop.f32.mrb[0].mxu0
        %v2445 = vpop.f32.mrb[0].mxu0
        %v2446 = vpop.f32.mrb[0].mxu0
        %2447 = vdwg.mxu0
        %2448 = vmatprep.subr.bf16.mxu0 0
        %2449 = vmatpush1.bf16.msra.mxu0 %v2376
        %2450 = vmatprep.subr.bf16.mxu0 0
        %2451 = vmatpush1.bf16.msra.mxu0 %v2377
        %2452 = vmatprep.subr.bf16.mxu0 0
        %2453 = vmatpush1.bf16.msra.mxu0 %v2378
        %2454 = vmatprep.subr.bf16.mxu0 0
        %2455 = vmatpush1.bf16.msra.mxu0 %v2379
        %2456 = vmatprep.subr.bf16.mxu0 0
        %2457 = vmatpush1.bf16.msra.mxu0 %v2380
        %2458 = vmatprep.subr.bf16.mxu0 0
        %2459 = vmatpush1.bf16.msra.mxu0 %v2381
        %2460 = vmatprep.subr.bf16.mxu0 0
        %2461 = vmatpush1.bf16.msra.mxu0 %v2382
        %2462 = vmatprep.subr.bf16.mxu0 0
        %2463 = vmatpush1.bf16.msra.mxu0 %v2383
        %2464 = vmatprep.subr.bf16.mxu0 0
        %2465 = vmatpush1.bf16.msra.mxu0 0
        %2466 = vmatprep.subr.bf16.mxu0 0
        %2467 = vmatpush1.bf16.msra.mxu0 0
        %2468 = vmatprep.subr.bf16.mxu0 0
        %2469 = vmatpush1.bf16.msra.mxu0 0
        %2470 = vmatprep.subr.bf16.mxu0 0
        %2471 = vmatpush1.bf16.msra.mxu0 0
        %2472 = vmatprep.subr.bf16.mxu0 0
        %2473 = vmatpush1.bf16.msra.mxu0 0
        %2474 = vmatprep.subr.bf16.mxu0 0
        %2475 = vmatpush1.bf16.msra.mxu0 0
        %2476 = vmatprep.subr.bf16.mxu0 0
        %2477 = vmatpush1.bf16.msra.mxu0 0
        %2478 = vmatprep.subr.bf16.mxu0 0
        %2479 = vmatpush1.bf16.msra.mxu0 0
        %2480 = vmatprep.mubr.bf16.mxu0 0
        %2481 = vmatmul.mubr.bf16.gmra.mrb[0].mxu0 %v2208
        %v2482 = vpop.f32.mrb[0].mxu0
        %v2483 = vadd.f32 %v2443, %v2482
        %v2484 = vpop.f32.mrb[0].mxu0
        %v2485 = vpop.f32.mrb[0].mxu0
        %v2486 = vpop.f32.mrb[0].mxu0
        %2487 = vdwg.mxu0
        %v2488 = vmax.f32 %v2483, 0.0
        %v2489 = vld [vmem:[%s946] sm:$0xff]
        %2491 = vrot.lane.b32.xlu0 %v2489, 32
        %v2492 = vpop.permute.xlu0 %2491
        %vm2494 = vcmask 261120
        %v2495 = vsel %vm2494, %v2488, %v2492
        %v2497 = vrot.slane %v2495, 7
        %vm2499 = vcmask 1040384
        %v2500 = vsel %vm2499, 0.0, %v2497
        %v2501 = vsel %vm2499, %v2497, 0.0
        %v2502 = vld [vmem:[%s3] sm:$0xff]
        %v2503 = vld [vmem:[%s3 + $0x8] sm:$0xff]
        %v2504 = vadd.f32 %v2500, %v2502
        %v2505 = vadd.f32 %v2501, %v2503
        %v2506 = vpack.c.bf16 %v2505, %v2504
        %v2507 = vld [vmem:[%s8] sm:$0xff]
        %v2508 = vld [vmem:[%s8 + $0x8] sm:$0xf]
        %v2509 = vld [vmem:[%s8 + $0xc] sm:$0xff]
        %v2510 = vld [vmem:[%s8 + $0x14] sm:$0xf]
        %v2511 = vld [vmem:[%s8 + $0x18] sm:$0xff]
        %v2512 = vld [vmem:[%s8 + $0x20] sm:$0xf]
        %v2513 = vld [vmem:[%s8 + $0x24] sm:$0xff]
        %v2514 = vld [vmem:[%s8 + $0x2c] sm:$0xf]
        %v2515 = vld [vmem:[%s8 + $0x30] sm:$0xff]
        %v2516 = vld [vmem:[%s8 + $0x38] sm:$0xf]
        %v2517 = vld [vmem:[%s8 + $0x3c] sm:$0xff]
        %v2518 = vld [vmem:[%s8 + $0x44] sm:$0xf]
        %v2519 = vld [vmem:[%s8 + $0x48] sm:$0xff]
        %v2520 = vld [vmem:[%s8 + $0x50] sm:$0xf]
        %v2521 = vld [vmem:[%s8 + $0x54] sm:$0xff]
        %v2522 = vld [vmem:[%s8 + $0x5c] sm:$0xf]
        %v2523 = vld [vmem:[%s8 + $0x60] sm:$0xff]
        %v2524 = vld [vmem:[%s8 + $0x68] sm:$0xf]
        %v2525 = vld [vmem:[%s8 + $0x6c] sm:$0xff]
        %v2526 = vld [vmem:[%s8 + $0x74] sm:$0xf]
        %v2527 = vld [vmem:[%s8 + $0x78] sm:$0xff]
        %v2528 = vld [vmem:[%s8 + $0x80] sm:$0xf]
        %v2529 = vld [vmem:[%s8 + $0x84] sm:$0xff]
        %v2530 = vld [vmem:[%s8 + $0x8c] sm:$0xf]
        %v2531 = vld [vmem:[#allocation4] sm:$0x7]
        %v2533 = vlaneseq
        %v2534 = vshrl.u32 %v2533, 7
        %v2535 = vsub.s32 0, %v2534
        %v2536 = vrot.slane %v2531, %v2535
        %v2537 = vlaneseq
        %v2538 = vshrl.u32 %v2537, 7
        %v2539 = vsub.s32 1, %v2538
        %v2540 = vrot.slane %v2531, %v2539
        %v2541 = vlaneseq
        %v2542 = vshrl.u32 %v2541, 7
        %v2543 = vsub.s32 2, %v2542
        %v2544 = vrot.slane %v2531, %v2543
        %v2572 = vunpack.c.l.b16 %v2507
        %v2573 = vunpack.c.h.b16 %v2507
        %v2574 = vunpack.c.l.b16 %v2508
        %v2575 = vunpack.c.l.b16 %v2509
        %v2576 = vunpack.c.h.b16 %v2509
        %v2577 = vunpack.c.l.b16 %v2510
        %v2578 = vunpack.c.l.b16 %v2511
        %v2579 = vunpack.c.h.b16 %v2511
        %v2580 = vunpack.c.l.b16 %v2512
        %v2581 = vunpack.c.l.b16 %v2513
        %v2582 = vunpack.c.h.b16 %v2513
        %v2583 = vunpack.c.l.b16 %v2514
        %v2584 = vunpack.c.l.b16 %v2515
        %v2585 = vunpack.c.h.b16 %v2515
        %v2586 = vunpack.c.l.b16 %v2516
        %v2587 = vunpack.c.l.b16 %v2517
        %v2588 = vunpack.c.h.b16 %v2517
        %v2589 = vunpack.c.l.b16 %v2518
        %v2590 = vunpack.c.l.b16 %v2519
        %v2591 = vunpack.c.h.b16 %v2519
        %v2592 = vunpack.c.l.b16 %v2520
        %v2593 = vunpack.c.l.b16 %v2521
        %v2594 = vunpack.c.h.b16 %v2521
        %v2595 = vunpack.c.l.b16 %v2522
        %v2596 = vunpack.c.l.b16 %v2523
        %v2597 = vunpack.c.h.b16 %v2523
        %v2598 = vunpack.c.l.b16 %v2524
        %v2599 = vunpack.c.l.b16 %v2525
        %v2600 = vunpack.c.h.b16 %v2525
        %v2601 = vunpack.c.l.b16 %v2526
        %v2602 = vunpack.c.l.b16 %v2527
        %v2603 = vunpack.c.h.b16 %v2527
        %v2604 = vunpack.c.l.b16 %v2528
        %v2605 = vunpack.c.l.b16 %v2529
        %v2606 = vunpack.c.h.b16 %v2529
        %v2607 = vunpack.c.l.b16 %v2530
        %v2608 = vpack.c.b16 %v2575, %v2572
        %v2609 = vpack.c.b16 %v2576, %v2573
        %v2610 = vpack.c.b16 %v2577, %v2574
        %v2611 = vpack.c.b16 %v2581, %v2578
        %v2612 = vpack.c.b16 %v2582, %v2579
        %v2613 = vpack.c.b16 %v2583, %v2580
        %v2614 = vpack.c.b16 %v2587, %v2584
        %v2615 = vpack.c.b16 %v2588, %v2585
        %v2616 = vpack.c.b16 %v2589, %v2586
        %v2617 = vpack.c.b16 %v2593, %v2590
        %v2618 = vpack.c.b16 %v2594, %v2591
        %v2619 = vpack.c.b16 %v2595, %v2592
        %v2620 = vpack.c.b16 %v2599, %v2596
        %v2621 = vpack.c.b16 %v2600, %v2597
        %v2622 = vpack.c.b16 %v2601, %v2598
        %v2623 = vpack.c.b16 %v2605, %v2602
        %v2624 = vpack.c.b16 %v2606, %v2603
        %v2625 = vpack.c.b16 %v2607, %v2604
        %vm2644 = vcmask 785408
        %v2646 = vsel %vm2644, %v2506, 0
        %2648 = vmatprep.subr.bf16.mxu0 %v2609
        %2649 = vmatpush1.bf16.msra.mxu0 %v2608
        %2650 = vmatprep.subr.bf16.mxu0 %v2612
        %2651 = vmatpush1.bf16.msra.mxu0 %v2611
        %2652 = vmatprep.subr.bf16.mxu0 %v2615
        %2653 = vmatpush1.bf16.msra.mxu0 %v2614
        %2654 = vmatprep.subr.bf16.mxu0 %v2618
        %2655 = vmatpush1.bf16.msra.mxu0 %v2617
        %2656 = vmatprep.subr.bf16.mxu0 %v2621
        %2657 = vmatpush1.bf16.msra.mxu0 %v2620
        %2658 = vmatprep.subr.bf16.mxu0 %v2624
        %2659 = vmatpush1.bf16.msra.mxu0 %v2623
        %2660 = vmatprep.subr.bf16.mxu0 0
        %2661 = vmatpush1.bf16.msra.mxu0 0
        %2662 = vmatprep.subr.bf16.mxu0 0
        %2663 = vmatpush1.bf16.msra.mxu0 0
        %2664 = vmatprep.subr.bf16.mxu0 0
        %2665 = vmatpush1.bf16.msra.mxu0 0
        %2666 = vmatprep.subr.bf16.mxu0 0
        %2667 = vmatpush1.bf16.msra.mxu0 0
        %2668 = vmatprep.subr.bf16.mxu0 0
        %2669 = vmatpush1.bf16.msra.mxu0 0
        %2670 = vmatprep.subr.bf16.mxu0 0
        %2671 = vmatpush1.bf16.msra.mxu0 0
        %2672 = vmatprep.subr.bf16.mxu0 0
        %2673 = vmatpush1.bf16.msra.mxu0 0
        %2674 = vmatprep.subr.bf16.mxu0 0
        %2675 = vmatpush1.bf16.msra.mxu0 0
        %2676 = vmatprep.subr.bf16.mxu0 0
        %2677 = vmatpush1.bf16.msra.mxu0 0
        %2678 = vmatprep.subr.bf16.mxu0 0
        %2679 = vmatpush1.bf16.msra.mxu0 0
        %2680 = vmatprep.mubr.bf16.mxu0 0
        %2681 = vmatmul.mubr.bf16.gmra.mrb[0].mxu0 %v2646
        %v2682 = vpop.f32.mrb[0].mxu0
        %v2683 = vadd.f32 %v2536, %v2682
        %v2684 = vpop.f32.mrb[0].mxu0
        %v2685 = vadd.f32 %v2540, %v2684
        %v2686 = vpop.f32.mrb[0].mxu0
        %v2687 = vadd.f32 %v2536, %v2686
        %v2688 = vpop.f32.mrb[0].mxu0
        %v2689 = vadd.f32 %v2540, %v2688
        %2690 = vdwg.mxu0
        %2691 = vmatprep.subr.bf16.mxu0 0
        %2692 = vmatpush1.bf16.msra.mxu0 %v2610
        %2693 = vmatprep.subr.bf16.mxu0 0
        %2694 = vmatpush1.bf16.msra.mxu0 %v2613
        %2695 = vmatprep.subr.bf16.mxu0 0
        %2696 = vmatpush1.bf16.msra.mxu0 %v2616
        %2697 = vmatprep.subr.bf16.mxu0 0
        %2698 = vmatpush1.bf16.msra.mxu0 %v2619
        %2699 = vmatprep.subr.bf16.mxu0 0
        %2700 = vmatpush1.bf16.msra.mxu0 %v2622
        %2701 = vmatprep.subr.bf16.mxu0 0
        %2702 = vmatpush1.bf16.msra.mxu0 %v2625
        %2703 = vmatprep.subr.bf16.mxu0 0
        %2704 = vmatpush1.bf16.msra.mxu0 0
        %2705 = vmatprep.subr.bf16.mxu0 0
        %2706 = vmatpush1.bf16.msra.mxu0 0
        %2707 = vmatprep.subr.bf16.mxu0 0
        %2708 = vmatpush1.bf16.msra.mxu0 0
        %2709 = vmatprep.subr.bf16.mxu0 0
        %2710 = vmatpush1.bf16.msra.mxu0 0
        %2711 = vmatprep.subr.bf16.mxu0 0
        %2712 = vmatpush1.bf16.msra.mxu0 0
        %2713 = vmatprep.subr.bf16.mxu0 0
        %2714 = vmatpush1.bf16.msra.mxu0 0
        %2715 = vmatprep.subr.bf16.mxu0 0
        %2716 = vmatpush1.bf16.msra.mxu0 0
        %2717 = vmatprep.subr.bf16.mxu0 0
        %2718 = vmatpush1.bf16.msra.mxu0 0
        %2719 = vmatprep.subr.bf16.mxu0 0
        %2720 = vmatpush1.bf16.msra.mxu0 0
        %2721 = vmatprep.subr.bf16.mxu0 0
        %2722 = vmatpush1.bf16.msra.mxu0 0
        %2723 = vmatprep.mubr.bf16.mxu0 0
        %2724 = vmatmul.mubr.bf16.gmra.mrb[0].mxu0 %v2646
        %v2725 = vpop.f32.mrb[0].mxu0
        %v2726 = vadd.f32 %v2544, %v2725
        %v2727 = vpop.f32.mrb[0].mxu0
        %v2728 = vpop.f32.mrb[0].mxu0
        %v2729 = vadd.f32 %v2544, %v2728
        %v2730 = vpop.f32.mrb[0].mxu0
        %2731 = vdwg.mxu0
        %2734 = vrot.lane.b32.xlu0 %v2683, 104
        %v2735 = vpop.permute.xlu0 %2734
        %2736 = vrot.lane.b32.xlu0 %v2687, 104
        %v2737 = vpop.permute.xlu0 %2736
        %2740 = vrot.lane.b32.xlu0 %v2683, 80
        %v2741 = vpop.permute.xlu0 %2740
        %2742 = vrot.lane.b32.xlu0 %v2687, 80
        %v2743 = vpop.permute.xlu0 %2742
        %2746 = vrot.lane.b32.xlu0 %v2683, 56
        %v2747 = vpop.permute.xlu0 %2746
        %2748 = vrot.lane.b32.xlu0 %v2687, 56
        %v2749 = vpop.permute.xlu0 %2748
        %v2752 = vpack.c.bf16 %v2687, %v2683
        %v2753 = vpack.c.bf16 %v2737, %v2735
        %v2754 = vpack.c.bf16 %v2743, %v2741
        %v2755 = vpack.c.bf16 %v2749, %v2747
        %2758 = vrot.lane.b32.xlu0 %v2685, 104
        %v2759 = vpop.permute.xlu0 %2758
        %2760 = vrot.lane.b32.xlu0 %v2689, 104
        %v2761 = vpop.permute.xlu0 %2760
        %vm2762 = vcmask 850944
        %v2763 = vsel %vm2762, %v2735, %v2759
        %v2764 = vsel %vm2762, %v2737, %v2761
        %2767 = vrot.lane.b32.xlu0 %v2685, 80
        %v2768 = vpop.permute.xlu0 %2767
        %2769 = vrot.lane.b32.xlu0 %v2689, 80
        %v2770 = vpop.permute.xlu0 %2769
        %2773 = vrot.lane.b32.xlu0 %v2685, 56
        %v2774 = vpop.permute.xlu0 %2773
        %2775 = vrot.lane.b32.xlu0 %v2689, 56
        %v2776 = vpop.permute.xlu0 %2775
        %v2779 = vpack.c.bf16 %v2764, %v2763
        %v2780 = vpack.c.bf16 %v2770, %v2768
        %v2781 = vpack.c.bf16 %v2776, %v2774
        %2786 = vrot.lane.b32.xlu0 %v2726, 80
        %v2787 = vpop.permute.xlu0 %2786
        %2788 = vrot.lane.b32.xlu0 %v2729, 80
        %v2789 = vpop.permute.xlu0 %2788
        %vm2790 = vcmask 654336
        %v2791 = vsel %vm2790, %v2768, %v2787
        %v2792 = vsel %vm2790, %v2770, %v2789
        %2795 = vrot.lane.b32.xlu0 %v2726, 56
        %v2796 = vpop.permute.xlu0 %2795
        %2797 = vrot.lane.b32.xlu0 %v2729, 56
        %v2798 = vpop.permute.xlu0 %2797
        %v2801 = vpack.c.bf16 %v2689, %v2685
        %v2802 = vpack.c.bf16 %v2761, %v2759
        %v2803 = vpack.c.bf16 %v2792, %v2791
        %v2804 = vpack.c.bf16 %v2798, %v2796
        %v2805 = vld [vmem:[%s949] sm:$0x1]
        %2807 = vrot.lane.b32.xlu0 %v2752, 32
        %v2808 = vpop.permute.xlu0 %2807
        %vm2809 = vcmask 195584
        %v2811 = vsel %vm2809, %v2752, 0
        %v2814 = vsel %vm2809, %v2808, 0
        %2816 = vmatprep.subr.bf16.mxu0 0
        %2817 = vmatpush1.bf16.xpose.msra.mxu0 %v2814
        %2818 = vmatprep.subr.bf16.mxu0 0
        %2819 = vmatpush1.bf16.xpose.msra.mxu0 0
        %2820 = vmatprep.subr.bf16.mxu0 0
        %2821 = vmatpush1.bf16.xpose.msra.mxu0 0
        %2822 = vmatprep.subr.bf16.mxu0 0
        %2823 = vmatpush1.bf16.xpose.msra.mxu0 0
        %2824 = vmatprep.subr.bf16.mxu0 0
        %2825 = vmatpush1.bf16.xpose.msra.mxu0 0
        %2826 = vmatprep.subr.bf16.mxu0 0
        %2827 = vmatpush1.bf16.xpose.msra.mxu0 0
        %2828 = vmatprep.subr.bf16.mxu0 0
        %2829 = vmatpush1.bf16.xpose.msra.mxu0 0
        %2830 = vmatprep.subr.bf16.mxu0 0
        %2831 = vmatpush1.bf16.xpose.msra.mxu0 0
        %2832 = vmatprep.subr.bf16.mxu0 0
        %2833 = vmatpush1.bf16.xpose.msra.mxu0 0
        %2834 = vmatprep.subr.bf16.mxu0 0
        %2835 = vmatpush1.bf16.xpose.msra.mxu0 0
        %2836 = vmatprep.subr.bf16.mxu0 0
        %2837 = vmatpush1.bf16.xpose.msra.mxu0 0
        %2838 = vmatprep.subr.bf16.mxu0 0
        %2839 = vmatpush1.bf16.xpose.msra.mxu0 0
        %2840 = vmatprep.subr.bf16.mxu0 0
        %2841 = vmatpush1.bf16.xpose.msra.mxu0 0
        %2842 = vmatprep.subr.bf16.mxu0 0
        %2843 = vmatpush1.bf16.xpose.msra.mxu0 0
        %2844 = vmatprep.subr.bf16.mxu0 0
        %2845 = vmatpush1.bf16.xpose.msra.mxu0 0
        %2846 = vmatprep.subr.bf16.mxu0 0
        %2847 = vmatpush1.bf16.xpose.msra.mxu0 0
        %2848 = vmatprep.mubr.bf16.mxu0 0
        %2849 = vmatmul.mubr.bf16.gmra.mrb[0].mxu0 %v2811
        %v2850 = vpop.f32.mrb[0].mxu0
        %v2851 = vadd.f32 0.0, %v2850
        %v2852 = vpop.f32.mrb[0].mxu0
        %v2853 = vpop.f32.mrb[0].mxu0
        %v2854 = vadd.f32 0.0, %v2853
        %v2855 = vpop.f32.mrb[0].mxu0
        %2856 = vdwg.mxu0
        %2858 = vrot.lane.b32.xlu0 %v2779, 32
        %v2859 = vpop.permute.xlu0 %2858
        %v2861 = vsel %vm2809, %v2753, 0
        %v2864 = vsel %vm2809, %v2859, 0
        %2866 = vmatprep.subr.bf16.mxu0 0
        %2867 = vmatpush1.bf16.xpose.msra.mxu0 %v2864
        %2868 = vmatprep.subr.bf16.mxu0 0
        %2869 = vmatpush1.bf16.xpose.msra.mxu0 0
        %2870 = vmatprep.subr.bf16.mxu0 0
        %2871 = vmatpush1.bf16.xpose.msra.mxu0 0
        %2872 = vmatprep.subr.bf16.mxu0 0
        %2873 = vmatpush1.bf16.xpose.msra.mxu0 0
        %2874 = vmatprep.subr.bf16.mxu0 0
        %2875 = vmatpush1.bf16.xpose.msra.mxu0 0
        %2876 = vmatprep.subr.bf16.mxu0 0
        %2877 = vmatpush1.bf16.xpose.msra.mxu0 0
        %2878 = vmatprep.subr.bf16.mxu0 0
        %2879 = vmatpush1.bf16.xpose.msra.mxu0 0
        %2880 = vmatprep.subr.bf16.mxu0 0
        %2881 = vmatpush1.bf16.xpose.msra.mxu0 0
        %2882 = vmatprep.subr.bf16.mxu0 0
        %2883 = vmatpush1.bf16.xpose.msra.mxu0 0
        %2884 = vmatprep.subr.bf16.mxu0 0
        %2885 = vmatpush1.bf16.xpose.msra.mxu0 0
        %2886 = vmatprep.subr.bf16.mxu0 0
        %2887 = vmatpush1.bf16.xpose.msra.mxu0 0
        %2888 = vmatprep.subr.bf16.mxu0 0
        %2889 = vmatpush1.bf16.xpose.msra.mxu0 0
        %2890 = vmatprep.subr.bf16.mxu0 0
        %2891 = vmatpush1.bf16.xpose.msra.mxu0 0
        %2892 = vmatprep.subr.bf16.mxu0 0
        %2893 = vmatpush1.bf16.xpose.msra.mxu0 0
        %2894 = vmatprep.subr.bf16.mxu0 0
        %2895 = vmatpush1.bf16.xpose.msra.mxu0 0
        %2896 = vmatprep.subr.bf16.mxu0 0
        %2897 = vmatpush1.bf16.xpose.msra.mxu0 0
        %2898 = vmatprep.mubr.bf16.mxu0 0
        %2899 = vmatmul.mubr.bf16.gmra.mrb[0].mxu0 %v2861
        %v2900 = vpop.f32.mrb[0].mxu0
        %v2901 = vadd.f32 0.0, %v2900
        %v2902 = vpop.f32.mrb[0].mxu0
        %v2903 = vpop.f32.mrb[0].mxu0
        %v2904 = vadd.f32 0.0, %v2903
        %v2905 = vpop.f32.mrb[0].mxu0
        %2906 = vdwg.mxu0
        %2908 = vrot.lane.b32.xlu0 %v2780, 32
        %v2909 = vpop.permute.xlu0 %2908
        %v2911 = vsel %vm2809, %v2754, 0
        %v2914 = vsel %vm2809, %v2909, 0
        %2916 = vmatprep.subr.bf16.mxu0 0
        %2917 = vmatpush1.bf16.xpose.msra.mxu0 %v2914
        %2918 = vmatprep.subr.bf16.mxu0 0
        %2919 = vmatpush1.bf16.xpose.msra.mxu0 0
        %2920 = vmatprep.subr.bf16.mxu0 0
        %2921 = vmatpush1.bf16.xpose.msra.mxu0 0
        %2922 = vmatprep.subr.bf16.mxu0 0
        %2923 = vmatpush1.bf16.xpose.msra.mxu0 0
        %2924 = vmatprep.subr.bf16.mxu0 0
        %2925 = vmatpush1.bf16.xpose.msra.mxu0 0
        %2926 = vmatprep.subr.bf16.mxu0 0
        %2927 = vmatpush1.bf16.xpose.msra.mxu0 0
        %2928 = vmatprep.subr.bf16.mxu0 0
        %2929 = vmatpush1.bf16.xpose.msra.mxu0 0
        %2930 = vmatprep.subr.bf16.mxu0 0
        %2931 = vmatpush1.bf16.xpose.msra.mxu0 0
        %2932 = vmatprep.subr.bf16.mxu0 0
        %2933 = vmatpush1.bf16.xpose.msra.mxu0 0
        %2934 = vmatprep.subr.bf16.mxu0 0
        %2935 = vmatpush1.bf16.xpose.msra.mxu0 0
        %2936 = vmatprep.subr.bf16.mxu0 0
        %2937 = vmatpush1.bf16.xpose.msra.mxu0 0
        %2938 = vmatprep.subr.bf16.mxu0 0
        %2939 = vmatpush1.bf16.xpose.msra.mxu0 0
        %2940 = vmatprep.subr.bf16.mxu0 0
        %2941 = vmatpush1.bf16.xpose.msra.mxu0 0
        %2942 = vmatprep.subr.bf16.mxu0 0
        %2943 = vmatpush1.bf16.xpose.msra.mxu0 0
        %2944 = vmatprep.subr.bf16.mxu0 0
        %2945 = vmatpush1.bf16.xpose.msra.mxu0 0
        %2946 = vmatprep.subr.bf16.mxu0 0
        %2947 = vmatpush1.bf16.xpose.msra.mxu0 0
        %2948 = vmatprep.mubr.bf16.mxu0 0
        %2949 = vmatmul.mubr.bf16.gmra.mrb[0].mxu0 %v2911
        %v2950 = vpop.f32.mrb[0].mxu0
        %v2951 = vadd.f32 0.0, %v2950
        %v2952 = vpop.f32.mrb[0].mxu0
        %v2953 = vpop.f32.mrb[0].mxu0
        %v2954 = vadd.f32 0.0, %v2953
        %v2955 = vpop.f32.mrb[0].mxu0
        %2956 = vdwg.mxu0
        %2958 = vrot.lane.b32.xlu0 %v2781, 32
        %v2959 = vpop.permute.xlu0 %2958
        %v2961 = vsel %vm2809, %v2755, 0
        %v2964 = vsel %vm2809, %v2959, 0
        %2966 = vmatprep.subr.bf16.mxu0 0
        %2967 = vmatpush1.bf16.xpose.msra.mxu0 %v2964
        %2968 = vmatprep.subr.bf16.mxu0 0
        %2969 = vmatpush1.bf16.xpose.msra.mxu0 0
        %2970 = vmatprep.subr.bf16.mxu0 0
        %2971 = vmatpush1.bf16.xpose.msra.mxu0 0
        %2972 = vmatprep.subr.bf16.mxu0 0
        %2973 = vmatpush1.bf16.xpose.msra.mxu0 0
        %2974 = vmatprep.subr.bf16.mxu0 0
        %2975 = vmatpush1.bf16.xpose.msra.mxu0 0
        %2976 = vmatprep.subr.bf16.mxu0 0
        %2977 = vmatpush1.bf16.xpose.msra.mxu0 0
        %2978 = vmatprep.subr.bf16.mxu0 0
        %2979 = vmatpush1.bf16.xpose.msra.mxu0 0
        %2980 = vmatprep.subr.bf16.mxu0 0
        %2981 = vmatpush1.bf16.xpose.msra.mxu0 0
        %2982 = vmatprep.subr.bf16.mxu0 0
        %2983 = vmatpush1.bf16.xpose.msra.mxu0 0
        %2984 = vmatprep.subr.bf16.mxu0 0
        %2985 = vmatpush1.bf16.xpose.msra.mxu0 0
        %2986 = vmatprep.subr.bf16.mxu0 0
        %2987 = vmatpush1.bf16.xpose.msra.mxu0 0
        %2988 = vmatprep.subr.bf16.mxu0 0
        %2989 = vmatpush1.bf16.xpose.msra.mxu0 0
        %2990 = vmatprep.subr.bf16.mxu0 0
        %2991 = vmatpush1.bf16.xpose.msra.mxu0 0
        %2992 = vmatprep.subr.bf16.mxu0 0
        %2993 = vmatpush1.bf16.xpose.msra.mxu0 0
        %2994 = vmatprep.subr.bf16.mxu0 0
        %2995 = vmatpush1.bf16.xpose.msra.mxu0 0
        %2996 = vmatprep.subr.bf16.mxu0 0
        %2997 = vmatpush1.bf16.xpose.msra.mxu0 0
        %2998 = vmatprep.mubr.bf16.mxu0 0
        %2999 = vmatmul.mubr.bf16.gmra.mrb[0].mxu0 %v2961
        %v3000 = vpop.f32.mrb[0].mxu0
        %v3001 = vadd.f32 0.0, %v3000
        %v3002 = vpop.f32.mrb[0].mxu0
        %v3003 = vpop.f32.mrb[0].mxu0
        %v3004 = vadd.f32 0.0, %v3003
        %v3005 = vpop.f32.mrb[0].mxu0
        %3006 = vdwg.mxu0
        %v3007 = vmul.f32 %v2851, 0.20412415
        %v3008 = vmul.f32 %v2854, 0.20412415
        %v3009 = vmul.f32 %v2901, 0.20412415
        %v3010 = vmul.f32 %v2904, 0.20412415
        %v3011 = vmul.f32 %v2951, 0.20412415
        %v3012 = vmul.f32 %v2954, 0.20412415
        %v3013 = vmul.f32 %v3001, 0.20412415
        %v3014 = vmul.f32 %v3004, 0.20412415
        %v3016 = vlaneseq
        %v3017 = vshrl.u32 %v3016, 7
        %v3018 = vsub.s32 0, %v3017
        %v3019 = vrot.slane %v2805, %v3018
        %v3021 = vadd.f32 %v3007, %v3019
        %v3022 = vadd.f32 %v3008, %v3019
        %v3023 = vadd.f32 %v3009, %v3019
        %v3024 = vadd.f32 %v3010, %v3019
        %v3025 = vadd.f32 %v3011, %v3019
        %v3026 = vadd.f32 %v3012, %v3019
        %v3027 = vadd.f32 %v3013, %v3019
        %v3028 = vadd.f32 %v3014, %v3019
        %vm3029 = vcmask 130048
        %v3030 = vsel %vm3029, %v3021, -inf
        %3031 = vmax.xlane.f32.xlu0 %v3030
        %v3032 = vpop.xlane.xlu0 %3031
        %v3033 = vsel %vm3029, %v3022, -inf
        %3034 = vmax.xlane.f32.xlu0 %v3033
        %v3035 = vpop.xlane.xlu0 %3034
        %v3036 = vsel %vm3029, %v3023, -inf
        %3037 = vmax.xlane.f32.xlu0 %v3036
        %v3038 = vpop.xlane.xlu0 %3037
        %v3039 = vsel %vm3029, %v3024, -inf
        %3040 = vmax.xlane.f32.xlu0 %v3039
        %v3041 = vpop.xlane.xlu0 %3040
        %v3042 = vsel %vm3029, %v3025, -inf
        %3043 = vmax.xlane.f32.xlu0 %v3042
        %v3044 = vpop.xlane.xlu0 %3043
        %v3045 = vsel %vm3029, %v3026, -inf
        %3046 = vmax.xlane.f32.xlu0 %v3045
        %v3047 = vpop.xlane.xlu0 %3046
        %v3048 = vsel %vm3029, %v3027, -inf
        %3049 = vmax.xlane.f32.xlu0 %v3048
        %v3050 = vpop.xlane.xlu0 %3049
        %v3051 = vsel %vm3029, %v3028, -inf
        %3052 = vmax.xlane.f32.xlu0 %v3051
        %v3053 = vpop.xlane.xlu0 %3052
        %v3054 = vsub.f32 %v3021, %v3032
        %v3055 = vsub.f32 %v3022, %v3035
        %v3056 = vsub.f32 %v3023, %v3038
        %v3057 = vsub.f32 %v3024, %v3041
        %v3058 = vsub.f32 %v3025, %v3044
        %v3059 = vsub.f32 %v3026, %v3047
        %v3060 = vsub.f32 %v3027, %v3050
        %v3061 = vsub.f32 %v3028, %v3053
        %v3062 = vmul.f32 %v3054, 1.442695
        %v3063 = vpow.pop %v3062
        %v3064 = vmul.f32 %v3055, 1.442695
        %v3065 = vpow.pop %v3064
        %v3066 = vmul.f32 %v3056, 1.442695
        %v3067 = vpow.pop %v3066
        %v3068 = vmul.f32 %v3057, 1.442695
        %v3069 = vpow.pop %v3068
        %v3070 = vmul.f32 %v3058, 1.442695
        %v3071 = vpow.pop %v3070
        %v3072 = vmul.f32 %v3059, 1.442695
        %v3073 = vpow.pop %v3072
        %v3074 = vmul.f32 %v3060, 1.442695
        %v3075 = vpow.pop %v3074
        %v3076 = vmul.f32 %v3061, 1.442695
        %v3077 = vpow.pop %v3076
        %v3078 = vsel %vm3029, %v3063, 0.0
        %3079 = vadd.xlane.f32.xlu0 %v3078
        %v3080 = vpop.xlane.xlu0 %3079
        %v3081 = vsel %vm3029, %v3065, 0.0
        %3082 = vadd.xlane.f32.xlu0 %v3081
        %v3083 = vpop.xlane.xlu0 %3082
        %v3084 = vsel %vm3029, %v3067, 0.0
        %3085 = vadd.xlane.f32.xlu0 %v3084
        %v3086 = vpop.xlane.xlu0 %3085
        %v3087 = vsel %vm3029, %v3069, 0.0
        %3088 = vadd.xlane.f32.xlu0 %v3087
        %v3089 = vpop.xlane.xlu0 %3088
        %v3090 = vsel %vm3029, %v3071, 0.0
        %3091 = vadd.xlane.f32.xlu0 %v3090
        %v3092 = vpop.xlane.xlu0 %3091
        %v3093 = vsel %vm3029, %v3073, 0.0
        %3094 = vadd.xlane.f32.xlu0 %v3093
        %v3095 = vpop.xlane.xlu0 %3094
        %v3096 = vsel %vm3029, %v3075, 0.0
        %3097 = vadd.xlane.f32.xlu0 %v3096
        %v3098 = vpop.xlane.xlu0 %3097
        %v3099 = vsel %vm3029, %v3077, 0.0
        %3100 = vadd.xlane.f32.xlu0 %v3099
        %v3101 = vpop.xlane.xlu0 %3100
        %v3102 = vrcp.pop %v3080
        %v3103 = vmul.f32 %v3063, %v3102
        %v3104 = vrcp.pop %v3083
        %v3105 = vmul.f32 %v3065, %v3104
        %v3106 = vrcp.pop %v3086
        %v3107 = vmul.f32 %v3067, %v3106
        %v3108 = vrcp.pop %v3089
        %v3109 = vmul.f32 %v3069, %v3108
        %v3110 = vrcp.pop %v3092
        %v3111 = vmul.f32 %v3071, %v3110
        %v3112 = vrcp.pop %v3095
        %v3113 = vmul.f32 %v3073, %v3112
        %v3114 = vrcp.pop %v3098
        %v3115 = vmul.f32 %v3075, %v3114
        %v3116 = vrcp.pop %v3101
        %v3117 = vmul.f32 %v3077, %v3116
        %v3118 = vadd.f32 %v3103, %v3107
        %v3119 = vadd.f32 %v3105, %v3109
        %v3120 = vadd.f32 %v3118, %v3111
        %v3121 = vadd.f32 %v3119, %v3113
        %v3122 = vadd.f32 %v3120, %v3115
        %v3123 = vadd.f32 %v3121, %v3117
        %v3124 = vmul.f32 %v3122, 0.25
        %v3125 = vmul.f32 %v3123, 0.25
        %3126 = vst.msk [vmem:[%s957] sm:$0xff] %vm3029, %v3124
        %3127 = vst.msk [vmem:[%s957 + $0x8] sm:$0xff] %vm3029, %v3125
        %v3128 = vpack.c.bf16 %v3105, %v3103
        %v3129 = vpack.c.bf16 %v3109, %v3107
        %v3130 = vpack.c.bf16 %v3113, %v3111
        %v3131 = vpack.c.bf16 %v3117, %v3115
        %3133 = vrot.lane.b32.xlu0 %v2801, 64
        %v3134 = vpop.permute.xlu0 %3133
        %v3137 = vsel %vm3029, %v3128, 0
        %3139 = vmatprep.subr.bf16.mxu0 0
        %3140 = vmatpush1.bf16.msra.mxu0 %v3134
        %3141 = vmatprep.subr.bf16.mxu0 0
        %3142 = vmatpush1.bf16.msra.mxu0 0
        %3143 = vmatprep.subr.bf16.mxu0 0
        %3144 = vmatpush1.bf16.msra.mxu0 0
        %3145 = vmatprep.subr.bf16.mxu0 0
        %3146 = vmatpush1.bf16.msra.mxu0 0
        %3147 = vmatprep.subr.bf16.mxu0 0
        %3148 = vmatpush1.bf16.msra.mxu0 0
        %3149 = vmatprep.subr.bf16.mxu0 0
        %3150 = vmatpush1.bf16.msra.mxu0 0
        %3151 = vmatprep.subr.bf16.mxu0 0
        %3152 = vmatpush1.bf16.msra.mxu0 0
        %3153 = vmatprep.subr.bf16.mxu0 0
        %3154 = vmatpush1.bf16.msra.mxu0 0
        %3155 = vmatprep.subr.bf16.mxu0 0
        %3156 = vmatpush1.bf16.msra.mxu0 0
        %3157 = vmatprep.subr.bf16.mxu0 0
        %3158 = vmatpush1.bf16.msra.mxu0 0
        %3159 = vmatprep.subr.bf16.mxu0 0
        %3160 = vmatpush1.bf16.msra.mxu0 0
        %3161 = vmatprep.subr.bf16.mxu0 0
        %3162 = vmatpush1.bf16.msra.mxu0 0
        %3163 = vmatprep.subr.bf16.mxu0 0
        %3164 = vmatpush1.bf16.msra.mxu0 0
        %3165 = vmatprep.subr.bf16.mxu0 0
        %3166 = vmatpush1.bf16.msra.mxu0 0
        %3167 = vmatprep.subr.bf16.mxu0 0
        %3168 = vmatpush1.bf16.msra.mxu0 0
        %3169 = vmatprep.subr.bf16.mxu0 0
        %3170 = vmatpush1.bf16.msra.mxu0 0
        %3171 = vmatprep.mubr.bf16.mxu0 0
        %3172 = vmatmul.mubr.bf16.gmra.mrb[0].mxu0 %v3137
        %v3173 = vpop.f32.mrb[0].mxu0
        %v3174 = vadd.f32 0.0, %v3173
        %v3175 = vpop.f32.mrb[0].mxu0
        %v3176 = vpop.f32.mrb[0].mxu0
        %v3177 = vadd.f32 0.0, %v3176
        %v3178 = vpop.f32.mrb[0].mxu0
        %3179 = vdwg.mxu0
        %3181 = vrot.lane.b32.xlu0 %v2802, 64
        %v3182 = vpop.permute.xlu0 %3181
        %v3185 = vsel %vm3029, %v3129, 0
        %3187 = vmatprep.subr.bf16.mxu0 0
        %3188 = vmatpush1.bf16.msra.mxu0 %v3182
        %3189 = vmatprep.subr.bf16.mxu0 0
        %3190 = vmatpush1.bf16.msra.mxu0 0
        %3191 = vmatprep.subr.bf16.mxu0 0
        %3192 = vmatpush1.bf16.msra.mxu0 0
        %3193 = vmatprep.subr.bf16.mxu0 0
        %3194 = vmatpush1.bf16.msra.mxu0 0
        %3195 = vmatprep.subr.bf16.mxu0 0
        %3196 = vmatpush1.bf16.msra.mxu0 0
        %3197 = vmatprep.subr.bf16.mxu0 0
        %3198 = vmatpush1.bf16.msra.mxu0 0
        %3199 = vmatprep.subr.bf16.mxu0 0
        %3200 = vmatpush1.bf16.msra.mxu0 0
        %3201 = vmatprep.subr.bf16.mxu0 0
        %3202 = vmatpush1.bf16.msra.mxu0 0
        %3203 = vmatprep.subr.bf16.mxu0 0
        %3204 = vmatpush1.bf16.msra.mxu0 0
        %3205 = vmatprep.subr.bf16.mxu0 0
        %3206 = vmatpush1.bf16.msra.mxu0 0
        %3207 = vmatprep.subr.bf16.mxu0 0
        %3208 = vmatpush1.bf16.msra.mxu0 0
        %3209 = vmatprep.subr.bf16.mxu0 0
        %3210 = vmatpush1.bf16.msra.mxu0 0
        %3211 = vmatprep.subr.bf16.mxu0 0
        %3212 = vmatpush1.bf16.msra.mxu0 0
        %3213 = vmatprep.subr.bf16.mxu0 0
        %3214 = vmatpush1.bf16.msra.mxu0 0
        %3215 = vmatprep.subr.bf16.mxu0 0
        %3216 = vmatpush1.bf16.msra.mxu0 0
        %3217 = vmatprep.subr.bf16.mxu0 0
        %3218 = vmatpush1.bf16.msra.mxu0 0
        %3219 = vmatprep.mubr.bf16.mxu0 0
        %3220 = vmatmul.mubr.bf16.gmra.mrb[0].mxu0 %v3185
        %v3221 = vpop.f32.mrb[0].mxu0
        %v3222 = vadd.f32 0.0, %v3221
        %v3223 = vpop.f32.mrb[0].mxu0
        %v3224 = vpop.f32.mrb[0].mxu0
        %v3225 = vadd.f32 0.0, %v3224
        %v3226 = vpop.f32.mrb[0].mxu0
        %3227 = vdwg.mxu0
        %3229 = vrot.lane.b32.xlu0 %v2803, 64
        %v3230 = vpop.permute.xlu0 %3229
        %v3233 = vsel %vm3029, %v3130, 0
        %3235 = vmatprep.subr.bf16.mxu0 0
        %3236 = vmatpush1.bf16.msra.mxu0 %v3230
        %3237 = vmatprep.subr.bf16.mxu0 0
        %3238 = vmatpush1.bf16.msra.mxu0 0
        %3239 = vmatprep.subr.bf16.mxu0 0
        %3240 = vmatpush1.bf16.msra.mxu0 0
        %3241 = vmatprep.subr.bf16.mxu0 0
        %3242 = vmatpush1.bf16.msra.mxu0 0
        %3243 = vmatprep.subr.bf16.mxu0 0
        %3244 = vmatpush1.bf16.msra.mxu0 0
        %3245 = vmatprep.subr.bf16.mxu0 0
        %3246 = vmatpush1.bf16.msra.mxu0 0
        %3247 = vmatprep.subr.bf16.mxu0 0
        %3248 = vmatpush1.bf16.msra.mxu0 0
        %3249 = vmatprep.subr.bf16.mxu0 0
        %3250 = vmatpush1.bf16.msra.mxu0 0
        %3251 = vmatprep.subr.bf16.mxu0 0
        %3252 = vmatpush1.bf16.msra.mxu0 0
        %3253 = vmatprep.subr.bf16.mxu0 0
        %3254 = vmatpush1.bf16.msra.mxu0 0
        %3255 = vmatprep.subr.bf16.mxu0 0
        %3256 = vmatpush1.bf16.msra.mxu0 0
        %3257 = vmatprep.subr.bf16.mxu0 0
        %3258 = vmatpush1.bf16.msra.mxu0 0
        %3259 = vmatprep.subr.bf16.mxu0 0
        %3260 = vmatpush1.bf16.msra.mxu0 0
        %3261 = vmatprep.subr.bf16.mxu0 0
        %3262 = vmatpush1.bf16.msra.mxu0 0
        %3263 = vmatprep.subr.bf16.mxu0 0
        %3264 = vmatpush1.bf16.msra.mxu0 0
        %3265 = vmatprep.subr.bf16.mxu0 0
        %3266 = vmatpush1.bf16.msra.mxu0 0
        %3267 = vmatprep.mubr.bf16.mxu0 0
        %3268 = vmatmul.mubr.bf16.gmra.mrb[0].mxu0 %v3233
        %v3269 = vpop.f32.mrb[0].mxu0
        %v3270 = vadd.f32 0.0, %v3269
        %v3271 = vpop.f32.mrb[0].mxu0
        %v3272 = vpop.f32.mrb[0].mxu0
        %v3273 = vadd.f32 0.0, %v3272
        %v3274 = vpop.f32.mrb[0].mxu0
        %3275 = vdwg.mxu0
        %3277 = vrot.lane.b32.xlu0 %v2804, 64
        %v3278 = vpop.permute.xlu0 %3277
        %v3281 = vsel %vm3029, %v3131, 0
        %3283 = vmatprep.subr.bf16.mxu0 0
        %3284 = vmatpush1.bf16.msra.mxu0 %v3278
        %3285 = vmatprep.subr.bf16.mxu0 0
        %3286 = vmatpush1.bf16.msra.mxu0 0
        %3287 = vmatprep.subr.bf16.mxu0 0
        %3288 = vmatpush1.bf16.msra.mxu0 0
        %3289 = vmatprep.subr.bf16.mxu0 0
        %3290 = vmatpush1.bf16.msra.mxu0 0
        %3291 = vmatprep.subr.bf16.mxu0 0
        %3292 = vmatpush1.bf16.msra.mxu0 0
        %3293 = vmatprep.subr.bf16.mxu0 0
        %3294 = vmatpush1.bf16.msra.mxu0 0
        %3295 = vmatprep.subr.bf16.mxu0 0
        %3296 = vmatpush1.bf16.msra.mxu0 0
        %3297 = vmatprep.subr.bf16.mxu0 0
        %3298 = vmatpush1.bf16.msra.mxu0 0
        %3299 = vmatprep.subr.bf16.mxu0 0
        %3300 = vmatpush1.bf16.msra.mxu0 0
        %3301 = vmatprep.subr.bf16.mxu0 0
        %3302 = vmatpush1.bf16.msra.mxu0 0
        %3303 = vmatprep.subr.bf16.mxu0 0
        %3304 = vmatpush1.bf16.msra.mxu0 0
        %3305 = vmatprep.subr.bf16.mxu0 0
        %3306 = vmatpush1.bf16.msra.mxu0 0
        %3307 = vmatprep.subr.bf16.mxu0 0
        %3308 = vmatpush1.bf16.msra.mxu0 0
        %3309 = vmatprep.subr.bf16.mxu0 0
        %3310 = vmatpush1.bf16.msra.mxu0 0
        %3311 = vmatprep.subr.bf16.mxu0 0
        %3312 = vmatpush1.bf16.msra.mxu0 0
        %3313 = vmatprep.subr.bf16.mxu0 0
        %3314 = vmatpush1.bf16.msra.mxu0 0
        %3315 = vmatprep.mubr.bf16.mxu0 0
        %3316 = vmatmul.mubr.bf16.gmra.mrb[0].mxu0 %v3281
        %v3317 = vpop.f32.mrb[0].mxu0
        %v3318 = vadd.f32 0.0, %v3317
        %v3319 = vpop.f32.mrb[0].mxu0
        %v3320 = vpop.f32.mrb[0].mxu0
        %v3321 = vadd.f32 0.0, %v3320
        %v3322 = vpop.f32.mrb[0].mxu0
        %3323 = vdwg.mxu0
        %3326 = vrot.lane.b32.xlu0 %v3222, 24
        %v3327 = vpop.permute.xlu0 %3326
        %3328 = vrot.lane.b32.xlu0 %v3225, 24
        %v3329 = vpop.permute.xlu0 %3328
        %3334 = vrot.lane.b32.xlu0 %v3270, 48
        %v3335 = vpop.permute.xlu0 %3334
        %3336 = vrot.lane.b32.xlu0 %v3273, 48
        %v3337 = vpop.permute.xlu0 %3336
        %3342 = vrot.lane.b32.xlu0 %v3318, 72
        %v3343 = vpop.permute.xlu0 %3342
        %3344 = vrot.lane.b32.xlu0 %v3321, 72
        %v3345 = vpop.permute.xlu0 %3344
        %v3348 = vsel %vm2809, %v3174, %v3327
        %v3349 = vsel %vm2809, %v3177, %v3329
        %vm3350 = vcmask 392192
        %v3351 = vsel %vm3350, %v3348, %v3335
        %v3352 = vsel %vm3350, %v3349, %v3337
        %vm3353 = vcmask 588800
        %v3354 = vsel %vm3353, %v3351, %v3343
        %v3355 = vsel %vm3353, %v3352, %v3345
        %v3356 = vpack.c.bf16 %v3355, %v3354
        %v3357 = vld [vmem:[%s10] sm:$0xf]
        %v3358 = vld [vmem:[%s10 + $0x4] sm:$0xf]
        %v3359 = vld [vmem:[%s10 + $0x8] sm:$0xf]
        %v3360 = vld [vmem:[%s10 + $0xc] sm:$0xf]
        %v3361 = vld [vmem:[%s10 + $0x10] sm:$0xf]
        %v3362 = vld [vmem:[%s10 + $0x14] sm:$0xf]
        %v3363 = vld [vmem:[%s10 + $0x18] sm:$0xf]
        %v3364 = vld [vmem:[%s10 + $0x1c] sm:$0xf]
        %v3365 = vld [vmem:[%s10 + $0x20] sm:$0xf]
        %v3366 = vld [vmem:[%s10 + $0x24] sm:$0xf]
        %v3367 = vld [vmem:[%s10 + $0x28] sm:$0xf]
        %v3368 = vld [vmem:[%s10 + $0x2c] sm:$0xf]
        %v3369 = vld [vmem:[#allocation6] sm:$0x1]
        %v3371 = vlaneseq
        %v3372 = vshrl.u32 %v3371, 7
        %v3373 = vsub.s32 0, %v3372
        %v3374 = vrot.slane %v3369, %v3373
        %v3388 = vunpack.c.l.b16 %v3357
        %v3389 = vunpack.c.l.b16 %v3358
        %v3390 = vunpack.c.l.b16 %v3359
        %v3391 = vunpack.c.l.b16 %v3360
        %v3392 = vunpack.c.l.b16 %v3361
        %v3393 = vunpack.c.l.b16 %v3362
        %v3394 = vunpack.c.l.b16 %v3363
        %v3395 = vunpack.c.l.b16 %v3364
        %v3396 = vunpack.c.l.b16 %v3365
        %v3397 = vunpack.c.l.b16 %v3366
        %v3398 = vunpack.c.l.b16 %v3367
        %v3399 = vunpack.c.l.b16 %v3368
        %v3400 = vpack.c.b16 %v3389, %v3388
        %v3401 = vpack.c.b16 %v3391, %v3390
        %v3402 = vpack.c.b16 %v3393, %v3392
        %v3403 = vpack.c.b16 %v3395, %v3394
        %v3404 = vpack.c.b16 %v3397, %v3396
        %v3405 = vpack.c.b16 %v3399, %v3398
        %v3413 = vsel %vm2644, %v3356, 0
        %3415 = vmatprep.subr.bf16.mxu0 0
        %3416 = vmatpush1.bf16.msra.mxu0 %v3400
        %3417 = vmatprep.subr.bf16.mxu0 0
        %3418 = vmatpush1.bf16.msra.mxu0 %v3401
        %3419 = vmatprep.subr.bf16.mxu0 0
        %3420 = vmatpush1.bf16.msra.mxu0 %v3402
        %3421 = vmatprep.subr.bf16.mxu0 0
        %3422 = vmatpush1.bf16.msra.mxu0 %v3403
        %3423 = vmatprep.subr.bf16.mxu0 0
        %3424 = vmatpush1.bf16.msra.mxu0 %v3404
        %3425 = vmatprep.subr.bf16.mxu0 0
        %3426 = vmatpush1.bf16.msra.mxu0 %v3405
        %3427 = vmatprep.subr.bf16.mxu0 0
        %3428 = vmatpush1.bf16.msra.mxu0 0
        %3429 = vmatprep.subr.bf16.mxu0 0
        %3430 = vmatpush1.bf16.msra.mxu0 0
        %3431 = vmatprep.subr.bf16.mxu0 0
        %3432 = vmatpush1.bf16.msra.mxu0 0
        %3433 = vmatprep.subr.bf16.mxu0 0
        %3434 = vmatpush1.bf16.msra.mxu0 0
        %3435 = vmatprep.subr.bf16.mxu0 0
        %3436 = vmatpush1.bf16.msra.mxu0 0
        %3437 = vmatprep.subr.bf16.mxu0 0
        %3438 = vmatpush1.bf16.msra.mxu0 0
        %3439 = vmatprep.subr.bf16.mxu0 0
        %3440 = vmatpush1.bf16.msra.mxu0 0
        %3441 = vmatprep.subr.bf16.mxu0 0
        %3442 = vmatpush1.bf16.msra.mxu0 0
        %3443 = vmatprep.subr.bf16.mxu0 0
        %3444 = vmatpush1.bf16.msra.mxu0 0
        %3445 = vmatprep.subr.bf16.mxu0 0
        %3446 = vmatpush1.bf16.msra.mxu0 0
        %3447 = vmatprep.mubr.bf16.mxu0 0
        %3448 = vmatmul.mubr.bf16.gmra.mrb[0].mxu0 %v3413
        %v3449 = vpop.f32.mrb[0].mxu0
        %v3450 = vadd.f32 %v3374, %v3449
        %v3451 = vpop.f32.mrb[0].mxu0
        %v3452 = vpop.f32.mrb[0].mxu0
        %v3453 = vadd.f32 %v3374, %v3452
        %v3454 = vpop.f32.mrb[0].mxu0
        %3455 = vdwg.mxu0
        %v3456 = vadd.f32 %v2504, %v3450
        %v3457 = vadd.f32 %v2505, %v3453
        %v3458 = vsel %vm2644, %v3456, 0.0
        %3459 = vadd.xlane.f32.xlu0 %v3458
        %v3460 = vpop.xlane.xlu0 %3459
        %v3461 = vsel %vm2644, %v3457, 0.0
        %3462 = vadd.xlane.f32.xlu0 %v3461
        %v3463 = vpop.xlane.xlu0 %3462
        %v3464 = vrcp.pop 96.0
        %v3465 = vmul.f32 %v3460, %v3464
        %v3466 = vmul.f32 %v3463, %v3464
        %v3467 = vsub.f32 %v3456, %v3465
        %v3468 = vsub.f32 %v3457, %v3466
        %v3469 = vmul.f32 %v3467, %v3467
        %v3470 = vmul.f32 %v3468, %v3468
        %v3471 = vsel %vm2644, %v3469, 0.0
        %3472 = vadd.xlane.f32.xlu0 %v3471
        %v3473 = vpop.xlane.xlu0 %3472
        %v3474 = vsel %vm2644, %v3470, 0.0
        %3475 = vadd.xlane.f32.xlu0 %v3474
        %v3476 = vpop.xlane.xlu0 %3475
        %v3477 = vmul.f32 %v3473, %v3464
        %v3478 = vmul.f32 %v3476, %v3464
        %v3479 = vadd.f32 %v3477, 1e-05
        %v3480 = vadd.f32 %v3478, 1e-05
        %v3481 = vrsqrt.pop %v3479
        %v3482 = vrsqrt.pop %v3480
        %v3483 = vmul.f32 %v3467, %v3481
        %v3484 = vmul.f32 %v3468, %v3482
        %v3485 = vld [vmem:[#allocation7] sm:$0x1]
        %v3487 = vlaneseq
        %v3488 = vshrl.u32 %v3487, 7
        %v3489 = vsub.s32 0, %v3488
        %v3490 = vrot.slane %v3485, %v3489
        %v3492 = vmul.f32 %v3483, %v3490
        %v3493 = vmul.f32 %v3484, %v3490
        %v3494 = vld [vmem:[#allocation9] sm:$0x1]
        %v3496 = vlaneseq
        %v3497 = vshrl.u32 %v3496, 7
        %v3498 = vsub.s32 0, %v3497
        %v3499 = vrot.slane %v3494, %v3498
        %v3501 = vadd.f32 %v3492, %v3499
        %v3502 = vadd.f32 %v3493, %v3499
        %v3503 = vpack.c.bf16 %v3502, %v3501
        %v3504 = vld [vmem:[%s14] sm:$0xff]
        %v3505 = vld [vmem:[%s14 + $0x8] sm:$0xff]
        %v3506 = vld [vmem:[%s14 + $0x40] sm:$0xff]
        %v3507 = vld [vmem:[%s14 + $0x48] sm:$0xff]
        %v3508 = vld [vmem:[%s14 + $0x80] sm:$0xff]
        %v3509 = vld [vmem:[%s14 + $0x88] sm:$0xff]
        %v3510 = vld [vmem:[%s14 + $0xc0] sm:$0xff]
        %v3511 = vld [vmem:[%s14 + $0xc8] sm:$0xff]
        %v3512 = vld [vmem:[%s14 + $0x100] sm:$0xff]
        %v3513 = vld [vmem:[%s14 + $0x108] sm:$0xff]
        %v3514 = vld [vmem:[%s14 + $0x140] sm:$0xff]
        %v3515 = vld [vmem:[%s14 + $0x148] sm:$0xff]
        %v3516 = vld [vmem:[%s14 + $0x180] sm:$0xff]
        %v3517 = vld [vmem:[%s14 + $0x188] sm:$0xff]
        %v3518 = vld [vmem:[%s14 + $0x1c0] sm:$0xff]
        %v3519 = vld [vmem:[%s14 + $0x1c8] sm:$0xff]
        %v3520 = vld [vmem:[%s14 + $0x200] sm:$0xff]
        %v3521 = vld [vmem:[%s14 + $0x208] sm:$0xff]
        %v3522 = vld [vmem:[%s14 + $0x240] sm:$0xff]
        %v3523 = vld [vmem:[%s14 + $0x248] sm:$0xff]
        %v3524 = vld [vmem:[%s14 + $0x280] sm:$0xff]
        %v3525 = vld [vmem:[%s14 + $0x288] sm:$0xff]
        %v3526 = vld [vmem:[%s14 + $0x2c0] sm:$0xff]
        %v3527 = vld [vmem:[%s14 + $0x2c8] sm:$0xff]
        %v3528 = vld [vmem:[#allocation10] sm:$0xf]
        %v3530 = vlaneseq
        %v3531 = vshrl.u32 %v3530, 7
        %v3532 = vsub.s32 0, %v3531
        %v3533 = vrot.slane %v3528, %v3532
        %v3534 = vlaneseq
        %v3535 = vshrl.u32 %v3534, 7
        %v3536 = vsub.s32 1, %v3535
        %v3537 = vrot.slane %v3528, %v3536
        %v3538 = vlaneseq
        %v3539 = vshrl.u32 %v3538, 7
        %v3540 = vsub.s32 2, %v3539
        %v3541 = vrot.slane %v3528, %v3540
        %v3542 = vlaneseq
        %v3543 = vshrl.u32 %v3542, 7
        %v3544 = vsub.s32 3, %v3543
        %v3545 = vrot.slane %v3528, %v3544
        %v3574 = vunpack.c.l.b16 %v3504
        %v3575 = vunpack.c.h.b16 %v3504
        %v3576 = vunpack.c.l.b16 %v3505
        %v3577 = vunpack.c.h.b16 %v3505
        %v3578 = vunpack.c.l.b16 %v3506
        %v3579 = vunpack.c.h.b16 %v3506
        %v3580 = vunpack.c.l.b16 %v3507
        %v3581 = vunpack.c.h.b16 %v3507
        %v3582 = vunpack.c.l.b16 %v3508
        %v3583 = vunpack.c.h.b16 %v3508
        %v3584 = vunpack.c.l.b16 %v3509
        %v3585 = vunpack.c.h.b16 %v3509
        %v3586 = vunpack.c.l.b16 %v3510
        %v3587 = vunpack.c.h.b16 %v3510
        %v3588 = vunpack.c.l.b16 %v3511
        %v3589 = vunpack.c.h.b16 %v3511
        %v3590 = vunpack.c.l.b16 %v3512
        %v3591 = vunpack.c.h.b16 %v3512
        %v3592 = vunpack.c.l.b16 %v3513
        %v3593 = vunpack.c.h.b16 %v3513
        %v3594 = vunpack.c.l.b16 %v3514
        %v3595 = vunpack.c.h.b16 %v3514
        %v3596 = vunpack.c.l.b16 %v3515
        %v3597 = vunpack.c.h.b16 %v3515
        %v3598 = vunpack.c.l.b16 %v3516
        %v3599 = vunpack.c.h.b16 %v3516
        %v3600 = vunpack.c.l.b16 %v3517
        %v3601 = vunpack.c.h.b16 %v3517
        %v3602 = vunpack.c.l.b16 %v3518
        %v3603 = vunpack.c.h.b16 %v3518
        %v3604 = vunpack.c.l.b16 %v3519
        %v3605 = vunpack.c.h.b16 %v3519
        %v3606 = vunpack.c.l.b16 %v3520
        %v3607 = vunpack.c.h.b16 %v3520
        %v3608 = vunpack.c.l.b16 %v3521
        %v3609 = vunpack.c.h.b16 %v3521
        %v3610 = vunpack.c.l.b16 %v3522
        %v3611 = vunpack.c.h.b16 %v3522
        %v3612 = vunpack.c.l.b16 %v3523
        %v3613 = vunpack.c.h.b16 %v3523
        %v3614 = vunpack.c.l.b16 %v3524
        %v3615 = vunpack.c.h.b16 %v3524
        %v3616 = vunpack.c.l.b16 %v3525
        %v3617 = vunpack.c.h.b16 %v3525
        %v3618 = vunpack.c.l.b16 %v3526
        %v3619 = vunpack.c.h.b16 %v3526
        %v3620 = vunpack.c.l.b16 %v3527
        %v3621 = vunpack.c.h.b16 %v3527
        %v3622 = vpack.c.b16 %v3578, %v3574
        %v3623 = vpack.c.b16 %v3579, %v3575
        %v3624 = vpack.c.b16 %v3580, %v3576
        %v3625 = vpack.c.b16 %v3581, %v3577
        %v3626 = vpack.c.b16 %v3586, %v3582
        %v3627 = vpack.c.b16 %v3587, %v3583
        %v3628 = vpack.c.b16 %v3588, %v3584
        %v3629 = vpack.c.b16 %v3589, %v3585
        %v3630 = vpack.c.b16 %v3594, %v3590
        %v3631 = vpack.c.b16 %v3595, %v3591
        %v3632 = vpack.c.b16 %v3596, %v3592
        %v3633 = vpack.c.b16 %v3597, %v3593
        %v3634 = vpack.c.b16 %v3602, %v3598
        %v3635 = vpack.c.b16 %v3603, %v3599
        %v3636 = vpack.c.b16 %v3604, %v3600
        %v3637 = vpack.c.b16 %v3605, %v3601
        %v3638 = vpack.c.b16 %v3610, %v3606
        %v3639 = vpack.c.b16 %v3611, %v3607
        %v3640 = vpack.c.b16 %v3612, %v3608
        %v3641 = vpack.c.b16 %v3613, %v3609
        %v3642 = vpack.c.b16 %v3618, %v3614
        %v3643 = vpack.c.b16 %v3619, %v3615
        %v3644 = vpack.c.b16 %v3620, %v3616
        %v3645 = vpack.c.b16 %v3621, %v3617
        %v3671 = vsel %vm2644, %v3503, 0
        %3673 = vmatprep.subr.bf16.mxu0 %v3623
        %3674 = vmatpush1.bf16.msra.mxu0 %v3622
        %3675 = vmatprep.subr.bf16.mxu0 %v3627
        %3676 = vmatpush1.bf16.msra.mxu0 %v3626
        %3677 = vmatprep.subr.bf16.mxu0 %v3631
        %3678 = vmatpush1.bf16.msra.mxu0 %v3630
        %3679 = vmatprep.subr.bf16.mxu0 %v3635
        %3680 = vmatpush1.bf16.msra.mxu0 %v3634
        %3681 = vmatprep.subr.bf16.mxu0 %v3639
        %3682 = vmatpush1.bf16.msra.mxu0 %v3638
        %3683 = vmatprep.subr.bf16.mxu0 %v3643
        %3684 = vmatpush1.bf16.msra.mxu0 %v3642
        %3685 = vmatprep.subr.bf16.mxu0 0
        %3686 = vmatpush1.bf16.msra.mxu0 0
        %3687 = vmatprep.subr.bf16.mxu0 0
        %3688 = vmatpush1.bf16.msra.mxu0 0
        %3689 = vmatprep.subr.bf16.mxu0 0
        %3690 = vmatpush1.bf16.msra.mxu0 0
        %3691 = vmatprep.subr.bf16.mxu0 0
        %3692 = vmatpush1.bf16.msra.mxu0 0
        %3693 = vmatprep.subr.bf16.mxu0 0
        %3694 = vmatpush1.bf16.msra.mxu0 0
        %3695 = vmatprep.subr.bf16.mxu0 0
        %3696 = vmatpush1.bf16.msra.mxu0 0
        %3697 = vmatprep.subr.bf16.mxu0 0
        %3698 = vmatpush1.bf16.msra.mxu0 0
        %3699 = vmatprep.subr.bf16.mxu0 0
        %3700 = vmatpush1.bf16.msra.mxu0 0
        %3701 = vmatprep.subr.bf16.mxu0 0
        %3702 = vmatpush1.bf16.msra.mxu0 0
        %3703 = vmatprep.subr.bf16.mxu0 0
        %3704 = vmatpush1.bf16.msra.mxu0 0
        %3705 = vmatprep.mubr.bf16.mxu0 0
        %3706 = vmatmul.mubr.bf16.gmra.mrb[0].mxu0 %v3671
        %v3707 = vpop.f32.mrb[0].mxu0
        %v3708 = vadd.f32 %v3533, %v3707
        %v3709 = vpop.f32.mrb[0].mxu0
        %v3710 = vadd.f32 %v3537, %v3709
        %v3711 = vpop.f32.mrb[0].mxu0
        %v3712 = vadd.f32 %v3533, %v3711
        %v3713 = vpop.f32.mrb[0].mxu0
        %v3714 = vadd.f32 %v3537, %v3713
        %3715 = vdwg.mxu0
        %3716 = vmatprep.subr.bf16.mxu0 %v3625
        %3717 = vmatpush1.bf16.msra.mxu0 %v3624
        %3718 = vmatprep.subr.bf16.mxu0 %v3629
        %3719 = vmatpush1.bf16.msra.mxu0 %v3628
        %3720 = vmatprep.subr.bf16.mxu0 %v3633
        %3721 = vmatpush1.bf16.msra.mxu0 %v3632
        %3722 = vmatprep.subr.bf16.mxu0 %v3637
        %3723 = vmatpush1.bf16.msra.mxu0 %v3636
        %3724 = vmatprep.subr.bf16.mxu0 %v3641
        %3725 = vmatpush1.bf16.msra.mxu0 %v3640
        %3726 = vmatprep.subr.bf16.mxu0 %v3645
        %3727 = vmatpush1.bf16.msra.mxu0 %v3644
        %3728 = vmatprep.subr.bf16.mxu0 0
        %3729 = vmatpush1.bf16.msra.mxu0 0
        %3730 = vmatprep.subr.bf16.mxu0 0
        %3731 = vmatpush1.bf16.msra.mxu0 0
        %3732 = vmatprep.subr.bf16.mxu0 0
        %3733 = vmatpush1.bf16.msra.mxu0 0
        %3734 = vmatprep.subr.bf16.mxu0 0
        %3735 = vmatpush1.bf16.msra.mxu0 0
        %3736 = vmatprep.subr.bf16.mxu0 0
        %3737 = vmatpush1.bf16.msra.mxu0 0
        %3738 = vmatprep.subr.bf16.mxu0 0
        %3739 = vmatpush1.bf16.msra.mxu0 0
        %3740 = vmatprep.subr.bf16.mxu0 0
        %3741 = vmatpush1.bf16.msra.mxu0 0
        %3742 = vmatprep.subr.bf16.mxu0 0
        %3743 = vmatpush1.bf16.msra.mxu0 0
        %3744 = vmatprep.subr.bf16.mxu0 0
        %3745 = vmatpush1.bf16.msra.mxu0 0
        %3746 = vmatprep.subr.bf16.mxu0 0
        %3747 = vmatpush1.bf16.msra.mxu0 0
        %3748 = vmatprep.mubr.bf16.mxu0 0
        %3749 = vmatmul.mubr.bf16.gmra.mrb[0].mxu0 %v3671
        %v3750 = vpop.f32.mrb[0].mxu0
        %v3751 = vadd.f32 %v3541, %v3750
        %v3752 = vpop.f32.mrb[0].mxu0
        %v3753 = vadd.f32 %v3545, %v3752
        %v3754 = vpop.f32.mrb[0].mxu0
        %v3755 = vadd.f32 %v3541, %v3754
        %v3756 = vpop.f32.mrb[0].mxu0
        %v3757 = vadd.f32 %v3545, %v3756
        %3758 = vdwg.mxu0
        %v3759 = vmax.f32 %v3708, 0.0
        %v3760 = vmax.f32 %v3710, 0.0
        %v3761 = vmax.f32 %v3751, 0.0
        %v3762 = vmax.f32 %v3753, 0.0
        %v3763 = vmax.f32 %v3712, 0.0
        %v3764 = vmax.f32 %v3714, 0.0
        %v3765 = vmax.f32 %v3755, 0.0
        %v3766 = vmax.f32 %v3757, 0.0
        %v3767 = vpack.c.bf16 %v3763, %v3759
        %v3768 = vpack.c.bf16 %v3764, %v3760
        %v3769 = vpack.c.bf16 %v3765, %v3761
        %v3770 = vpack.c.bf16 %v3766, %v3762
        %v3771 = vld [vmem:[%s16] sm:$0xf]
        %v3772 = vld [vmem:[%s16 + $0x4] sm:$0xf]
        %v3773 = vld [vmem:[%s16 + $0x8] sm:$0xf]
        %v3774 = vld [vmem:[%s16 + $0xc] sm:$0xf]
        %v3775 = vld [vmem:[%s16 + $0x10] sm:$0xf]
        %v3776 = vld [vmem:[%s16 + $0x14] sm:$0xf]
        %v3777 = vld [vmem:[%s16 + $0x18] sm:$0xf]
        %v3778 = vld [vmem:[%s16 + $0x1c] sm:$0xf]
        %v3779 = vld [vmem:[%s16 + $0x20] sm:$0xf]
        %v3780 = vld [vmem:[%s16 + $0x24] sm:$0xf]
        %v3781 = vld [vmem:[%s16 + $0x28] sm:$0xf]
        %v3782 = vld [vmem:[%s16 + $0x2c] sm:$0xf]
        %v3783 = vld [vmem:[%s16 + $0x30] sm:$0xf]
        %v3784 = vld [vmem:[%s16 + $0x34] sm:$0xf]
        %v3785 = vld [vmem:[%s16 + $0x38] sm:$0xf]
        %v3786 = vld [vmem:[%s16 + $0x3c] sm:$0xf]
        %v3787 = vld [vmem:[%s16 + $0x40] sm:$0xf]
        %v3788 = vld [vmem:[%s16 + $0x44] sm:$0xf]
        %v3789 = vld [vmem:[%s16 + $0x48] sm:$0xf]
        %v3790 = vld [vmem:[%s16 + $0x4c] sm:$0xf]
        %v3791 = vld [vmem:[%s16 + $0x50] sm:$0xf]
        %v3792 = vld [vmem:[%s16 + $0x54] sm:$0xf]
        %v3793 = vld [vmem:[%s16 + $0x58] sm:$0xf]
        %v3794 = vld [vmem:[%s16 + $0x5c] sm:$0xf]
        %v3795 = vld [vmem:[%s16 + $0x60] sm:$0xf]
        %v3796 = vld [vmem:[%s16 + $0x64] sm:$0xf]
        %v3797 = vld [vmem:[%s16 + $0x68] sm:$0xf]
        %v3798 = vld [vmem:[%s16 + $0x6c] sm:$0xf]
        %v3799 = vld [vmem:[%s16 + $0x70] sm:$0xf]
        %v3800 = vld [vmem:[%s16 + $0x74] sm:$0xf]
        %v3801 = vld [vmem:[%s16 + $0x78] sm:$0xf]
        %v3802 = vld [vmem:[%s16 + $0x7c] sm:$0xf]
        %v3803 = vld [vmem:[%s16 + $0x80] sm:$0xf]
        %v3804 = vld [vmem:[%s16 + $0x84] sm:$0xf]
        %v3805 = vld [vmem:[%s16 + $0x88] sm:$0xf]
        %v3806 = vld [vmem:[%s16 + $0x8c] sm:$0xf]
        %v3807 = vld [vmem:[%s16 + $0x90] sm:$0xf]
        %v3808 = vld [vmem:[%s16 + $0x94] sm:$0xf]
        %v3809 = vld [vmem:[%s16 + $0x98] sm:$0xf]
        %v3810 = vld [vmem:[%s16 + $0x9c] sm:$0xf]
        %v3811 = vld [vmem:[%s16 + $0xa0] sm:$0xf]
        %v3812 = vld [vmem:[%s16 + $0xa4] sm:$0xf]
        %v3813 = vld [vmem:[%s16 + $0xa8] sm:$0xf]
        %v3814 = vld [vmem:[%s16 + $0xac] sm:$0xf]
        %v3815 = vld [vmem:[%s16 + $0xb0] sm:$0xf]
        %v3816 = vld [vmem:[%s16 + $0xb4] sm:$0xf]
        %v3817 = vld [vmem:[%s16 + $0xb8] sm:$0xf]
        %v3818 = vld [vmem:[%s16 + $0xbc] sm:$0xf]
        %v3819 = vld [vmem:[%s16 + $0xc0] sm:$0xf]
        %v3820 = vld [vmem:[%s16 + $0xc4] sm:$0xf]
        %v3821 = vld [vmem:[%s16 + $0xc8] sm:$0xf]
        %v3822 = vld [vmem:[%s16 + $0xcc] sm:$0xf]
        %v3823 = vld [vmem:[%s16 + $0xd0] sm:$0xf]
        %v3824 = vld [vmem:[%s16 + $0xd4] sm:$0xf]
        %v3825 = vld [vmem:[%s16 + $0xd8] sm:$0xf]
        %v3826 = vld [vmem:[%s16 + $0xdc] sm:$0xf]
        %v3827 = vld [vmem:[%s16 + $0xe0] sm:$0xf]
        %v3828 = vld [vmem:[%s16 + $0xe4] sm:$0xf]
        %v3829 = vld [vmem:[%s16 + $0xe8] sm:$0xf]
        %v3830 = vld [vmem:[%s16 + $0xec] sm:$0xf]
        %v3831 = vld [vmem:[%s16 + $0xf0] sm:$0xf]
        %v3832 = vld [vmem:[%s16 + $0xf4] sm:$0xf]
        %v3833 = vld [vmem:[%s16 + $0xf8] sm:$0xf]
        %v3834 = vld [vmem:[%s16 + $0xfc] sm:$0xf]
        %v3835 = vld [vmem:[%s14 + $0x10] sm:$0xff]
        %v3836 = vld [vmem:[%s14 + $0x18] sm:$0xff]
        %v3837 = vld [vmem:[%s14 + $0x50] sm:$0xff]
        %v3838 = vld [vmem:[%s14 + $0x58] sm:$0xff]
        %v3839 = vld [vmem:[%s14 + $0x90] sm:$0xff]
        %v3840 = vld [vmem:[%s14 + $0x98] sm:$0xff]
        %v3841 = vld [vmem:[%s14 + $0xd0] sm:$0xff]
        %v3842 = vld [vmem:[%s14 + $0xd8] sm:$0xff]
        %v3843 = vld [vmem:[%s14 + $0x110] sm:$0xff]
        %v3844 = vld [vmem:[%s14 + $0x118] sm:$0xff]
        %v3845 = vld [vmem:[%s14 + $0x150] sm:$0xff]
        %v3846 = vld [vmem:[%s14 + $0x158] sm:$0xff]
        %v3847 = vld [vmem:[%s14 + $0x190] sm:$0xff]
        %v3848 = vld [vmem:[%s14 + $0x198] sm:$0xff]
        %v3849 = vld [vmem:[%s14 + $0x1d0] sm:$0xff]
        %v3850 = vld [vmem:[%s14 + $0x1d8] sm:$0xff]
        %v3851 = vld [vmem:[%s14 + $0x210] sm:$0xff]
        %v3852 = vld [vmem:[%s14 + $0x218] sm:$0xff]
        %v3853 = vld [vmem:[%s14 + $0x250] sm:$0xff]
        %v3854 = vld [vmem:[%s14 + $0x258] sm:$0xff]
        %v3855 = vld [vmem:[%s14 + $0x290] sm:$0xff]
        %v3856 = vld [vmem:[%s14 + $0x298] sm:$0xff]
        %v3857 = vld [vmem:[%s14 + $0x2d0] sm:$0xff]
        %v3858 = vld [vmem:[%s14 + $0x2d8] sm:$0xff]
        %v3859 = vld [vmem:[#allocation10 + $0x4] sm:$0xf]
        %v3861 = vlaneseq
        %v3862 = vshrl.u32 %v3861, 7
        %v3863 = vsub.s32 0, %v3862
        %v3864 = vrot.slane %v3859, %v3863
        %v3865 = vlaneseq
        %v3866 = vshrl.u32 %v3865, 7
        %v3867 = vsub.s32 1, %v3866
        %v3868 = vrot.slane %v3859, %v3867
        %v3869 = vlaneseq
        %v3870 = vshrl.u32 %v3869, 7
        %v3871 = vsub.s32 2, %v3870
        %v3872 = vrot.slane %v3859, %v3871
        %v3873 = vlaneseq
        %v3874 = vshrl.u32 %v3873, 7
        %v3875 = vsub.s32 3, %v3874
        %v3876 = vrot.slane %v3859, %v3875
        %v3905 = vunpack.c.l.b16 %v3835
        %v3906 = vunpack.c.h.b16 %v3835
        %v3907 = vunpack.c.l.b16 %v3836
        %v3908 = vunpack.c.h.b16 %v3836
        %v3909 = vunpack.c.l.b16 %v3837
        %v3910 = vunpack.c.h.b16 %v3837
        %v3911 = vunpack.c.l.b16 %v3838
        %v3912 = vunpack.c.h.b16 %v3838
        %v3913 = vunpack.c.l.b16 %v3839
        %v3914 = vunpack.c.h.b16 %v3839
        %v3915 = vunpack.c.l.b16 %v3840
        %v3916 = vunpack.c.h.b16 %v3840
        %v3917 = vunpack.c.l.b16 %v3841
        %v3918 = vunpack.c.h.b16 %v3841
        %v3919 = vunpack.c.l.b16 %v3842
        %v3920 = vunpack.c.h.b16 %v3842
        %v3921 = vunpack.c.l.b16 %v3843
        %v3922 = vunpack.c.h.b16 %v3843
        %v3923 = vunpack.c.l.b16 %v3844
        %v3924 = vunpack.c.h.b16 %v3844
        %v3925 = vunpack.c.l.b16 %v3845
        %v3926 = vunpack.c.h.b16 %v3845
        %v3927 = vunpack.c.l.b16 %v3846
        %v3928 = vunpack.c.h.b16 %v3846
        %v3929 = vunpack.c.l.b16 %v3847
        %v3930 = vunpack.c.h.b16 %v3847
        %v3931 = vunpack.c.l.b16 %v3848
        %v3932 = vunpack.c.h.b16 %v3848
        %v3933 = vunpack.c.l.b16 %v3849
        %v3934 = vunpack.c.h.b16 %v3849
        %v3935 = vunpack.c.l.b16 %v3850
        %v3936 = vunpack.c.h.b16 %v3850
        %v3937 = vunpack.c.l.b16 %v3851
        %v3938 = vunpack.c.h.b16 %v3851
        %v3939 = vunpack.c.l.b16 %v3852
        %v3940 = vunpack.c.h.b16 %v3852
        %v3941 = vunpack.c.l.b16 %v3853
        %v3942 = vunpack.c.h.b16 %v3853
        %v3943 = vunpack.c.l.b16 %v3854
        %v3944 = vunpack.c.h.b16 %v3854
        %v3945 = vunpack.c.l.b16 %v3855
        %v3946 = vunpack.c.h.b16 %v3855
        %v3947 = vunpack.c.l.b16 %v3856
        %v3948 = vunpack.c.h.b16 %v3856
        %v3949 = vunpack.c.l.b16 %v3857
        %v3950 = vunpack.c.h.b16 %v3857
        %v3951 = vunpack.c.l.b16 %v3858
        %v3952 = vunpack.c.h.b16 %v3858
        %v3953 = vpack.c.b16 %v3909, %v3905
        %v3954 = vpack.c.b16 %v3910, %v3906
        %v3955 = vpack.c.b16 %v3911, %v3907
        %v3956 = vpack.c.b16 %v3912, %v3908
        %v3957 = vpack.c.b16 %v3917, %v3913
        %v3958 = vpack.c.b16 %v3918, %v3914
        %v3959 = vpack.c.b16 %v3919, %v3915
        %v3960 = vpack.c.b16 %v3920, %v3916
        %v3961 = vpack.c.b16 %v3925, %v3921
        %v3962 = vpack.c.b16 %v3926, %v3922
        %v3963 = vpack.c.b16 %v3927, %v3923
        %v3964 = vpack.c.b16 %v3928, %v3924
        %v3965 = vpack.c.b16 %v3933, %v3929
        %v3966 = vpack.c.b16 %v3934, %v3930
        %v3967 = vpack.c.b16 %v3935, %v3931
        %v3968 = vpack.c.b16 %v3936, %v3932
        %v3969 = vpack.c.b16 %v3941, %v3937
        %v3970 = vpack.c.b16 %v3942, %v3938
        %v3971 = vpack.c.b16 %v3943, %v3939
        %v3972 = vpack.c.b16 %v3944, %v3940
        %v3973 = vpack.c.b16 %v3949, %v3945
        %v3974 = vpack.c.b16 %v3950, %v3946
        %v3975 = vpack.c.b16 %v3951, %v3947
        %v3976 = vpack.c.b16 %v3952, %v3948
        %4001 = vmatprep.subr.bf16.mxu0 %v3954
        %4002 = vmatpush1.bf16.msra.mxu0 %v3953
        %4003 = vmatprep.subr.bf16.mxu0 %v3958
        %4004 = vmatpush1.bf16.msra.mxu0 %v3957
        %4005 = vmatprep.subr.bf16.mxu0 %v3962
        %4006 = vmatpush1.bf16.msra.mxu0 %v3961
        %4007 = vmatprep.subr.bf16.mxu0 %v3966
        %4008 = vmatpush1.bf16.msra.mxu0 %v3965
        %4009 = vmatprep.subr.bf16.mxu0 %v3970
        %4010 = vmatpush1.bf16.msra.mxu0 %v3969
        %4011 = vmatprep.subr.bf16.mxu0 %v3974
        %4012 = vmatpush1.bf16.msra.mxu0 %v3973
        %4013 = vmatprep.subr.bf16.mxu0 0
        %4014 = vmatpush1.bf16.msra.mxu0 0
        %4015 = vmatprep.subr.bf16.mxu0 0
        %4016 = vmatpush1.bf16.msra.mxu0 0
        %4017 = vmatprep.subr.bf16.mxu0 0
        %4018 = vmatpush1.bf16.msra.mxu0 0
        %4019 = vmatprep.subr.bf16.mxu0 0
        %4020 = vmatpush1.bf16.msra.mxu0 0
        %4021 = vmatprep.subr.bf16.mxu0 0
        %4022 = vmatpush1.bf16.msra.mxu0 0
        %4023 = vmatprep.subr.bf16.mxu0 0
        %4024 = vmatpush1.bf16.msra.mxu0 0
        %4025 = vmatprep.subr.bf16.mxu0 0
        %4026 = vmatpush1.bf16.msra.mxu0 0
        %4027 = vmatprep.subr.bf16.mxu0 0
        %4028 = vmatpush1.bf16.msra.mxu0 0
        %4029 = vmatprep.subr.bf16.mxu0 0
        %4030 = vmatpush1.bf16.msra.mxu0 0
        %4031 = vmatprep.subr.bf16.mxu0 0
        %4032 = vmatpush1.bf16.msra.mxu0 0
        %4033 = vmatprep.mubr.bf16.mxu0 0
        %4034 = vmatmul.mubr.bf16.gmra.mrb[0].mxu0 %v3671
        %v4035 = vpop.f32.mrb[0].mxu0
        %v4036 = vadd.f32 %v3864, %v4035
        %v4037 = vpop.f32.mrb[0].mxu0
        %v4038 = vadd.f32 %v3868, %v4037
        %v4039 = vpop.f32.mrb[0].mxu0
        %v4040 = vadd.f32 %v3864, %v4039
        %v4041 = vpop.f32.mrb[0].mxu0
        %v4042 = vadd.f32 %v3868, %v4041
        %4043 = vdwg.mxu0
        %4044 = vmatprep.subr.bf16.mxu0 %v3956
        %4045 = vmatpush1.bf16.msra.mxu0 %v3955
        %4046 = vmatprep.subr.bf16.mxu0 %v3960
        %4047 = vmatpush1.bf16.msra.mxu0 %v3959
        %4048 = vmatprep.subr.bf16.mxu0 %v3964
        %4049 = vmatpush1.bf16.msra.mxu0 %v3963
        %4050 = vmatprep.subr.bf16.mxu0 %v3968
        %4051 = vmatpush1.bf16.msra.mxu0 %v3967
        %4052 = vmatprep.subr.bf16.mxu0 %v3972
        %4053 = vmatpush1.bf16.msra.mxu0 %v3971
        %4054 = vmatprep.subr.bf16.mxu0 %v3976
        %4055 = vmatpush1.bf16.msra.mxu0 %v3975
        %4056 = vmatprep.subr.bf16.mxu0 0
        %4057 = vmatpush1.bf16.msra.mxu0 0
        %4058 = vmatprep.subr.bf16.mxu0 0
        %4059 = vmatpush1.bf16.msra.mxu0 0
        %4060 = vmatprep.subr.bf16.mxu0 0
        %4061 = vmatpush1.bf16.msra.mxu0 0
        %4062 = vmatprep.subr.bf16.mxu0 0
        %4063 = vmatpush1.bf16.msra.mxu0 0
        %4064 = vmatprep.subr.bf16.mxu0 0
        %4065 = vmatpush1.bf16.msra.mxu0 0
        %4066 = vmatprep.subr.bf16.mxu0 0
        %4067 = vmatpush1.bf16.msra.mxu0 0
        %4068 = vmatprep.subr.bf16.mxu0 0
        %4069 = vmatpush1.bf16.msra.mxu0 0
        %4070 = vmatprep.subr.bf16.mxu0 0
        %4071 = vmatpush1.bf16.msra.mxu0 0
        %4072 = vmatprep.subr.bf16.mxu0 0
        %4073 = vmatpush1.bf16.msra.mxu0 0
        %4074 = vmatprep.subr.bf16.mxu0 0
        %4075 = vmatpush1.bf16.msra.mxu0 0
        %4076 = vmatprep.mubr.bf16.mxu0 0
        %4077 = vmatmul.mubr.bf16.gmra.mrb[0].mxu0 %v3671
        %v4078 = vpop.f32.mrb[0].mxu0
        %v4079 = vadd.f32 %v3872, %v4078
        %v4080 = vpop.f32.mrb[0].mxu0
        %v4081 = vadd.f32 %v3876, %v4080
        %v4082 = vpop.f32.mrb[0].mxu0
        %v4083 = vadd.f32 %v3872, %v4082
        %v4084 = vpop.f32.mrb[0].mxu0
        %v4085 = vadd.f32 %v3876, %v4084
        %4086 = vdwg.mxu0
        %v4087 = vmax.f32 %v4036, 0.0
        %v4088 = vmax.f32 %v4038, 0.0
        %v4089 = vmax.f32 %v4079, 0.0
        %v4090 = vmax.f32 %v4081, 0.0
        %v4091 = vmax.f32 %v4040, 0.0
        %v4092 = vmax.f32 %v4042, 0.0
        %v4093 = vmax.f32 %v4083, 0.0
        %v4094 = vmax.f32 %v4085, 0.0
        %v4095 = vpack.c.bf16 %v4091, %v4087
        %v4096 = vpack.c.bf16 %v4092, %v4088
        %v4097 = vpack.c.bf16 %v4093, %v4089
        %v4098 = vpack.c.bf16 %v4094, %v4090
        %v4099 = vld [vmem:[%s16 + $0x100] sm:$0xf]
        %v4100 = vld [vmem:[%s16 + $0x104] sm:$0xf]
        %v4101 = vld [vmem:[%s16 + $0x108] sm:$0xf]
        %v4102 = vld [vmem:[%s16 + $0x10c] sm:$0xf]
        %v4103 = vld [vmem:[%s16 + $0x110] sm:$0xf]
        %v4104 = vld [vmem:[%s16 + $0x114] sm:$0xf]
        %v4105 = vld [vmem:[%s16 + $0x118] sm:$0xf]
        %v4106 = vld [vmem:[%s16 + $0x11c] sm:$0xf]
        %v4107 = vld [vmem:[%s16 + $0x120] sm:$0xf]
        %v4108 = vld [vmem:[%s16 + $0x124] sm:$0xf]
        %v4109 = vld [vmem:[%s16 + $0x128] sm:$0xf]
        %v4110 = vld [vmem:[%s16 + $0x12c] sm:$0xf]
        %v4111 = vld [vmem:[%s16 + $0x130] sm:$0xf]
        %v4112 = vld [vmem:[%s16 + $0x134] sm:$0xf]
        %v4113 = vld [vmem:[%s16 + $0x138] sm:$0xf]
        %v4114 = vld [vmem:[%s16 + $0x13c] sm:$0xf]
        %v4115 = vld [vmem:[%s16 + $0x140] sm:$0xf]
        %v4116 = vld [vmem:[%s16 + $0x144] sm:$0xf]
        %v4117 = vld [vmem:[%s16 + $0x148] sm:$0xf]
        %v4118 = vld [vmem:[%s16 + $0x14c] sm:$0xf]
        %v4119 = vld [vmem:[%s16 + $0x150] sm:$0xf]
        %v4120 = vld [vmem:[%s16 + $0x154] sm:$0xf]
        %v4121 = vld [vmem:[%s16 + $0x158] sm:$0xf]
        %v4122 = vld [vmem:[%s16 + $0x15c] sm:$0xf]
        %v4123 = vld [vmem:[%s16 + $0x160] sm:$0xf]
        %v4124 = vld [vmem:[%s16 + $0x164] sm:$0xf]
        %v4125 = vld [vmem:[%s16 + $0x168] sm:$0xf]
        %v4126 = vld [vmem:[%s16 + $0x16c] sm:$0xf]
        %v4127 = vld [vmem:[%s16 + $0x170] sm:$0xf]
        %v4128 = vld [vmem:[%s16 + $0x174] sm:$0xf]
        %v4129 = vld [vmem:[%s16 + $0x178] sm:$0xf]
        %v4130 = vld [vmem:[%s16 + $0x17c] sm:$0xf]
        %v4131 = vld [vmem:[%s16 + $0x180] sm:$0xf]
        %v4132 = vld [vmem:[%s16 + $0x184] sm:$0xf]
        %v4133 = vld [vmem:[%s16 + $0x188] sm:$0xf]
        %v4134 = vld [vmem:[%s16 + $0x18c] sm:$0xf]
        %v4135 = vld [vmem:[%s16 + $0x190] sm:$0xf]
        %v4136 = vld [vmem:[%s16 + $0x194] sm:$0xf]
        %v4137 = vld [vmem:[%s16 + $0x198] sm:$0xf]
        %v4138 = vld [vmem:[%s16 + $0x19c] sm:$0xf]
        %v4139 = vld [vmem:[%s16 + $0x1a0] sm:$0xf]
        %v4140 = vld [vmem:[%s16 + $0x1a4] sm:$0xf]
        %v4141 = vld [vmem:[%s16 + $0x1a8] sm:$0xf]
        %v4142 = vld [vmem:[%s16 + $0x1ac] sm:$0xf]
        %v4143 = vld [vmem:[%s16 + $0x1b0] sm:$0xf]
        %v4144 = vld [vmem:[%s16 + $0x1b4] sm:$0xf]
        %v4145 = vld [vmem:[%s16 + $0x1b8] sm:$0xf]
        %v4146 = vld [vmem:[%s16 + $0x1bc] sm:$0xf]
        %v4147 = vld [vmem:[%s16 + $0x1c0] sm:$0xf]
        %v4148 = vld [vmem:[%s16 + $0x1c4] sm:$0xf]
        %v4149 = vld [vmem:[%s16 + $0x1c8] sm:$0xf]
        %v4150 = vld [vmem:[%s16 + $0x1cc] sm:$0xf]
        %v4151 = vld [vmem:[%s16 + $0x1d0] sm:$0xf]
        %v4152 = vld [vmem:[%s16 + $0x1d4] sm:$0xf]
        %v4153 = vld [vmem:[%s16 + $0x1d8] sm:$0xf]
        %v4154 = vld [vmem:[%s16 + $0x1dc] sm:$0xf]
        %v4155 = vld [vmem:[%s16 + $0x1e0] sm:$0xf]
        %v4156 = vld [vmem:[%s16 + $0x1e4] sm:$0xf]
        %v4157 = vld [vmem:[%s16 + $0x1e8] sm:$0xf]
        %v4158 = vld [vmem:[%s16 + $0x1ec] sm:$0xf]
        %v4159 = vld [vmem:[%s16 + $0x1f0] sm:$0xf]
        %v4160 = vld [vmem:[%s16 + $0x1f4] sm:$0xf]
        %v4161 = vld [vmem:[%s16 + $0x1f8] sm:$0xf]
        %v4162 = vld [vmem:[%s16 + $0x1fc] sm:$0xf]
        %v4227 = vunpack.c.l.b16 %v4099
        %v4228 = vunpack.c.l.b16 %v4100
        %v4229 = vunpack.c.l.b16 %v4101
        %v4230 = vunpack.c.l.b16 %v4102
        %v4231 = vunpack.c.l.b16 %v4103
        %v4232 = vunpack.c.l.b16 %v4104
        %v4233 = vunpack.c.l.b16 %v4105
        %v4234 = vunpack.c.l.b16 %v4106
        %v4235 = vunpack.c.l.b16 %v4107
        %v4236 = vunpack.c.l.b16 %v4108
        %v4237 = vunpack.c.l.b16 %v4109
        %v4238 = vunpack.c.l.b16 %v4110
        %v4239 = vunpack.c.l.b16 %v4111
        %v4240 = vunpack.c.l.b16 %v4112
        %v4241 = vunpack.c.l.b16 %v4113
        %v4242 = vunpack.c.l.b16 %v4114
        %v4243 = vunpack.c.l.b16 %v4115
        %v4244 = vunpack.c.l.b16 %v4116
        %v4245 = vunpack.c.l.b16 %v4117
        %v4246 = vunpack.c.l.b16 %v4118
        %v4247 = vunpack.c.l.b16 %v4119
        %v4248 = vunpack.c.l.b16 %v4120
        %v4249 = vunpack.c.l.b16 %v4121
        %v4250 = vunpack.c.l.b16 %v4122
        %v4251 = vunpack.c.l.b16 %v4123
        %v4252 = vunpack.c.l.b16 %v4124
        %v4253 = vunpack.c.l.b16 %v4125
        %v4254 = vunpack.c.l.b16 %v4126
        %v4255 = vunpack.c.l.b16 %v4127
        %v4256 = vunpack.c.l.b16 %v4128
        %v4257 = vunpack.c.l.b16 %v4129
        %v4258 = vunpack.c.l.b16 %v4130
        %v4259 = vunpack.c.l.b16 %v4131
        %v4260 = vunpack.c.l.b16 %v4132
        %v4261 = vunpack.c.l.b16 %v4133
        %v4262 = vunpack.c.l.b16 %v4134
        %v4263 = vunpack.c.l.b16 %v4135
        %v4264 = vunpack.c.l.b16 %v4136
        %v4265 = vunpack.c.l.b16 %v4137
        %v4266 = vunpack.c.l.b16 %v4138
        %v4267 = vunpack.c.l.b16 %v4139
        %v4268 = vunpack.c.l.b16 %v4140
        %v4269 = vunpack.c.l.b16 %v4141
        %v4270 = vunpack.c.l.b16 %v4142
        %v4271 = vunpack.c.l.b16 %v4143
        %v4272 = vunpack.c.l.b16 %v4144
        %v4273 = vunpack.c.l.b16 %v4145
        %v4274 = vunpack.c.l.b16 %v4146
        %v4275 = vunpack.c.l.b16 %v4147
        %v4276 = vunpack.c.l.b16 %v4148
        %v4277 = vunpack.c.l.b16 %v4149
        %v4278 = vunpack.c.l.b16 %v4150
        %v4279 = vunpack.c.l.b16 %v4151
        %v4280 = vunpack.c.l.b16 %v4152
        %v4281 = vunpack.c.l.b16 %v4153
        %v4282 = vunpack.c.l.b16 %v4154
        %v4283 = vunpack.c.l.b16 %v4155
        %v4284 = vunpack.c.l.b16 %v4156
        %v4285 = vunpack.c.l.b16 %v4157
        %v4286 = vunpack.c.l.b16 %v4158
        %v4287 = vunpack.c.l.b16 %v4159
        %v4288 = vunpack.c.l.b16 %v4160
        %v4289 = vunpack.c.l.b16 %v4161
        %v4290 = vunpack.c.l.b16 %v4162
        %v4291 = vpack.c.b16 %v4228, %v4227
        %v4292 = vpack.c.b16 %v4230, %v4229
        %v4293 = vpack.c.b16 %v4232, %v4231
        %v4294 = vpack.c.b16 %v4234, %v4233
        %v4295 = vpack.c.b16 %v4236, %v4235
        %v4296 = vpack.c.b16 %v4238, %v4237
        %v4297 = vpack.c.b16 %v4240, %v4239
        %v4298 = vpack.c.b16 %v4242, %v4241
        %v4299 = vpack.c.b16 %v4244, %v4243
        %v4300 = vpack.c.b16 %v4246, %v4245
        %v4301 = vpack.c.b16 %v4248, %v4247
        %v4302 = vpack.c.b16 %v4250, %v4249
        %v4303 = vpack.c.b16 %v4252, %v4251
        %v4304 = vpack.c.b16 %v4254, %v4253
        %v4305 = vpack.c.b16 %v4256, %v4255
        %v4306 = vpack.c.b16 %v4258, %v4257
        %v4307 = vpack.c.b16 %v4260, %v4259
        %v4308 = vpack.c.b16 %v4262, %v4261
        %v4309 = vpack.c.b16 %v4264, %v4263
        %v4310 = vpack.c.b16 %v4266, %v4265
        %v4311 = vpack.c.b16 %v4268, %v4267
        %v4312 = vpack.c.b16 %v4270, %v4269
        %v4313 = vpack.c.b16 %v4272, %v4271
        %v4314 = vpack.c.b16 %v4274, %v4273
        %v4315 = vpack.c.b16 %v4276, %v4275
        %v4316 = vpack.c.b16 %v4278, %v4277
        %v4317 = vpack.c.b16 %v4280, %v4279
        %v4318 = vpack.c.b16 %v4282, %v4281
        %v4319 = vpack.c.b16 %v4284, %v4283
        %v4320 = vpack.c.b16 %v4286, %v4285
        %v4321 = vpack.c.b16 %v4288, %v4287
        %v4322 = vpack.c.b16 %v4290, %v4289
        %4355 = vmatprep.subr.bf16.mxu0 0
        %4356 = vmatpush1.bf16.msra.mxu0 %v4291
        %4357 = vmatprep.subr.bf16.mxu0 0
        %4358 = vmatpush1.bf16.msra.mxu0 %v4292
        %4359 = vmatprep.subr.bf16.mxu0 0
        %4360 = vmatpush1.bf16.msra.mxu0 %v4293
        %4361 = vmatprep.subr.bf16.mxu0 0
        %4362 = vmatpush1.bf16.msra.mxu0 %v4294
        %4363 = vmatprep.subr.bf16.mxu0 0
        %4364 = vmatpush1.bf16.msra.mxu0 %v4295
        %4365 = vmatprep.subr.bf16.mxu0 0
        %4366 = vmatpush1.bf16.msra.mxu0 %v4296
        %4367 = vmatprep.subr.bf16.mxu0 0
        %4368 = vmatpush1.bf16.msra.mxu0 %v4297
        %4369 = vmatprep.subr.bf16.mxu0 0
        %4370 = vmatpush1.bf16.msra.mxu0 %v4298
        %4371 = vmatprep.subr.bf16.mxu0 0
        %4372 = vmatpush1.bf16.msra.mxu0 %v4299
        %4373 = vmatprep.subr.bf16.mxu0 0
        %4374 = vmatpush1.bf16.msra.mxu0 %v4300
        %4375 = vmatprep.subr.bf16.mxu0 0
        %4376 = vmatpush1.bf16.msra.mxu0 %v4301
        %4377 = vmatprep.subr.bf16.mxu0 0
        %4378 = vmatpush1.bf16.msra.mxu0 %v4302
        %4379 = vmatprep.subr.bf16.mxu0 0
        %4380 = vmatpush1.bf16.msra.mxu0 %v4303
        %4381 = vmatprep.subr.bf16.mxu0 0
        %4382 = vmatpush1.bf16.msra.mxu0 %v4304
        %4383 = vmatprep.subr.bf16.mxu0 0
        %4384 = vmatpush1.bf16.msra.mxu0 %v4305
        %4385 = vmatprep.subr.bf16.mxu0 0
        %4386 = vmatpush1.bf16.msra.mxu0 %v4306
        %4387 = vmatprep.mubr.bf16.mxu0 %v4096
        %4388 = vmatmul.mubr.bf16.gmra.mrb[0].mxu0 %v4095
        %v4389 = vpop.f32.mrb[0].mxu0
        %v4390 = vadd.f32 0.0, %v4389
        %v4391 = vpop.f32.mrb[0].mxu0
        %v4392 = vpop.f32.mrb[0].mxu0
        %v4393 = vpop.f32.mrb[0].mxu0
        %4394 = vdwg.mxu0
        %4395 = vmatprep.subr.bf16.mxu0 0
        %4396 = vmatpush1.bf16.msra.mxu0 %v4307
        %4397 = vmatprep.subr.bf16.mxu0 0
        %4398 = vmatpush1.bf16.msra.mxu0 %v4308
        %4399 = vmatprep.subr.bf16.mxu0 0
        %4400 = vmatpush1.bf16.msra.mxu0 %v4309
        %4401 = vmatprep.subr.bf16.mxu0 0
        %4402 = vmatpush1.bf16.msra.mxu0 %v4310
        %4403 = vmatprep.subr.bf16.mxu0 0
        %4404 = vmatpush1.bf16.msra.mxu0 %v4311
        %4405 = vmatprep.subr.bf16.mxu0 0
        %4406 = vmatpush1.bf16.msra.mxu0 %v4312
        %4407 = vmatprep.subr.bf16.mxu0 0
        %4408 = vmatpush1.bf16.msra.mxu0 %v4313
        %4409 = vmatprep.subr.bf16.mxu0 0
        %4410 = vmatpush1.bf16.msra.mxu0 %v4314
        %4411 = vmatprep.subr.bf16.mxu0 0
        %4412 = vmatpush1.bf16.msra.mxu0 %v4315
        %4413 = vmatprep.subr.bf16.mxu0 0
        %4414 = vmatpush1.bf16.msra.mxu0 %v4316
        %4415 = vmatprep.subr.bf16.mxu0 0
        %4416 = vmatpush1.bf16.msra.mxu0 %v4317
        %4417 = vmatprep.subr.bf16.mxu0 0
        %4418 = vmatpush1.bf16.msra.mxu0 %v4318
        %4419 = vmatprep.subr.bf16.mxu0 0
        %4420 = vmatpush1.bf16.msra.mxu0 %v4319
        %4421 = vmatprep.subr.bf16.mxu0 0
        %4422 = vmatpush1.bf16.msra.mxu0 %v4320
        %4423 = vmatprep.subr.bf16.mxu0 0
        %4424 = vmatpush1.bf16.msra.mxu0 %v4321
        %4425 = vmatprep.subr.bf16.mxu0 0
        %4426 = vmatpush1.bf16.msra.mxu0 %v4322
        %4427 = vmatprep.mubr.bf16.mxu0 %v4098
        %4428 = vmatmul.mubr.bf16.gmra.mrb[0].mxu0 %v4097
        %v4429 = vpop.f32.mrb[0].mxu0
        %v4430 = vadd.f32 %v4390, %v4429
        %v4431 = vpop.f32.mrb[0].mxu0
        %v4432 = vpop.f32.mrb[0].mxu0
        %v4433 = vpop.f32.mrb[0].mxu0
        %4434 = vdwg.mxu0
        %v4499 = vunpack.c.l.b16 %v3771
        %v4500 = vunpack.c.l.b16 %v3772
        %v4501 = vunpack.c.l.b16 %v3773
        %v4502 = vunpack.c.l.b16 %v3774
        %v4503 = vunpack.c.l.b16 %v3775
        %v4504 = vunpack.c.l.b16 %v3776
        %v4505 = vunpack.c.l.b16 %v3777
        %v4506 = vunpack.c.l.b16 %v3778
        %v4507 = vunpack.c.l.b16 %v3779
        %v4508 = vunpack.c.l.b16 %v3780
        %v4509 = vunpack.c.l.b16 %v3781
        %v4510 = vunpack.c.l.b16 %v3782
        %v4511 = vunpack.c.l.b16 %v3783
        %v4512 = vunpack.c.l.b16 %v3784
        %v4513 = vunpack.c.l.b16 %v3785
        %v4514 = vunpack.c.l.b16 %v3786
        %v4515 = vunpack.c.l.b16 %v3787
        %v4516 = vunpack.c.l.b16 %v3788
        %v4517 = vunpack.c.l.b16 %v3789
        %v4518 = vunpack.c.l.b16 %v3790
        %v4519 = vunpack.c.l.b16 %v3791
        %v4520 = vunpack.c.l.b16 %v3792
        %v4521 = vunpack.c.l.b16 %v3793
        %v4522 = vunpack.c.l.b16 %v3794
        %v4523 = vunpack.c.l.b16 %v3795
        %v4524 = vunpack.c.l.b16 %v3796
        %v4525 = vunpack.c.l.b16 %v3797
        %v4526 = vunpack.c.l.b16 %v3798
        %v4527 = vunpack.c.l.b16 %v3799
        %v4528 = vunpack.c.l.b16 %v3800
        %v4529 = vunpack.c.l.b16 %v3801
        %v4530 = vunpack.c.l.b16 %v3802
        %v4531 = vunpack.c.l.b16 %v3803
        %v4532 = vunpack.c.l.b16 %v3804
        %v4533 = vunpack.c.l.b16 %v3805
        %v4534 = vunpack.c.l.b16 %v3806
        %v4535 = vunpack.c.l.b16 %v3807
        %v4536 = vunpack.c.l.b16 %v3808
        %v4537 = vunpack.c.l.b16 %v3809
        %v4538 = vunpack.c.l.b16 %v3810
        %v4539 = vunpack.c.l.b16 %v3811
        %v4540 = vunpack.c.l.b16 %v3812
        %v4541 = vunpack.c.l.b16 %v3813
        %v4542 = vunpack.c.l.b16 %v3814
        %v4543 = vunpack.c.l.b16 %v3815
        %v4544 = vunpack.c.l.b16 %v3816
        %v4545 = vunpack.c.l.b16 %v3817
        %v4546 = vunpack.c.l.b16 %v3818
        %v4547 = vunpack.c.l.b16 %v3819
        %v4548 = vunpack.c.l.b16 %v3820
        %v4549 = vunpack.c.l.b16 %v3821
        %v4550 = vunpack.c.l.b16 %v3822
        %v4551 = vunpack.c.l.b16 %v3823
        %v4552 = vunpack.c.l.b16 %v3824
        %v4553 = vunpack.c.l.b16 %v3825
        %v4554 = vunpack.c.l.b16 %v3826
        %v4555 = vunpack.c.l.b16 %v3827
        %v4556 = vunpack.c.l.b16 %v3828
        %v4557 = vunpack.c.l.b16 %v3829
        %v4558 = vunpack.c.l.b16 %v3830
        %v4559 = vunpack.c.l.b16 %v3831
        %v4560 = vunpack.c.l.b16 %v3832
        %v4561 = vunpack.c.l.b16 %v3833
        %v4562 = vunpack.c.l.b16 %v3834
        %v4563 = vpack.c.b16 %v4500, %v4499
        %v4564 = vpack.c.b16 %v4502, %v4501
        %v4565 = vpack.c.b16 %v4504, %v4503
        %v4566 = vpack.c.b16 %v4506, %v4505
        %v4567 = vpack.c.b16 %v4508, %v4507
        %v4568 = vpack.c.b16 %v4510, %v4509
        %v4569 = vpack.c.b16 %v4512, %v4511
        %v4570 = vpack.c.b16 %v4514, %v4513
        %v4571 = vpack.c.b16 %v4516, %v4515
        %v4572 = vpack.c.b16 %v4518, %v4517
        %v4573 = vpack.c.b16 %v4520, %v4519
        %v4574 = vpack.c.b16 %v4522, %v4521
        %v4575 = vpack.c.b16 %v4524, %v4523
        %v4576 = vpack.c.b16 %v4526, %v4525
        %v4577 = vpack.c.b16 %v4528, %v4527
        %v4578 = vpack.c.b16 %v4530, %v4529
        %v4579 = vpack.c.b16 %v4532, %v4531
        %v4580 = vpack.c.b16 %v4534, %v4533
        %v4581 = vpack.c.b16 %v4536, %v4535
        %v4582 = vpack.c.b16 %v4538, %v4537
        %v4583 = vpack.c.b16 %v4540, %v4539
        %v4584 = vpack.c.b16 %v4542, %v4541
        %v4585 = vpack.c.b16 %v4544, %v4543
        %v4586 = vpack.c.b16 %v4546, %v4545
        %v4587 = vpack.c.b16 %v4548, %v4547
        %v4588 = vpack.c.b16 %v4550, %v4549
        %v4589 = vpack.c.b16 %v4552, %v4551
        %v4590 = vpack.c.b16 %v4554, %v4553
        %v4591 = vpack.c.b16 %v4556, %v4555
        %v4592 = vpack.c.b16 %v4558, %v4557
        %v4593 = vpack.c.b16 %v4560, %v4559
        %v4594 = vpack.c.b16 %v4562, %v4561
        %4627 = vmatprep.subr.bf16.mxu0 0
        %4628 = vmatpush1.bf16.msra.mxu0 %v4563
        %4629 = vmatprep.subr.bf16.mxu0 0
        %4630 = vmatpush1.bf16.msra.mxu0 %v4564
        %4631 = vmatprep.subr.bf16.mxu0 0
        %4632 = vmatpush1.bf16.msra.mxu0 %v4565
        %4633 = vmatprep.subr.bf16.mxu0 0
        %4634 = vmatpush1.bf16.msra.mxu0 %v4566
        %4635 = vmatprep.subr.bf16.mxu0 0
        %4636 = vmatpush1.bf16.msra.mxu0 %v4567
        %4637 = vmatprep.subr.bf16.mxu0 0
        %4638 = vmatpush1.bf16.msra.mxu0 %v4568
        %4639 = vmatprep.subr.bf16.mxu0 0
        %4640 = vmatpush1.bf16.msra.mxu0 %v4569
        %4641 = vmatprep.subr.bf16.mxu0 0
        %4642 = vmatpush1.bf16.msra.mxu0 %v4570
        %4643 = vmatprep.subr.bf16.mxu0 0
        %4644 = vmatpush1.bf16.msra.mxu0 %v4571
        %4645 = vmatprep.subr.bf16.mxu0 0
        %4646 = vmatpush1.bf16.msra.mxu0 %v4572
        %4647 = vmatprep.subr.bf16.mxu0 0
        %4648 = vmatpush1.bf16.msra.mxu0 %v4573
        %4649 = vmatprep.subr.bf16.mxu0 0
        %4650 = vmatpush1.bf16.msra.mxu0 %v4574
        %4651 = vmatprep.subr.bf16.mxu0 0
        %4652 = vmatpush1.bf16.msra.mxu0 %v4575
        %4653 = vmatprep.subr.bf16.mxu0 0
        %4654 = vmatpush1.bf16.msra.mxu0 %v4576
        %4655 = vmatprep.subr.bf16.mxu0 0
        %4656 = vmatpush1.bf16.msra.mxu0 %v4577
        %4657 = vmatprep.subr.bf16.mxu0 0
        %4658 = vmatpush1.bf16.msra.mxu0 %v4578
        %4659 = vmatprep.mubr.bf16.mxu0 %v3768
        %4660 = vmatmul.mubr.bf16.gmra.mrb[0].mxu0 %v3767
        %v4661 = vpop.f32.mrb[0].mxu0
        %v4662 = vadd.f32 %v4430, %v4661
        %v4663 = vpop.f32.mrb[0].mxu0
        %v4664 = vpop.f32.mrb[0].mxu0
        %v4665 = vpop.f32.mrb[0].mxu0
        %4666 = vdwg.mxu0
        %4667 = vmatprep.subr.bf16.mxu0 0
        %4668 = vmatpush1.bf16.msra.mxu0 %v4579
        %4669 = vmatprep.subr.bf16.mxu0 0
        %4670 = vmatpush1.bf16.msra.mxu0 %v4580
        %4671 = vmatprep.subr.bf16.mxu0 0
        %4672 = vmatpush1.bf16.msra.mxu0 %v4581
        %4673 = vmatprep.subr.bf16.mxu0 0
        %4674 = vmatpush1.bf16.msra.mxu0 %v4582
        %4675 = vmatprep.subr.bf16.mxu0 0
        %4676 = vmatpush1.bf16.msra.mxu0 %v4583
        %4677 = vmatprep.subr.bf16.mxu0 0
        %4678 = vmatpush1.bf16.msra.mxu0 %v4584
        %4679 = vmatprep.subr.bf16.mxu0 0
        %4680 = vmatpush1.bf16.msra.mxu0 %v4585
        %4681 = vmatprep.subr.bf16.mxu0 0
        %4682 = vmatpush1.bf16.msra.mxu0 %v4586
        %4683 = vmatprep.subr.bf16.mxu0 0
        %4684 = vmatpush1.bf16.msra.mxu0 %v4587
        %4685 = vmatprep.subr.bf16.mxu0 0
        %4686 = vmatpush1.bf16.msra.mxu0 %v4588
        %4687 = vmatprep.subr.bf16.mxu0 0
        %4688 = vmatpush1.bf16.msra.mxu0 %v4589
        %4689 = vmatprep.subr.bf16.mxu0 0
        %4690 = vmatpush1.bf16.msra.mxu0 %v4590
        %4691 = vmatprep.subr.bf16.mxu0 0
        %4692 = vmatpush1.bf16.msra.mxu0 %v4591
        %4693 = vmatprep.subr.bf16.mxu0 0
        %4694 = vmatpush1.bf16.msra.mxu0 %v4592
        %4695 = vmatprep.subr.bf16.mxu0 0
        %4696 = vmatpush1.bf16.msra.mxu0 %v4593
        %4697 = vmatprep.subr.bf16.mxu0 0
        %4698 = vmatpush1.bf16.msra.mxu0 %v4594
        %4699 = vmatprep.mubr.bf16.mxu0 %v3770
        %4700 = vmatmul.mubr.bf16.gmra.mrb[0].mxu0 %v3769
        %v4701 = vpop.f32.mrb[0].mxu0
        %v4702 = vadd.f32 %v4662, %v4701
        %v4703 = vpop.f32.mrb[0].mxu0
        %v4704 = vpop.f32.mrb[0].mxu0
        %v4705 = vpop.f32.mrb[0].mxu0
        %4706 = vdwg.mxu0
        %v4707 = vld [vmem:[%s14 + $0x20] sm:$0xff]
        %v4708 = vld [vmem:[%s14 + $0x28] sm:$0xff]
        %v4709 = vld [vmem:[%s14 + $0x60] sm:$0xff]
        %v4710 = vld [vmem:[%s14 + $0x68] sm:$0xff]
        %v4711 = vld [vmem:[%s14 + $0xa0] sm:$0xff]
        %v4712 = vld [vmem:[%s14 + $0xa8] sm:$0xff]
        %v4713 = vld [vmem:[%s14 + $0xe0] sm:$0xff]
        %v4714 = vld [vmem:[%s14 + $0xe8] sm:$0xff]
        %v4715 = vld [vmem:[%s14 + $0x120] sm:$0xff]
        %v4716 = vld [vmem:[%s14 + $0x128] sm:$0xff]
        %v4717 = vld [vmem:[%s14 + $0x160] sm:$0xff]
        %v4718 = vld [vmem:[%s14 + $0x168] sm:$0xff]
        %v4719 = vld [vmem:[%s14 + $0x1a0] sm:$0xff]
        %v4720 = vld [vmem:[%s14 + $0x1a8] sm:$0xff]
        %v4721 = vld [vmem:[%s14 + $0x1e0] sm:$0xff]
        %v4722 = vld [vmem:[%s14 + $0x1e8] sm:$0xff]
        %v4723 = vld [vmem:[%s14 + $0x220] sm:$0xff]
        %v4724 = vld [vmem:[%s14 + $0x228] sm:$0xff]
        %v4725 = vld [vmem:[%s14 + $0x260] sm:$0xff]
        %v4726 = vld [vmem:[%s14 + $0x268] sm:$0xff]
        %v4727 = vld [vmem:[%s14 + $0x2a0] sm:$0xff]
        %v4728 = vld [vmem:[%s14 + $0x2a8] sm:$0xff]
        %v4729 = vld [vmem:[%s14 + $0x2e0] sm:$0xff]
        %v4730 = vld [vmem:[%s14 + $0x2e8] sm:$0xff]
        %v4731 = vld [vmem:[#allocation10 + $0x8] sm:$0xf]
        %v4733 = vlaneseq
        %v4734 = vshrl.u32 %v4733, 7
        %v4735 = vsub.s32 0, %v4734
        %v4736 = vrot.slane %v4731, %v4735
        %v4737 = vlaneseq
        %v4738 = vshrl.u32 %v4737, 7
        %v4739 = vsub.s32 1, %v4738
        %v4740 = vrot.slane %v4731, %v4739
        %v4741 = vlaneseq
        %v4742 = vshrl.u32 %v4741, 7
        %v4743 = vsub.s32 2, %v4742
        %v4744 = vrot.slane %v4731, %v4743
        %v4745 = vlaneseq
        %v4746 = vshrl.u32 %v4745, 7
        %v4747 = vsub.s32 3, %v4746
        %v4748 = vrot.slane %v4731, %v4747
        %v4777 = vunpack.c.l.b16 %v4707
        %v4778 = vunpack.c.h.b16 %v4707
        %v4779 = vunpack.c.l.b16 %v4708
        %v4780 = vunpack.c.h.b16 %v4708
        %v4781 = vunpack.c.l.b16 %v4709
        %v4782 = vunpack.c.h.b16 %v4709
        %v4783 = vunpack.c.l.b16 %v4710
        %v4784 = vunpack.c.h.b16 %v4710
        %v4785 = vunpack.c.l.b16 %v4711
        %v4786 = vunpack.c.h.b16 %v4711
        %v4787 = vunpack.c.l.b16 %v4712
        %v4788 = vunpack.c.h.b16 %v4712
        %v4789 = vunpack.c.l.b16 %v4713
        %v4790 = vunpack.c.h.b16 %v4713
        %v4791 = vunpack.c.l.b16 %v4714
        %v4792 = vunpack.c.h.b16 %v4714
        %v4793 = vunpack.c.l.b16 %v4715
        %v4794 = vunpack.c.h.b16 %v4715
        %v4795 = vunpack.c.l.b16 %v4716
        %v4796 = vunpack.c.h.b16 %v4716
        %v4797 = vunpack.c.l.b16 %v4717
        %v4798 = vunpack.c.h.b16 %v4717
        %v4799 = vunpack.c.l.b16 %v4718
        %v4800 = vunpack.c.h.b16 %v4718
        %v4801 = vunpack.c.l.b16 %v4719
        %v4802 = vunpack.c.h.b16 %v4719
        %v4803 = vunpack.c.l.b16 %v4720
        %v4804 = vunpack.c.h.b16 %v4720
        %v4805 = vunpack.c.l.b16 %v4721
        %v4806 = vunpack.c.h.b16 %v4721
        %v4807 = vunpack.c.l.b16 %v4722
        %v4808 = vunpack.c.h.b16 %v4722
        %v4809 = vunpack.c.l.b16 %v4723
        %v4810 = vunpack.c.h.b16 %v4723
        %v4811 = vunpack.c.l.b16 %v4724
        %v4812 = vunpack.c.h.b16 %v4724
        %v4813 = vunpack.c.l.b16 %v4725
        %v4814 = vunpack.c.h.b16 %v4725
        %v4815 = vunpack.c.l.b16 %v4726
        %v4816 = vunpack.c.h.b16 %v4726
        %v4817 = vunpack.c.l.b16 %v4727
        %v4818 = vunpack.c.h.b16 %v4727
        %v4819 = vunpack.c.l.b16 %v4728
        %v4820 = vunpack.c.h.b16 %v4728
        %v4821 = vunpack.c.l.b16 %v4729
        %v4822 = vunpack.c.h.b16 %v4729
        %v4823 = vunpack.c.l.b16 %v4730
        %v4824 = vunpack.c.h.b16 %v4730
        %v4825 = vpack.c.b16 %v4781, %v4777
        %v4826 = vpack.c.b16 %v4782, %v4778
        %v4827 = vpack.c.b16 %v4783, %v4779
        %v4828 = vpack.c.b16 %v4784, %v4780
        %v4829 = vpack.c.b16 %v4789, %v4785
        %v4830 = vpack.c.b16 %v4790, %v4786
        %v4831 = vpack.c.b16 %v4791, %v4787
        %v4832 = vpack.c.b16 %v4792, %v4788
        %v4833 = vpack.c.b16 %v4797, %v4793
        %v4834 = vpack.c.b16 %v4798, %v4794
        %v4835 = vpack.c.b16 %v4799, %v4795
        %v4836 = vpack.c.b16 %v4800, %v4796
        %v4837 = vpack.c.b16 %v4805, %v4801
        %v4838 = vpack.c.b16 %v4806, %v4802
        %v4839 = vpack.c.b16 %v4807, %v4803
        %v4840 = vpack.c.b16 %v4808, %v4804
        %v4841 = vpack.c.b16 %v4813, %v4809
        %v4842 = vpack.c.b16 %v4814, %v4810
        %v4843 = vpack.c.b16 %v4815, %v4811
        %v4844 = vpack.c.b16 %v4816, %v4812
        %v4845 = vpack.c.b16 %v4821, %v4817
        %v4846 = vpack.c.b16 %v4822, %v4818
        %v4847 = vpack.c.b16 %v4823, %v4819
        %v4848 = vpack.c.b16 %v4824, %v4820
        %4873 = vmatprep.subr.bf16.mxu0 %v4826
        %4874 = vmatpush1.bf16.msra.mxu0 %v4825
        %4875 = vmatprep.subr.bf16.mxu0 %v4830
        %4876 = vmatpush1.bf16.msra.mxu0 %v4829
        %4877 = vmatprep.subr.bf16.mxu0 %v4834
        %4878 = vmatpush1.bf16.msra.mxu0 %v4833
        %4879 = vmatprep.subr.bf16.mxu0 %v4838
        %4880 = vmatpush1.bf16.msra.mxu0 %v4837
        %4881 = vmatprep.subr.bf16.mxu0 %v4842
        %4882 = vmatpush1.bf16.msra.mxu0 %v4841
        %4883 = vmatprep.subr.bf16.mxu0 %v4846
        %4884 = vmatpush1.bf16.msra.mxu0 %v4845
        %4885 = vmatprep.subr.bf16.mxu0 0
        %4886 = vmatpush1.bf16.msra.mxu0 0
        %4887 = vmatprep.subr.bf16.mxu0 0
        %4888 = vmatpush1.bf16.msra.mxu0 0
        %4889 = vmatprep.subr.bf16.mxu0 0
        %4890 = vmatpush1.bf16.msra.mxu0 0
        %4891 = vmatprep.subr.bf16.mxu0 0
        %4892 = vmatpush1.bf16.msra.mxu0 0
        %4893 = vmatprep.subr.bf16.mxu0 0
        %4894 = vmatpush1.bf16.msra.mxu0 0
        %4895 = vmatprep.subr.bf16.mxu0 0
        %4896 = vmatpush1.bf16.msra.mxu0 0
        %4897 = vmatprep.subr.bf16.mxu0 0
        %4898 = vmatpush1.bf16.msra.mxu0 0
        %4899 = vmatprep.subr.bf16.mxu0 0
        %4900 = vmatpush1.bf16.msra.mxu0 0
        %4901 = vmatprep.subr.bf16.mxu0 0
        %4902 = vmatpush1.bf16.msra.mxu0 0
        %4903 = vmatprep.subr.bf16.mxu0 0
        %4904 = vmatpush1.bf16.msra.mxu0 0
        %4905 = vmatprep.mubr.bf16.mxu0 0
        %4906 = vmatmul.mubr.bf16.gmra.mrb[0].mxu0 %v3671
        %v4907 = vpop.f32.mrb[0].mxu0
        %v4908 = vadd.f32 %v4736, %v4907
        %v4909 = vpop.f32.mrb[0].mxu0
        %v4910 = vadd.f32 %v4740, %v4909
        %v4911 = vpop.f32.mrb[0].mxu0
        %v4912 = vadd.f32 %v4736, %v4911
        %v4913 = vpop.f32.mrb[0].mxu0
        %v4914 = vadd.f32 %v4740, %v4913
        %4915 = vdwg.mxu0
        %4916 = vmatprep.subr.bf16.mxu0 %v4828
        %4917 = vmatpush1.bf16.msra.mxu0 %v4827
        %4918 = vmatprep.subr.bf16.mxu0 %v4832
        %4919 = vmatpush1.bf16.msra.mxu0 %v4831
        %4920 = vmatprep.subr.bf16.mxu0 %v4836
        %4921 = vmatpush1.bf16.msra.mxu0 %v4835
        %4922 = vmatprep.subr.bf16.mxu0 %v4840
        %4923 = vmatpush1.bf16.msra.mxu0 %v4839
        %4924 = vmatprep.subr.bf16.mxu0 %v4844
        %4925 = vmatpush1.bf16.msra.mxu0 %v4843
        %4926 = vmatprep.subr.bf16.mxu0 %v4848
        %4927 = vmatpush1.bf16.msra.mxu0 %v4847
        %4928 = vmatprep.subr.bf16.mxu0 0
        %4929 = vmatpush1.bf16.msra.mxu0 0
        %4930 = vmatprep.subr.bf16.mxu0 0
        %4931 = vmatpush1.bf16.msra.mxu0 0
        %4932 = vmatprep.subr.bf16.mxu0 0
        %4933 = vmatpush1.bf16.msra.mxu0 0
        %4934 = vmatprep.subr.bf16.mxu0 0
        %4935 = vmatpush1.bf16.msra.mxu0 0
        %4936 = vmatprep.subr.bf16.mxu0 0
        %4937 = vmatpush1.bf16.msra.mxu0 0
        %4938 = vmatprep.subr.bf16.mxu0 0
        %4939 = vmatpush1.bf16.msra.mxu0 0
        %4940 = vmatprep.subr.bf16.mxu0 0
        %4941 = vmatpush1.bf16.msra.mxu0 0
        %4942 = vmatprep.subr.bf16.mxu0 0
        %4943 = vmatpush1.bf16.msra.mxu0 0
        %4944 = vmatprep.subr.bf16.mxu0 0
        %4945 = vmatpush1.bf16.msra.mxu0 0
        %4946 = vmatprep.subr.bf16.mxu0 0
        %4947 = vmatpush1.bf16.msra.mxu0 0
        %4948 = vmatprep.mubr.bf16.mxu0 0
        %4949 = vmatmul.mubr.bf16.gmra.mrb[0].mxu0 %v3671
        %v4950 = vpop.f32.mrb[0].mxu0
        %v4951 = vadd.f32 %v4744, %v4950
        %v4952 = vpop.f32.mrb[0].mxu0
        %v4953 = vadd.f32 %v4748, %v4952
        %v4954 = vpop.f32.mrb[0].mxu0
        %v4955 = vadd.f32 %v4744, %v4954
        %v4956 = vpop.f32.mrb[0].mxu0
        %v4957 = vadd.f32 %v4748, %v4956
        %4958 = vdwg.mxu0
        %v4959 = vmax.f32 %v4908, 0.0
        %v4960 = vmax.f32 %v4910, 0.0
        %v4961 = vmax.f32 %v4951, 0.0
        %v4962 = vmax.f32 %v4953, 0.0
        %v4963 = vmax.f32 %v4912, 0.0
        %v4964 = vmax.f32 %v4914, 0.0
        %v4965 = vmax.f32 %v4955, 0.0
        %v4966 = vmax.f32 %v4957, 0.0
        %v4967 = vpack.c.bf16 %v4963, %v4959
        %v4968 = vpack.c.bf16 %v4964, %v4960
        %v4969 = vpack.c.bf16 %v4965, %v4961
        %v4970 = vpack.c.bf16 %v4966, %v4962
        %v4971 = vld [vmem:[%s16 + $0x200] sm:$0xf]
        %v4972 = vld [vmem:[%s16 + $0x204] sm:$0xf]
        %v4973 = vld [vmem:[%s16 + $0x208] sm:$0xf]
        %v4974 = vld [vmem:[%s16 + $0x20c] sm:$0xf]
        %v4975 = vld [vmem:[%s16 + $0x210] sm:$0xf]
        %v4976 = vld [vmem:[%s16 + $0x214] sm:$0xf]
        %v4977 = vld [vmem:[%s16 + $0x218] sm:$0xf]
        %v4978 = vld [vmem:[%s16 + $0x21c] sm:$0xf]
        %v4979 = vld [vmem:[%s16 + $0x220] sm:$0xf]
        %v4980 = vld [vmem:[%s16 + $0x224] sm:$0xf]
        %v4981 = vld [vmem:[%s16 + $0x228] sm:$0xf]
        %v4982 = vld [vmem:[%s16 + $0x22c] sm:$0xf]
        %v4983 = vld [vmem:[%s16 + $0x230] sm:$0xf]
        %v4984 = vld [vmem:[%s16 + $0x234] sm:$0xf]
        %v4985 = vld [vmem:[%s16 + $0x238] sm:$0xf]
        %v4986 = vld [vmem:[%s16 + $0x23c] sm:$0xf]
        %v4987 = vld [vmem:[%s16 + $0x240] sm:$0xf]
        %v4988 = vld [vmem:[%s16 + $0x244] sm:$0xf]
        %v4989 = vld [vmem:[%s16 + $0x248] sm:$0xf]
        %v4990 = vld [vmem:[%s16 + $0x24c] sm:$0xf]
        %v4991 = vld [vmem:[%s16 + $0x250] sm:$0xf]
        %v4992 = vld [vmem:[%s16 + $0x254] sm:$0xf]
        %v4993 = vld [vmem:[%s16 + $0x258] sm:$0xf]
        %v4994 = vld [vmem:[%s16 + $0x25c] sm:$0xf]
        %v4995 = vld [vmem:[%s16 + $0x260] sm:$0xf]
        %v4996 = vld [vmem:[%s16 + $0x264] sm:$0xf]
        %v4997 = vld [vmem:[%s16 + $0x268] sm:$0xf]
        %v4998 = vld [vmem:[%s16 + $0x26c] sm:$0xf]
        %v4999 = vld [vmem:[%s16 + $0x270] sm:$0xf]
        %v5000 = vld [vmem:[%s16 + $0x274] sm:$0xf]
        %v5001 = vld [vmem:[%s16 + $0x278] sm:$0xf]
        %v5002 = vld [vmem:[%s16 + $0x27c] sm:$0xf]
        %v5003 = vld [vmem:[%s16 + $0x280] sm:$0xf]
        %v5004 = vld [vmem:[%s16 + $0x284] sm:$0xf]
        %v5005 = vld [vmem:[%s16 + $0x288] sm:$0xf]
        %v5006 = vld [vmem:[%s16 + $0x28c] sm:$0xf]
        %v5007 = vld [vmem:[%s16 + $0x290] sm:$0xf]
        %v5008 = vld [vmem:[%s16 + $0x294] sm:$0xf]
        %v5009 = vld [vmem:[%s16 + $0x298] sm:$0xf]
        %v5010 = vld [vmem:[%s16 + $0x29c] sm:$0xf]
        %v5011 = vld [vmem:[%s16 + $0x2a0] sm:$0xf]
        %v5012 = vld [vmem:[%s16 + $0x2a4] sm:$0xf]
        %v5013 = vld [vmem:[%s16 + $0x2a8] sm:$0xf]
        %v5014 = vld [vmem:[%s16 + $0x2ac] sm:$0xf]
        %v5015 = vld [vmem:[%s16 + $0x2b0] sm:$0xf]
        %v5016 = vld [vmem:[%s16 + $0x2b4] sm:$0xf]
        %v5017 = vld [vmem:[%s16 + $0x2b8] sm:$0xf]
        %v5018 = vld [vmem:[%s16 + $0x2bc] sm:$0xf]
        %v5019 = vld [vmem:[%s16 + $0x2c0] sm:$0xf]
        %v5020 = vld [vmem:[%s16 + $0x2c4] sm:$0xf]
        %v5021 = vld [vmem:[%s16 + $0x2c8] sm:$0xf]
        %v5022 = vld [vmem:[%s16 + $0x2cc] sm:$0xf]
        %v5023 = vld [vmem:[%s16 + $0x2d0] sm:$0xf]
        %v5024 = vld [vmem:[%s16 + $0x2d4] sm:$0xf]
        %v5025 = vld [vmem:[%s16 + $0x2d8] sm:$0xf]
        %v5026 = vld [vmem:[%s16 + $0x2dc] sm:$0xf]
        %v5027 = vld [vmem:[%s16 + $0x2e0] sm:$0xf]
        %v5028 = vld [vmem:[%s16 + $0x2e4] sm:$0xf]
        %v5029 = vld [vmem:[%s16 + $0x2e8] sm:$0xf]
        %v5030 = vld [vmem:[%s16 + $0x2ec] sm:$0xf]
        %v5031 = vld [vmem:[%s16 + $0x2f0] sm:$0xf]
        %v5032 = vld [vmem:[%s16 + $0x2f4] sm:$0xf]
        %v5033 = vld [vmem:[%s16 + $0x2f8] sm:$0xf]
        %v5034 = vld [vmem:[%s16 + $0x2fc] sm:$0xf]
        %v5099 = vunpack.c.l.b16 %v4971
        %v5100 = vunpack.c.l.b16 %v4972
        %v5101 = vunpack.c.l.b16 %v4973
        %v5102 = vunpack.c.l.b16 %v4974
        %v5103 = vunpack.c.l.b16 %v4975
        %v5104 = vunpack.c.l.b16 %v4976
        %v5105 = vunpack.c.l.b16 %v4977
        %v5106 = vunpack.c.l.b16 %v4978
        %v5107 = vunpack.c.l.b16 %v4979
        %v5108 = vunpack.c.l.b16 %v4980
        %v5109 = vunpack.c.l.b16 %v4981
        %v5110 = vunpack.c.l.b16 %v4982
        %v5111 = vunpack.c.l.b16 %v4983
        %v5112 = vunpack.c.l.b16 %v4984
        %v5113 = vunpack.c.l.b16 %v4985
        %v5114 = vunpack.c.l.b16 %v4986
        %v5115 = vunpack.c.l.b16 %v4987
        %v5116 = vunpack.c.l.b16 %v4988
        %v5117 = vunpack.c.l.b16 %v4989
        %v5118 = vunpack.c.l.b16 %v4990
        %v5119 = vunpack.c.l.b16 %v4991
        %v5120 = vunpack.c.l.b16 %v4992
        %v5121 = vunpack.c.l.b16 %v4993
        %v5122 = vunpack.c.l.b16 %v4994
        %v5123 = vunpack.c.l.b16 %v4995
        %v5124 = vunpack.c.l.b16 %v4996
        %v5125 = vunpack.c.l.b16 %v4997
        %v5126 = vunpack.c.l.b16 %v4998
        %v5127 = vunpack.c.l.b16 %v4999
        %v5128 = vunpack.c.l.b16 %v5000
        %v5129 = vunpack.c.l.b16 %v5001
        %v5130 = vunpack.c.l.b16 %v5002
        %v5131 = vunpack.c.l.b16 %v5003
        %v5132 = vunpack.c.l.b16 %v5004
        %v5133 = vunpack.c.l.b16 %v5005
        %v5134 = vunpack.c.l.b16 %v5006
        %v5135 = vunpack.c.l.b16 %v5007
        %v5136 = vunpack.c.l.b16 %v5008
        %v5137 = vunpack.c.l.b16 %v5009
        %v5138 = vunpack.c.l.b16 %v5010
        %v5139 = vunpack.c.l.b16 %v5011
        %v5140 = vunpack.c.l.b16 %v5012
        %v5141 = vunpack.c.l.b16 %v5013
        %v5142 = vunpack.c.l.b16 %v5014
        %v5143 = vunpack.c.l.b16 %v5015
        %v5144 = vunpack.c.l.b16 %v5016
        %v5145 = vunpack.c.l.b16 %v5017
        %v5146 = vunpack.c.l.b16 %v5018
        %v5147 = vunpack.c.l.b16 %v5019
        %v5148 = vunpack.c.l.b16 %v5020
        %v5149 = vunpack.c.l.b16 %v5021
        %v5150 = vunpack.c.l.b16 %v5022
        %v5151 = vunpack.c.l.b16 %v5023
        %v5152 = vunpack.c.l.b16 %v5024
        %v5153 = vunpack.c.l.b16 %v5025
        %v5154 = vunpack.c.l.b16 %v5026
        %v5155 = vunpack.c.l.b16 %v5027
        %v5156 = vunpack.c.l.b16 %v5028
        %v5157 = vunpack.c.l.b16 %v5029
        %v5158 = vunpack.c.l.b16 %v5030
        %v5159 = vunpack.c.l.b16 %v5031
        %v5160 = vunpack.c.l.b16 %v5032
        %v5161 = vunpack.c.l.b16 %v5033
        %v5162 = vunpack.c.l.b16 %v5034
        %v5163 = vpack.c.b16 %v5100, %v5099
        %v5164 = vpack.c.b16 %v5102, %v5101
        %v5165 = vpack.c.b16 %v5104, %v5103
        %v5166 = vpack.c.b16 %v5106, %v5105
        %v5167 = vpack.c.b16 %v5108, %v5107
        %v5168 = vpack.c.b16 %v5110, %v5109
        %v5169 = vpack.c.b16 %v5112, %v5111
        %v5170 = vpack.c.b16 %v5114, %v5113
        %v5171 = vpack.c.b16 %v5116, %v5115
        %v5172 = vpack.c.b16 %v5118, %v5117
        %v5173 = vpack.c.b16 %v5120, %v5119
        %v5174 = vpack.c.b16 %v5122, %v5121
        %v5175 = vpack.c.b16 %v5124, %v5123
        %v5176 = vpack.c.b16 %v5126, %v5125
        %v5177 = vpack.c.b16 %v5128, %v5127
        %v5178 = vpack.c.b16 %v5130, %v5129
        %v5179 = vpack.c.b16 %v5132, %v5131
        %v5180 = vpack.c.b16 %v5134, %v5133
        %v5181 = vpack.c.b16 %v5136, %v5135
        %v5182 = vpack.c.b16 %v5138, %v5137
        %v5183 = vpack.c.b16 %v5140, %v5139
        %v5184 = vpack.c.b16 %v5142, %v5141
        %v5185 = vpack.c.b16 %v5144, %v5143
        %v5186 = vpack.c.b16 %v5146, %v5145
        %v5187 = vpack.c.b16 %v5148, %v5147
        %v5188 = vpack.c.b16 %v5150, %v5149
        %v5189 = vpack.c.b16 %v5152, %v5151
        %v5190 = vpack.c.b16 %v5154, %v5153
        %v5191 = vpack.c.b16 %v5156, %v5155
        %v5192 = vpack.c.b16 %v5158, %v5157
        %v5193 = vpack.c.b16 %v5160, %v5159
        %v5194 = vpack.c.b16 %v5162, %v5161
        %5227 = vmatprep.subr.bf16.mxu0 0
        %5228 = vmatpush1.bf16.msra.mxu0 %v5163
        %5229 = vmatprep.subr.bf16.mxu0 0
        %5230 = vmatpush1.bf16.msra.mxu0 %v5164
        %5231 = vmatprep.subr.bf16.mxu0 0
        %5232 = vmatpush1.bf16.msra.mxu0 %v5165
        %5233 = vmatprep.subr.bf16.mxu0 0
        %5234 = vmatpush1.bf16.msra.mxu0 %v5166
        %5235 = vmatprep.subr.bf16.mxu0 0
        %5236 = vmatpush1.bf16.msra.mxu0 %v5167
        %5237 = vmatprep.subr.bf16.mxu0 0
        %5238 = vmatpush1.bf16.msra.mxu0 %v5168
        %5239 = vmatprep.subr.bf16.mxu0 0
        %5240 = vmatpush1.bf16.msra.mxu0 %v5169
        %5241 = vmatprep.subr.bf16.mxu0 0
        %5242 = vmatpush1.bf16.msra.mxu0 %v5170
        %5243 = vmatprep.subr.bf16.mxu0 0
        %5244 = vmatpush1.bf16.msra.mxu0 %v5171
        %5245 = vmatprep.subr.bf16.mxu0 0
        %5246 = vmatpush1.bf16.msra.mxu0 %v5172
        %5247 = vmatprep.subr.bf16.mxu0 0
        %5248 = vmatpush1.bf16.msra.mxu0 %v5173
        %5249 = vmatprep.subr.bf16.mxu0 0
        %5250 = vmatpush1.bf16.msra.mxu0 %v5174
        %5251 = vmatprep.subr.bf16.mxu0 0
        %5252 = vmatpush1.bf16.msra.mxu0 %v5175
        %5253 = vmatprep.subr.bf16.mxu0 0
        %5254 = vmatpush1.bf16.msra.mxu0 %v5176
        %5255 = vmatprep.subr.bf16.mxu0 0
        %5256 = vmatpush1.bf16.msra.mxu0 %v5177
        %5257 = vmatprep.subr.bf16.mxu0 0
        %5258 = vmatpush1.bf16.msra.mxu0 %v5178
        %5259 = vmatprep.mubr.bf16.mxu0 %v4968
        %5260 = vmatmul.mubr.bf16.gmra.mrb[0].mxu0 %v4967
        %v5261 = vpop.f32.mrb[0].mxu0
        %v5262 = vadd.f32 0.0, %v5261
        %v5263 = vpop.f32.mrb[0].mxu0
        %v5264 = vpop.f32.mrb[0].mxu0
        %v5265 = vpop.f32.mrb[0].mxu0
        %5266 = vdwg.mxu0
        %5267 = vmatprep.subr.bf16.mxu0 0
        %5268 = vmatpush1.bf16.msra.mxu0 %v5179
        %5269 = vmatprep.subr.bf16.mxu0 0
        %5270 = vmatpush1.bf16.msra.mxu0 %v5180
        %5271 = vmatprep.subr.bf16.mxu0 0
        %5272 = vmatpush1.bf16.msra.mxu0 %v5181
        %5273 = vmatprep.subr.bf16.mxu0 0
        %5274 = vmatpush1.bf16.msra.mxu0 %v5182
        %5275 = vmatprep.subr.bf16.mxu0 0
        %5276 = vmatpush1.bf16.msra.mxu0 %v5183
        %5277 = vmatprep.subr.bf16.mxu0 0
        %5278 = vmatpush1.bf16.msra.mxu0 %v5184
        %5279 = vmatprep.subr.bf16.mxu0 0
        %5280 = vmatpush1.bf16.msra.mxu0 %v5185
        %5281 = vmatprep.subr.bf16.mxu0 0
        %5282 = vmatpush1.bf16.msra.mxu0 %v5186
        %5283 = vmatprep.subr.bf16.mxu0 0
        %5284 = vmatpush1.bf16.msra.mxu0 %v5187
        %5285 = vmatprep.subr.bf16.mxu0 0
        %5286 = vmatpush1.bf16.msra.mxu0 %v5188
        %5287 = vmatprep.subr.bf16.mxu0 0
        %5288 = vmatpush1.bf16.msra.mxu0 %v5189
        %5289 = vmatprep.subr.bf16.mxu0 0
        %5290 = vmatpush1.bf16.msra.mxu0 %v5190
        %5291 = vmatprep.subr.bf16.mxu0 0
        %5292 = vmatpush1.bf16.msra.mxu0 %v5191
        %5293 = vmatprep.subr.bf16.mxu0 0
        %5294 = vmatpush1.bf16.msra.mxu0 %v5192
        %5295 = vmatprep.subr.bf16.mxu0 0
        %5296 = vmatpush1.bf16.msra.mxu0 %v5193
        %5297 = vmatprep.subr.bf16.mxu0 0
        %5298 = vmatpush1.bf16.msra.mxu0 %v5194
        %5299 = vmatprep.mubr.bf16.mxu0 %v4970
        %5300 = vmatmul.mubr.bf16.gmra.mrb[0].mxu0 %v4969
        %v5301 = vpop.f32.mrb[0].mxu0
        %v5302 = vadd.f32 %v5262, %v5301
        %v5303 = vpop.f32.mrb[0].mxu0
        %v5304 = vpop.f32.mrb[0].mxu0
        %v5305 = vpop.f32.mrb[0].mxu0
        %5306 = vdwg.mxu0
        %v5307 = vadd.f32 %v4702, %v5302
        %v5308 = vld [vmem:[%s14 + $0x30] sm:$0xff]
        %v5309 = vld [vmem:[%s14 + $0x38] sm:$0xff]
        %v5310 = vld [vmem:[%s14 + $0x70] sm:$0xff]
        %v5311 = vld [vmem:[%s14 + $0x78] sm:$0xff]
        %v5312 = vld [vmem:[%s14 + $0xb0] sm:$0xff]
        %v5313 = vld [vmem:[%s14 + $0xb8] sm:$0xff]
        %v5314 = vld [vmem:[%s14 + $0xf0] sm:$0xff]
        %v5315 = vld [vmem:[%s14 + $0xf8] sm:$0xff]
        %v5316 = vld [vmem:[%s14 + $0x130] sm:$0xff]
        %v5317 = vld [vmem:[%s14 + $0x138] sm:$0xff]
        %v5318 = vld [vmem:[%s14 + $0x170] sm:$0xff]
        %v5319 = vld [vmem:[%s14 + $0x178] sm:$0xff]
        %v5320 = vld [vmem:[%s14 + $0x1b0] sm:$0xff]
        %v5321 = vld [vmem:[%s14 + $0x1b8] sm:$0xff]
        %v5322 = vld [vmem:[%s14 + $0x1f0] sm:$0xff]
        %v5323 = vld [vmem:[%s14 + $0x1f8] sm:$0xff]
        %v5324 = vld [vmem:[%s14 + $0x230] sm:$0xff]
        %v5325 = vld [vmem:[%s14 + $0x238] sm:$0xff]
        %v5326 = vld [vmem:[%s14 + $0x270] sm:$0xff]
        %v5327 = vld [vmem:[%s14 + $0x278] sm:$0xff]
        %v5328 = vld [vmem:[%s14 + $0x2b0] sm:$0xff]
        %v5329 = vld [vmem:[%s14 + $0x2b8] sm:$0xff]
        %v5330 = vld [vmem:[%s14 + $0x2f0] sm:$0xff]
        %v5331 = vld [vmem:[%s14 + $0x2f8] sm:$0xff]
        %v5332 = vld [vmem:[#allocation10 + $0xc] sm:$0xf]
        %v5334 = vlaneseq
        %v5335 = vshrl.u32 %v5334, 7
        %v5336 = vsub.s32 0, %v5335
        %v5337 = vrot.slane %v5332, %v5336
        %v5338 = vlaneseq
        %v5339 = vshrl.u32 %v5338, 7
        %v5340 = vsub.s32 1, %v5339
        %v5341 = vrot.slane %v5332, %v5340
        %v5342 = vlaneseq
        %v5343 = vshrl.u32 %v5342, 7
        %v5344 = vsub.s32 2, %v5343
        %v5345 = vrot.slane %v5332, %v5344
        %v5346 = vlaneseq
        %v5347 = vshrl.u32 %v5346, 7
        %v5348 = vsub.s32 3, %v5347
        %v5349 = vrot.slane %v5332, %v5348
        %v5378 = vunpack.c.l.b16 %v5308
        %v5379 = vunpack.c.h.b16 %v5308
        %v5380 = vunpack.c.l.b16 %v5309
        %v5381 = vunpack.c.h.b16 %v5309
        %v5382 = vunpack.c.l.b16 %v5310
        %v5383 = vunpack.c.h.b16 %v5310
        %v5384 = vunpack.c.l.b16 %v5311
        %v5385 = vunpack.c.h.b16 %v5311
        %v5386 = vunpack.c.l.b16 %v5312
        %v5387 = vunpack.c.h.b16 %v5312
        %v5388 = vunpack.c.l.b16 %v5313
        %v5389 = vunpack.c.h.b16 %v5313
        %v5390 = vunpack.c.l.b16 %v5314
        %v5391 = vunpack.c.h.b16 %v5314
        %v5392 = vunpack.c.l.b16 %v5315
        %v5393 = vunpack.c.h.b16 %v5315
        %v5394 = vunpack.c.l.b16 %v5316
        %v5395 = vunpack.c.h.b16 %v5316
        %v5396 = vunpack.c.l.b16 %v5317
        %v5397 = vunpack.c.h.b16 %v5317
        %v5398 = vunpack.c.l.b16 %v5318
        %v5399 = vunpack.c.h.b16 %v5318
        %v5400 = vunpack.c.l.b16 %v5319
        %v5401 = vunpack.c.h.b16 %v5319
        %v5402 = vunpack.c.l.b16 %v5320
        %v5403 = vunpack.c.h.b16 %v5320
        %v5404 = vunpack.c.l.b16 %v5321
        %v5405 = vunpack.c.h.b16 %v5321
        %v5406 = vunpack.c.l.b16 %v5322
        %v5407 = vunpack.c.h.b16 %v5322
        %v5408 = vunpack.c.l.b16 %v5323
        %v5409 = vunpack.c.h.b16 %v5323
        %v5410 = vunpack.c.l.b16 %v5324
        %v5411 = vunpack.c.h.b16 %v5324
        %v5412 = vunpack.c.l.b16 %v5325
        %v5413 = vunpack.c.h.b16 %v5325
        %v5414 = vunpack.c.l.b16 %v5326
        %v5415 = vunpack.c.h.b16 %v5326
        %v5416 = vunpack.c.l.b16 %v5327
        %v5417 = vunpack.c.h.b16 %v5327
        %v5418 = vunpack.c.l.b16 %v5328
        %v5419 = vunpack.c.h.b16 %v5328
        %v5420 = vunpack.c.l.b16 %v5329
        %v5421 = vunpack.c.h.b16 %v5329
        %v5422 = vunpack.c.l.b16 %v5330
        %v5423 = vunpack.c.h.b16 %v5330
        %v5424 = vunpack.c.l.b16 %v5331
        %v5425 = vunpack.c.h.b16 %v5331
        %v5426 = vpack.c.b16 %v5382, %v5378
        %v5427 = vpack.c.b16 %v5383, %v5379
        %v5428 = vpack.c.b16 %v5384, %v5380
        %v5429 = vpack.c.b16 %v5385, %v5381
        %v5430 = vpack.c.b16 %v5390, %v5386
        %v5431 = vpack.c.b16 %v5391, %v5387
        %v5432 = vpack.c.b16 %v5392, %v5388
        %v5433 = vpack.c.b16 %v5393, %v5389
        %v5434 = vpack.c.b16 %v5398, %v5394
        %v5435 = vpack.c.b16 %v5399, %v5395
        %v5436 = vpack.c.b16 %v5400, %v5396
        %v5437 = vpack.c.b16 %v5401, %v5397
        %v5438 = vpack.c.b16 %v5406, %v5402
        %v5439 = vpack.c.b16 %v5407, %v5403
        %v5440 = vpack.c.b16 %v5408, %v5404
        %v5441 = vpack.c.b16 %v5409, %v5405
        %v5442 = vpack.c.b16 %v5414, %v5410
        %v5443 = vpack.c.b16 %v5415, %v5411
        %v5444 = vpack.c.b16 %v5416, %v5412
        %v5445 = vpack.c.b16 %v5417, %v5413
        %v5446 = vpack.c.b16 %v5422, %v5418
        %v5447 = vpack.c.b16 %v5423, %v5419
        %v5448 = vpack.c.b16 %v5424, %v5420
        %v5449 = vpack.c.b16 %v5425, %v5421
        %5474 = vmatprep.subr.bf16.mxu0 %v5427
        %5475 = vmatpush1.bf16.msra.mxu0 %v5426
        %5476 = vmatprep.subr.bf16.mxu0 %v5431
        %5477 = vmatpush1.bf16.msra.mxu0 %v5430
        %5478 = vmatprep.subr.bf16.mxu0 %v5435
        %5479 = vmatpush1.bf16.msra.mxu0 %v5434
        %5480 = vmatprep.subr.bf16.mxu0 %v5439
        %5481 = vmatpush1.bf16.msra.mxu0 %v5438
        %5482 = vmatprep.subr.bf16.mxu0 %v5443
        %5483 = vmatpush1.bf16.msra.mxu0 %v5442
        %5484 = vmatprep.subr.bf16.mxu0 %v5447
        %5485 = vmatpush1.bf16.msra.mxu0 %v5446
        %5486 = vmatprep.subr.bf16.mxu0 0
        %5487 = vmatpush1.bf16.msra.mxu0 0
        %5488 = vmatprep.subr.bf16.mxu0 0
        %5489 = vmatpush1.bf16.msra.mxu0 0
        %5490 = vmatprep.subr.bf16.mxu0 0
        %5491 = vmatpush1.bf16.msra.mxu0 0
        %5492 = vmatprep.subr.bf16.mxu0 0
        %5493 = vmatpush1.bf16.msra.mxu0 0
        %5494 = vmatprep.subr.bf16.mxu0 0
        %5495 = vmatpush1.bf16.msra.mxu0 0
        %5496 = vmatprep.subr.bf16.mxu0 0
        %5497 = vmatpush1.bf16.msra.mxu0 0
        %5498 = vmatprep.subr.bf16.mxu0 0
        %5499 = vmatpush1.bf16.msra.mxu0 0
        %5500 = vmatprep.subr.bf16.mxu0 0
        %5501 = vmatpush1.bf16.msra.mxu0 0
        %5502 = vmatprep.subr.bf16.mxu0 0
        %5503 = vmatpush1.bf16.msra.mxu0 0
        %5504 = vmatprep.subr.bf16.mxu0 0
        %5505 = vmatpush1.bf16.msra.mxu0 0
        %5506 = vmatprep.mubr.bf16.mxu0 0
        %5507 = vmatmul.mubr.bf16.gmra.mrb[0].mxu0 %v3671
        %v5508 = vpop.f32.mrb[0].mxu0
        %v5509 = vadd.f32 %v5337, %v5508
        %v5510 = vpop.f32.mrb[0].mxu0
        %v5511 = vadd.f32 %v5341, %v5510
        %v5512 = vpop.f32.mrb[0].mxu0
        %v5513 = vadd.f32 %v5337, %v5512
        %v5514 = vpop.f32.mrb[0].mxu0
        %v5515 = vadd.f32 %v5341, %v5514
        %5516 = vdwg.mxu0
        %5517 = vmatprep.subr.bf16.mxu0 %v5429
        %5518 = vmatpush1.bf16.msra.mxu0 %v5428
        %5519 = vmatprep.subr.bf16.mxu0 %v5433
        %5520 = vmatpush1.bf16.msra.mxu0 %v5432
        %5521 = vmatprep.subr.bf16.mxu0 %v5437
        %5522 = vmatpush1.bf16.msra.mxu0 %v5436
        %5523 = vmatprep.subr.bf16.mxu0 %v5441
        %5524 = vmatpush1.bf16.msra.mxu0 %v5440
        %5525 = vmatprep.subr.bf16.mxu0 %v5445
        %5526 = vmatpush1.bf16.msra.mxu0 %v5444
        %5527 = vmatprep.subr.bf16.mxu0 %v5449
        %5528 = vmatpush1.bf16.msra.mxu0 %v5448
        %5529 = vmatprep.subr.bf16.mxu0 0
        %5530 = vmatpush1.bf16.msra.mxu0 0
        %5531 = vmatprep.subr.bf16.mxu0 0
        %5532 = vmatpush1.bf16.msra.mxu0 0
        %5533 = vmatprep.subr.bf16.mxu0 0
        %5534 = vmatpush1.bf16.msra.mxu0 0
        %5535 = vmatprep.subr.bf16.mxu0 0
        %5536 = vmatpush1.bf16.msra.mxu0 0
        %5537 = vmatprep.subr.bf16.mxu0 0
        %5538 = vmatpush1.bf16.msra.mxu0 0
        %5539 = vmatprep.subr.bf16.mxu0 0
        %5540 = vmatpush1.bf16.msra.mxu0 0
        %5541 = vmatprep.subr.bf16.mxu0 0
        %5542 = vmatpush1.bf16.msra.mxu0 0
        %5543 = vmatprep.subr.bf16.mxu0 0
        %5544 = vmatpush1.bf16.msra.mxu0 0
        %5545 = vmatprep.subr.bf16.mxu0 0
        %5546 = vmatpush1.bf16.msra.mxu0 0
        %5547 = vmatprep.subr.bf16.mxu0 0
        %5548 = vmatpush1.bf16.msra.mxu0 0
        %5549 = vmatprep.mubr.bf16.mxu0 0
        %5550 = vmatmul.mubr.bf16.gmra.mrb[0].mxu0 %v3671
        %v5551 = vpop.f32.mrb[0].mxu0
        %v5552 = vadd.f32 %v5345, %v5551
        %v5553 = vpop.f32.mrb[0].mxu0
        %v5554 = vadd.f32 %v5349, %v5553
        %v5555 = vpop.f32.mrb[0].mxu0
        %v5556 = vadd.f32 %v5345, %v5555
        %v5557 = vpop.f32.mrb[0].mxu0
        %v5558 = vadd.f32 %v5349, %v5557
        %5559 = vdwg.mxu0
        %v5560 = vmax.f32 %v5509, 0.0
        %v5561 = vmax.f32 %v5511, 0.0
        %v5562 = vmax.f32 %v5552, 0.0
        %v5563 = vmax.f32 %v5554, 0.0
        %v5564 = vmax.f32 %v5513, 0.0
        %v5565 = vmax.f32 %v5515, 0.0
        %v5566 = vmax.f32 %v5556, 0.0
        %v5567 = vmax.f32 %v5558, 0.0
        %v5568 = vpack.c.bf16 %v5564, %v5560
        %v5569 = vpack.c.bf16 %v5565, %v5561
        %v5570 = vpack.c.bf16 %v5566, %v5562
        %v5571 = vpack.c.bf16 %v5567, %v5563
        %v5572 = vld [vmem:[%s16 + $0x300] sm:$0xf]
        %v5573 = vld [vmem:[%s16 + $0x304] sm:$0xf]
        %v5574 = vld [vmem:[%s16 + $0x308] sm:$0xf]
        %v5575 = vld [vmem:[%s16 + $0x30c] sm:$0xf]
        %v5576 = vld [vmem:[%s16 + $0x310] sm:$0xf]
        %v5577 = vld [vmem:[%s16 + $0x314] sm:$0xf]
        %v5578 = vld [vmem:[%s16 + $0x318] sm:$0xf]
        %v5579 = vld [vmem:[%s16 + $0x31c] sm:$0xf]
        %v5580 = vld [vmem:[%s16 + $0x320] sm:$0xf]
        %v5581 = vld [vmem:[%s16 + $0x324] sm:$0xf]
        %v5582 = vld [vmem:[%s16 + $0x328] sm:$0xf]
        %v5583 = vld [vmem:[%s16 + $0x32c] sm:$0xf]
        %v5584 = vld [vmem:[%s16 + $0x330] sm:$0xf]
        %v5585 = vld [vmem:[%s16 + $0x334] sm:$0xf]
        %v5586 = vld [vmem:[%s16 + $0x338] sm:$0xf]
        %v5587 = vld [vmem:[%s16 + $0x33c] sm:$0xf]
        %v5588 = vld [vmem:[%s16 + $0x340] sm:$0xf]
        %v5589 = vld [vmem:[%s16 + $0x344] sm:$0xf]
        %v5590 = vld [vmem:[%s16 + $0x348] sm:$0xf]
        %v5591 = vld [vmem:[%s16 + $0x34c] sm:$0xf]
        %v5592 = vld [vmem:[%s16 + $0x350] sm:$0xf]
        %v5593 = vld [vmem:[%s16 + $0x354] sm:$0xf]
        %v5594 = vld [vmem:[%s16 + $0x358] sm:$0xf]
        %v5595 = vld [vmem:[%s16 + $0x35c] sm:$0xf]
        %v5596 = vld [vmem:[%s16 + $0x360] sm:$0xf]
        %v5597 = vld [vmem:[%s16 + $0x364] sm:$0xf]
        %v5598 = vld [vmem:[%s16 + $0x368] sm:$0xf]
        %v5599 = vld [vmem:[%s16 + $0x36c] sm:$0xf]
        %v5600 = vld [vmem:[%s16 + $0x370] sm:$0xf]
        %v5601 = vld [vmem:[%s16 + $0x374] sm:$0xf]
        %v5602 = vld [vmem:[%s16 + $0x378] sm:$0xf]
        %v5603 = vld [vmem:[%s16 + $0x37c] sm:$0xf]
        %v5604 = vld [vmem:[%s16 + $0x380] sm:$0xf]
        %v5605 = vld [vmem:[%s16 + $0x384] sm:$0xf]
        %v5606 = vld [vmem:[%s16 + $0x388] sm:$0xf]
        %v5607 = vld [vmem:[%s16 + $0x38c] sm:$0xf]
        %v5608 = vld [vmem:[%s16 + $0x390] sm:$0xf]
        %v5609 = vld [vmem:[%s16 + $0x394] sm:$0xf]
        %v5610 = vld [vmem:[%s16 + $0x398] sm:$0xf]
        %v5611 = vld [vmem:[%s16 + $0x39c] sm:$0xf]
        %v5612 = vld [vmem:[%s16 + $0x3a0] sm:$0xf]
        %v5613 = vld [vmem:[%s16 + $0x3a4] sm:$0xf]
        %v5614 = vld [vmem:[%s16 + $0x3a8] sm:$0xf]
        %v5615 = vld [vmem:[%s16 + $0x3ac] sm:$0xf]
        %v5616 = vld [vmem:[%s16 + $0x3b0] sm:$0xf]
        %v5617 = vld [vmem:[%s16 + $0x3b4] sm:$0xf]
        %v5618 = vld [vmem:[%s16 + $0x3b8] sm:$0xf]
        %v5619 = vld [vmem:[%s16 + $0x3bc] sm:$0xf]
        %v5620 = vld [vmem:[%s16 + $0x3c0] sm:$0xf]
        %v5621 = vld [vmem:[%s16 + $0x3c4] sm:$0xf]
        %v5622 = vld [vmem:[%s16 + $0x3c8] sm:$0xf]
        %v5623 = vld [vmem:[%s16 + $0x3cc] sm:$0xf]
        %v5624 = vld [vmem:[%s16 + $0x3d0] sm:$0xf]
        %v5625 = vld [vmem:[%s16 + $0x3d4] sm:$0xf]
        %v5626 = vld [vmem:[%s16 + $0x3d8] sm:$0xf]
        %v5627 = vld [vmem:[%s16 + $0x3dc] sm:$0xf]
        %v5628 = vld [vmem:[%s16 + $0x3e0] sm:$0xf]
        %v5629 = vld [vmem:[%s16 + $0x3e4] sm:$0xf]
        %v5630 = vld [vmem:[%s16 + $0x3e8] sm:$0xf]
        %v5631 = vld [vmem:[%s16 + $0x3ec] sm:$0xf]
        %v5632 = vld [vmem:[%s16 + $0x3f0] sm:$0xf]
        %v5633 = vld [vmem:[%s16 + $0x3f4] sm:$0xf]
        %v5634 = vld [vmem:[%s16 + $0x3f8] sm:$0xf]
        %v5635 = vld [vmem:[%s16 + $0x3fc] sm:$0xf]
        %v5700 = vunpack.c.l.b16 %v5572
        %v5701 = vunpack.c.l.b16 %v5573
        %v5702 = vunpack.c.l.b16 %v5574
        %v5703 = vunpack.c.l.b16 %v5575
        %v5704 = vunpack.c.l.b16 %v5576
        %v5705 = vunpack.c.l.b16 %v5577
        %v5706 = vunpack.c.l.b16 %v5578
        %v5707 = vunpack.c.l.b16 %v5579
        %v5708 = vunpack.c.l.b16 %v5580
        %v5709 = vunpack.c.l.b16 %v5581
        %v5710 = vunpack.c.l.b16 %v5582
        %v5711 = vunpack.c.l.b16 %v5583
        %v5712 = vunpack.c.l.b16 %v5584
        %v5713 = vunpack.c.l.b16 %v5585
        %v5714 = vunpack.c.l.b16 %v5586
        %v5715 = vunpack.c.l.b16 %v5587
        %v5716 = vunpack.c.l.b16 %v5588
        %v5717 = vunpack.c.l.b16 %v5589
        %v5718 = vunpack.c.l.b16 %v5590
        %v5719 = vunpack.c.l.b16 %v5591
        %v5720 = vunpack.c.l.b16 %v5592
        %v5721 = vunpack.c.l.b16 %v5593
        %v5722 = vunpack.c.l.b16 %v5594
        %v5723 = vunpack.c.l.b16 %v5595
        %v5724 = vunpack.c.l.b16 %v5596
        %v5725 = vunpack.c.l.b16 %v5597
        %v5726 = vunpack.c.l.b16 %v5598
        %v5727 = vunpack.c.l.b16 %v5599
        %v5728 = vunpack.c.l.b16 %v5600
        %v5729 = vunpack.c.l.b16 %v5601
        %v5730 = vunpack.c.l.b16 %v5602
        %v5731 = vunpack.c.l.b16 %v5603
        %v5732 = vunpack.c.l.b16 %v5604
        %v5733 = vunpack.c.l.b16 %v5605
        %v5734 = vunpack.c.l.b16 %v5606
        %v5735 = vunpack.c.l.b16 %v5607
        %v5736 = vunpack.c.l.b16 %v5608
        %v5737 = vunpack.c.l.b16 %v5609
        %v5738 = vunpack.c.l.b16 %v5610
        %v5739 = vunpack.c.l.b16 %v5611
        %v5740 = vunpack.c.l.b16 %v5612
        %v5741 = vunpack.c.l.b16 %v5613
        %v5742 = vunpack.c.l.b16 %v5614
        %v5743 = vunpack.c.l.b16 %v5615
        %v5744 = vunpack.c.l.b16 %v5616
        %v5745 = vunpack.c.l.b16 %v5617
        %v5746 = vunpack.c.l.b16 %v5618
        %v5747 = vunpack.c.l.b16 %v5619
        %v5748 = vunpack.c.l.b16 %v5620
        %v5749 = vunpack.c.l.b16 %v5621
        %v5750 = vunpack.c.l.b16 %v5622
        %v5751 = vunpack.c.l.b16 %v5623
        %v5752 = vunpack.c.l.b16 %v5624
        %v5753 = vunpack.c.l.b16 %v5625
        %v5754 = vunpack.c.l.b16 %v5626
        %v5755 = vunpack.c.l.b16 %v5627
        %v5756 = vunpack.c.l.b16 %v5628
        %v5757 = vunpack.c.l.b16 %v5629
        %v5758 = vunpack.c.l.b16 %v5630
        %v5759 = vunpack.c.l.b16 %v5631
        %v5760 = vunpack.c.l.b16 %v5632
        %v5761 = vunpack.c.l.b16 %v5633
        %v5762 = vunpack.c.l.b16 %v5634
        %v5763 = vunpack.c.l.b16 %v5635
        %v5764 = vpack.c.b16 %v5701, %v5700
        %v5765 = vpack.c.b16 %v5703, %v5702
        %v5766 = vpack.c.b16 %v5705, %v5704
        %v5767 = vpack.c.b16 %v5707, %v5706
        %v5768 = vpack.c.b16 %v5709, %v5708
        %v5769 = vpack.c.b16 %v5711, %v5710
        %v5770 = vpack.c.b16 %v5713, %v5712
        %v5771 = vpack.c.b16 %v5715, %v5714
        %v5772 = vpack.c.b16 %v5717, %v5716
        %v5773 = vpack.c.b16 %v5719, %v5718
        %v5774 = vpack.c.b16 %v5721, %v5720
        %v5775 = vpack.c.b16 %v5723, %v5722
        %v5776 = vpack.c.b16 %v5725, %v5724
        %v5777 = vpack.c.b16 %v5727, %v5726
        %v5778 = vpack.c.b16 %v5729, %v5728
        %v5779 = vpack.c.b16 %v5731, %v5730
        %v5780 = vpack.c.b16 %v5733, %v5732
        %v5781 = vpack.c.b16 %v5735, %v5734
        %v5782 = vpack.c.b16 %v5737, %v5736
        %v5783 = vpack.c.b16 %v5739, %v5738
        %v5784 = vpack.c.b16 %v5741, %v5740
        %v5785 = vpack.c.b16 %v5743, %v5742
        %v5786 = vpack.c.b16 %v5745, %v5744
        %v5787 = vpack.c.b16 %v5747, %v5746
        %v5788 = vpack.c.b16 %v5749, %v5748
        %v5789 = vpack.c.b16 %v5751, %v5750
        %v5790 = vpack.c.b16 %v5753, %v5752
        %v5791 = vpack.c.b16 %v5755, %v5754
        %v5792 = vpack.c.b16 %v5757, %v5756
        %v5793 = vpack.c.b16 %v5759, %v5758
        %v5794 = vpack.c.b16 %v5761, %v5760
        %v5795 = vpack.c.b16 %v5763, %v5762
        %5828 = vmatprep.subr.bf16.mxu0 0
        %5829 = vmatpush1.bf16.msra.mxu0 %v5764
        %5830 = vmatprep.subr.bf16.mxu0 0
        %5831 = vmatpush1.bf16.msra.mxu0 %v5765
        %5832 = vmatprep.subr.bf16.mxu0 0
        %5833 = vmatpush1.bf16.msra.mxu0 %v5766
        %5834 = vmatprep.subr.bf16.mxu0 0
        %5835 = vmatpush1.bf16.msra.mxu0 %v5767
        %5836 = vmatprep.subr.bf16.mxu0 0
        %5837 = vmatpush1.bf16.msra.mxu0 %v5768
        %5838 = vmatprep.subr.bf16.mxu0 0
        %5839 = vmatpush1.bf16.msra.mxu0 %v5769
        %5840 = vmatprep.subr.bf16.mxu0 0
        %5841 = vmatpush1.bf16.msra.mxu0 %v5770
        %5842 = vmatprep.subr.bf16.mxu0 0
        %5843 = vmatpush1.bf16.msra.mxu0 %v5771
        %5844 = vmatprep.subr.bf16.mxu0 0
        %5845 = vmatpush1.bf16.msra.mxu0 %v5772
        %5846 = vmatprep.subr.bf16.mxu0 0
        %5847 = vmatpush1.bf16.msra.mxu0 %v5773
        %5848 = vmatprep.subr.bf16.mxu0 0
        %5849 = vmatpush1.bf16.msra.mxu0 %v5774
        %5850 = vmatprep.subr.bf16.mxu0 0
        %5851 = vmatpush1.bf16.msra.mxu0 %v5775
        %5852 = vmatprep.subr.bf16.mxu0 0
        %5853 = vmatpush1.bf16.msra.mxu0 %v5776
        %5854 = vmatprep.subr.bf16.mxu0 0
        %5855 = vmatpush1.bf16.msra.mxu0 %v5777
        %5856 = vmatprep.subr.bf16.mxu0 0
        %5857 = vmatpush1.bf16.msra.mxu0 %v5778
        %5858 = vmatprep.subr.bf16.mxu0 0
        %5859 = vmatpush1.bf16.msra.mxu0 %v5779
        %5860 = vmatprep.mubr.bf16.mxu0 %v5569
        %5861 = vmatmul.mubr.bf16.gmra.mrb[0].mxu0 %v5568
        %v5862 = vpop.f32.mrb[0].mxu0
        %v5863 = vadd.f32 0.0, %v5862
        %v5864 = vpop.f32.mrb[0].mxu0
        %v5865 = vpop.f32.mrb[0].mxu0
        %v5866 = vpop.f32.mrb[0].mxu0
        %5867 = vdwg.mxu0
        %5868 = vmatprep.subr.bf16.mxu0 0
        %5869 = vmatpush1.bf16.msra.mxu0 %v5780
        %5870 = vmatprep.subr.bf16.mxu0 0
        %5871 = vmatpush1.bf16.msra.mxu0 %v5781
        %5872 = vmatprep.subr.bf16.mxu0 0
        %5873 = vmatpush1.bf16.msra.mxu0 %v5782
        %5874 = vmatprep.subr.bf16.mxu0 0
        %5875 = vmatpush1.bf16.msra.mxu0 %v5783
        %5876 = vmatprep.subr.bf16.mxu0 0
        %5877 = vmatpush1.bf16.msra.mxu0 %v5784
        %5878 = vmatprep.subr.bf16.mxu0 0
        %5879 = vmatpush1.bf16.msra.mxu0 %v5785
        %5880 = vmatprep.subr.bf16.mxu0 0
        %5881 = vmatpush1.bf16.msra.mxu0 %v5786
        %5882 = vmatprep.subr.bf16.mxu0 0
        %5883 = vmatpush1.bf16.msra.mxu0 %v5787
        %5884 = vmatprep.subr.bf16.mxu0 0
        %5885 = vmatpush1.bf16.msra.mxu0 %v5788
        %5886 = vmatprep.subr.bf16.mxu0 0
        %5887 = vmatpush1.bf16.msra.mxu0 %v5789
        %5888 = vmatprep.subr.bf16.mxu0 0
        %5889 = vmatpush1.bf16.msra.mxu0 %v5790
        %5890 = vmatprep.subr.bf16.mxu0 0
        %5891 = vmatpush1.bf16.msra.mxu0 %v5791
        %5892 = vmatprep.subr.bf16.mxu0 0
        %5893 = vmatpush1.bf16.msra.mxu0 %v5792
        %5894 = vmatprep.subr.bf16.mxu0 0
        %5895 = vmatpush1.bf16.msra.mxu0 %v5793
        %5896 = vmatprep.subr.bf16.mxu0 0
        %5897 = vmatpush1.bf16.msra.mxu0 %v5794
        %5898 = vmatprep.subr.bf16.mxu0 0
        %5899 = vmatpush1.bf16.msra.mxu0 %v5795
        %5900 = vmatprep.mubr.bf16.mxu0 %v5571
        %5901 = vmatmul.mubr.bf16.gmra.mrb[0].mxu0 %v5570
        %v5902 = vpop.f32.mrb[0].mxu0
        %v5903 = vadd.f32 %v5863, %v5902
        %v5904 = vpop.f32.mrb[0].mxu0
        %v5905 = vpop.f32.mrb[0].mxu0
        %v5906 = vpop.f32.mrb[0].mxu0
        %5907 = vdwg.mxu0
        %v5908 = vadd.f32 %v5307, %v5903
        %v5909 = vld [vmem:[#allocation12] sm:$0x1]
        %v5911 = vlaneseq
        %v5912 = vshrl.u32 %v5911, 7
        %v5913 = vsub.s32 0, %v5912
        %v5914 = vrot.slane %v5909, %v5913
        %v5916 = vadd.f32 %v5908, %v5914
        %v5917 = vadd.f32 %v3501, %v5916
        %v5918 = vsel %vm2644, %v5917, 0.0
        %5919 = vadd.xlane.f32.xlu0 %v5918
        %v5920 = vpop.xlane.xlu0 %5919
        %v5921 = vmul.f32 %v5920, %v3464
        %v5922 = vsub.f32 %v5917, %v5921
        %v5923 = vmul.f32 %v5922, %v5922
        %v5924 = vsel %vm2644, %v5923, 0.0
        %5925 = vadd.xlane.f32.xlu0 %v5924
        %v5926 = vpop.xlane.xlu0 %5925
        %v5927 = vmul.f32 %v5926, %v3464
        %v5928 = vadd.f32 %v5927, 1e-05
        %v5929 = vrsqrt.pop %v5928
        %v5930 = vmul.f32 %v5922, %v5929
        %v5931 = vld [vmem:[#allocation13] sm:$0x1]
        %v5933 = vlaneseq
        %v5934 = vshrl.u32 %v5933, 7
        %v5935 = vsub.s32 0, %v5934
        %v5936 = vrot.slane %v5931, %v5935
        %v5938 = vmul.f32 %v5930, %v5936
        %v5939 = vld [vmem:[#allocation15] sm:$0x1]
        %v5941 = vlaneseq
        %v5942 = vshrl.u32 %v5941, 7
        %v5943 = vsub.s32 0, %v5942
        %v5944 = vrot.slane %v5939, %v5943
        %v5946 = vadd.f32 %v5938, %v5944
        %v5947 = vpack.c.bf16 %v5946, %v5946
        %v5948 = vld [vmem:[%s20] sm:$0xf]
        %v5949 = vld [vmem:[%s20 + $0x4] sm:$0xf]
        %v5950 = vld [vmem:[%s20 + $0x8] sm:$0xf]
        %v5951 = vld [vmem:[%s20 + $0xc] sm:$0xf]
        %v5952 = vld [vmem:[%s20 + $0x10] sm:$0xf]
        %v5953 = vld [vmem:[%s20 + $0x14] sm:$0xf]
        %v5954 = vld [vmem:[%s20 + $0x18] sm:$0xf]
        %v5955 = vld [vmem:[%s20 + $0x1c] sm:$0xf]
        %v5956 = vld [vmem:[%s20 + $0x20] sm:$0xf]
        %v5957 = vld [vmem:[%s20 + $0x24] sm:$0xf]
        %v5958 = vld [vmem:[%s20 + $0x28] sm:$0xf]
        %v5959 = vld [vmem:[%s20 + $0x2c] sm:$0xf]
        %v5960 = vld [vmem:[#allocation16] sm:$0x1]
        %v5973 = vunpack.c.l.b16 %v5948
        %v5974 = vunpack.c.l.b16 %v5949
        %v5975 = vunpack.c.l.b16 %v5950
        %v5976 = vunpack.c.l.b16 %v5951
        %v5977 = vunpack.c.l.b16 %v5952
        %v5978 = vunpack.c.l.b16 %v5953
        %v5979 = vunpack.c.l.b16 %v5954
        %v5980 = vunpack.c.l.b16 %v5955
        %v5981 = vunpack.c.l.b16 %v5956
        %v5982 = vunpack.c.l.b16 %v5957
        %v5983 = vunpack.c.l.b16 %v5958
        %v5984 = vunpack.c.l.b16 %v5959
        %v5985 = vpack.c.b16 %v5974, %v5973
        %v5986 = vpack.c.b16 %v5976, %v5975
        %v5987 = vpack.c.b16 %v5978, %v5977
        %v5988 = vpack.c.b16 %v5980, %v5979
        %v5989 = vpack.c.b16 %v5982, %v5981
        %v5990 = vpack.c.b16 %v5984, %v5983
        %v5998 = vsel %vm2644, %v5947, 0
        %6000 = vmatprep.subr.bf16.mxu0 0
        %6001 = vmatpush1.bf16.msra.mxu0 %v5985
        %6002 = vmatprep.subr.bf16.mxu0 0
        %6003 = vmatpush1.bf16.msra.mxu0 %v5986
        %6004 = vmatprep.subr.bf16.mxu0 0
        %6005 = vmatpush1.bf16.msra.mxu0 %v5987
        %6006 = vmatprep.subr.bf16.mxu0 0
        %6007 = vmatpush1.bf16.msra.mxu0 %v5988
        %6008 = vmatprep.subr.bf16.mxu0 0
        %6009 = vmatpush1.bf16.msra.mxu0 %v5989
        %6010 = vmatprep.subr.bf16.mxu0 0
        %6011 = vmatpush1.bf16.msra.mxu0 %v5990
        %6012 = vmatprep.subr.bf16.mxu0 0
        %6013 = vmatpush1.bf16.msra.mxu0 0
        %6014 = vmatprep.subr.bf16.mxu0 0
        %6015 = vmatpush1.bf16.msra.mxu0 0
        %6016 = vmatprep.subr.bf16.mxu0 0
        %6017 = vmatpush1.bf16.msra.mxu0 0
        %6018 = vmatprep.subr.bf16.mxu0 0
        %6019 = vmatpush1.bf16.msra.mxu0 0
        %6020 = vmatprep.subr.bf16.mxu0 0
        %6021 = vmatpush1.bf16.msra.mxu0 0
        %6022 = vmatprep.subr.bf16.mxu0 0
        %6023 = vmatpush1.bf16.msra.mxu0 0
        %6024 = vmatprep.subr.bf16.mxu0 0
        %6025 = vmatpush1.bf16.msra.mxu0 0
        %6026 = vmatprep.subr.bf16.mxu0 0
        %6027 = vmatpush1.bf16.msra.mxu0 0
        %6028 = vmatprep.subr.bf16.mxu0 0
        %6029 = vmatpush1.bf16.msra.mxu0 0
        %6030 = vmatprep.subr.bf16.mxu0 0
        %6031 = vmatpush1.bf16.msra.mxu0 0
        %6032 = vmatprep.mubr.bf16.mxu0 0
        %6033 = vmatmul.mubr.bf16.gmra.mrb[0].mxu0 %v5998
        %v6034 = vpop.f32.mrb[0].mxu0
        %v6035 = vadd.f32 %v5960, %v6034
        %v6036 = vpop.f32.mrb[0].mxu0
        %v6037 = vpop.f32.mrb[0].mxu0
        %v6038 = vpop.f32.mrb[0].mxu0
        %6039 = vdwg.mxu0
        %v6040 = vpack.c.bf16 %v6035, %v6035
        %v6041 = vld [vmem:[#allocation18] sm:$0xf]
        %v6042 = vld [vmem:[#allocation18 + $0x4] sm:$0xf]
        %v6043 = vld [vmem:[#allocation18 + $0x8] sm:$0xf]
        %v6044 = vld [vmem:[#allocation18 + $0xc] sm:$0xf]
        %v6045 = vld [vmem:[#allocation18 + $0x10] sm:$0xf]
        %v6046 = vld [vmem:[#allocation18 + $0x14] sm:$0xf]
        %v6047 = vld [vmem:[#allocation19] sm:$0x1]
        %v6054 = vunpack.c.l.b16 %v6041
        %v6055 = vunpack.c.l.b16 %v6042
        %v6056 = vunpack.c.l.b16 %v6043
        %v6057 = vunpack.c.l.b16 %v6044
        %v6058 = vunpack.c.l.b16 %v6045
        %v6059 = vunpack.c.l.b16 %v6046
        %v6060 = vpack.c.b16 %v6055, %v6054
        %v6061 = vpack.c.b16 %v6057, %v6056
        %v6062 = vpack.c.b16 %v6059, %v6058
        %v6067 = vsel %vm3350, %v6040, 0
        %6069 = vmatprep.subr.bf16.mxu0 0
        %6070 = vmatpush1.bf16.msra.mxu0 %v6060
        %6071 = vmatprep.subr.bf16.mxu0 0
        %6072 = vmatpush1.bf16.msra.mxu0 %v6061
        %6073 = vmatprep.subr.bf16.mxu0 0
        %6074 = vmatpush1.bf16.msra.mxu0 %v6062
        %6075 = vmatprep.subr.bf16.mxu0 0
        %6076 = vmatpush1.bf16.msra.mxu0 0
        %6077 = vmatprep.subr.bf16.mxu0 0
        %6078 = vmatpush1.bf16.msra.mxu0 0
        %6079 = vmatprep.subr.bf16.mxu0 0
        %6080 = vmatpush1.bf16.msra.mxu0 0
        %6081 = vmatprep.subr.bf16.mxu0 0
        %6082 = vmatpush1.bf16.msra.mxu0 0
        %6083 = vmatprep.subr.bf16.mxu0 0
        %6084 = vmatpush1.bf16.msra.mxu0 0
        %6085 = vmatprep.subr.bf16.mxu0 0
        %6086 = vmatpush1.bf16.msra.mxu0 0
        %6087 = vmatprep.subr.bf16.mxu0 0
        %6088 = vmatpush1.bf16.msra.mxu0 0
        %6089 = vmatprep.subr.bf16.mxu0 0
        %6090 = vmatpush1.bf16.msra.mxu0 0
        %6091 = vmatprep.subr.bf16.mxu0 0
        %6092 = vmatpush1.bf16.msra.mxu0 0
        %6093 = vmatprep.subr.bf16.mxu0 0
        %6094 = vmatpush1.bf16.msra.mxu0 0
        %6095 = vmatprep.subr.bf16.mxu0 0
        %6096 = vmatpush1.bf16.msra.mxu0 0
        %6097 = vmatprep.subr.bf16.mxu0 0
        %6098 = vmatpush1.bf16.msra.mxu0 0
        %6099 = vmatprep.subr.bf16.mxu0 0
        %6100 = vmatpush1.bf16.msra.mxu0 0
        %6101 = vmatprep.mubr.bf16.mxu0 0
        %6102 = vmatmul.mubr.bf16.gmra.mrb[0].mxu0 %v6067
        %v6103 = vpop.f32.mrb[0].mxu0
        %v6104 = vadd.f32 %v6047, %v6103
        %v6105 = vpop.f32.mrb[0].mxu0
        %v6106 = vpop.f32.mrb[0].mxu0
        %v6107 = vpop.f32.mrb[0].mxu0
        %6108 = vdwg.mxu0
        %6109 = vst [vmem:[%s952] sm:$0x1] %v6104
        %p6110 = scmp.lt.s32.totalorder %s44, 1
        %s6111 = scalar_select %p6110, %s44, 1
        %s6112 = scalar_lea.vmem %s24, %s6111
        %p6113 = scmp.lt.s32.totalorder %s44, 1
        %s6114 = scalar_select %p6113, %s44, 1
        %s6115 = smul.addr %s6114, 2
        %s6116 = smul.addr %s6115, 8
        %s6117 = scalar_lea.vmem %s25, %s6116
        // Predicated region
        $region165: #{transformer_forward.1} parent=115 // pred_check
          %p6118 = pneg %p581
        $region166: #{transformer_forward.1} parent=115 // pred_check_branch
          %6120 = sbr.rel (%p6118) target = $region168
        $region167: #{transformer_forward.1} parent=115 // pred_region
          _
        $region168: #{transformer_forward.1} parent=115 // pred_fallthru
          _
        // Predicated region
        $region169: #{transformer_forward.1} parent=115 // pred_check
          %p6121 = pneg %p607
        $region170: #{transformer_forward.1} parent=115 // pred_check_branch
          %6123 = sbr.rel (%p6121) target = $region172
        $region171: #{transformer_forward.1} parent=115 // pred_region
          _
        $region172: #{transformer_forward.1} parent=115 // pred_fallthru
          _
      $region116: #{transformer_forward.1} parent=5 // pred_fallthru
        _
      %p6124 = scmp.le.s32.totalorder 2, %s39
      // Predicated region
      $region173: #{transformer_forward.1} parent=5 // pred_check
        %p6125 = pneg %p6124
      $region174: #{transformer_forward.1} parent=5 // pred_check_branch
        %6127 = sbr.rel (%p6125) target = $region176
      $region175: #{transformer_forward.1} parent=5 // pred_region
        %s6128 = ssub.s32 %s39, 2
        // Predicated region
        $region177: #{transformer_forward.1} parent=175 // pred_check
          %p6129 = pneg %p587
        $region178: #{transformer_forward.1} parent=175 // pred_check_branch
          %6131 = sbr.rel (%p6129) target = $region180
        $region179: #{transformer_forward.1} parent=175 // pred_region
          %p6132 = scmp.lt.s32.totalorder %s45, 1
          %s6133 = scalar_select %p6132, %s45, 1
          %s6134 = scalar_lea.vmem %s24, %s6133
        $region180: #{transformer_forward.1} parent=175 // pred_fallthru
          _
        // Predicated region
        $region181: #{transformer_forward.1} parent=175 // pred_check
          %p6135 = pneg %p613
        $region182: #{transformer_forward.1} parent=175 // pred_check_branch
          %6137 = sbr.rel (%p6135) target = $region184
        $region183: #{transformer_forward.1} parent=175 // pred_region
          %p6138 = scmp.lt.s32.totalorder %s45, 1
          %s6139 = scalar_select %p6138, %s45, 1
          %s6140 = smul.addr %s6139, 2
          %s6141 = smul.addr %s6140, 8
          %s6142 = scalar_lea.vmem %s25, %s6141
        $region184: #{transformer_forward.1} parent=175 // pred_fallthru
          _
      $region176: #{transformer_forward.1} parent=5 // pred_fallthru
        _
    $region6: #{transformer_forward.1} parent=1 // loop_footer
      %s43 = sadd.s32 1, %s39
    $region7: #{transformer_forward.1} parent=1 // loop_footer_branch
      %38 = sbr.rel target = $region3
    $region8: #{transformer_forward.1} parent=1 // loop_exit
      _
    %6143 = vsyncpa [#allocation3], 1
    %s6144 = scalar_lea.sflag [#allocation3], 1
    %6145 = vsyncpa %s6144, 1
    %6146 = vsyncpa [#allocation5], 1
    %6147 = vsyncpa [#allocation8], 1
    %6148 = vsyncpa [#allocation11], 1
    %6149 = vsyncpa [#allocation14], 1
    %6150 = vsyncpa [#allocation17], 1
    %6151 = vsyncpa [#allocation20], 1

</llo_original>
